<compile_context>
chip_gen: v6e
topology: v6e:2x2x1
jax: 0.10.0
libtpu: 0.0.40
codegen_flags: <defaults>
</compile_context>

<pallas_src>
import math

import numpy as np
import jax
import jax.numpy as jnp
from jax.experimental import pallas as pl
from jax.experimental.pallas import tpu as pltpu

EPS = 1e-5   # nn.BatchNorm2d default eps
_K = 5       # conv kernel size (fixed by the module: k=5, stride=2, padding=2)


def _conv_out(n):
    # output spatial size of Conv2d(kernel=5, stride=2, padding=2)
    return (n + 2 * 2 - _K) // 2 + 1


def _round_up(n, m):
    return ((n + m - 1) // m) * m


# ---------------------------------------------------------------------------
# The single fused Pallas kernel
# ---------------------------------------------------------------------------
def _encoder_kernel(x_ref,
                    M1, P1, B1, g1, t1,
                    M2, P2, B2, g2, t2,
                    M3, P3, B3, g3, t3,
                    W1, b1, W2, b2, W3, b3,
                    o_ref):
    """Whole Encoder forward on VMEM-resident data (everything here is tiny)."""

    def conv_bn_relu(a, M, Pn, Bc, gamma, beta):
        # a: (N, Hin*Win*Cin) bf16, NHWC-flat.  One deep-K bf16 MXU GEMM does the
        # conv (stride + zero padding folded into the constant M); f32 accum.
        y = jnp.dot(a, M[...], preferred_element_type=jnp.float32)   # (N, Ho*Wo*Cout)

        # Training-mode BatchNorm (biased variance), all statistics in f32.
        # Conv bias is omitted on purpose: BN's mean subtraction cancels it.
        stats = jnp.concatenate(
            [jnp.sum(y, axis=0, keepdims=True),
             jnp.sum(y * y, axis=0, keepdims=True)], axis=0)          # (2, ncol)
        pooled = jnp.dot(stats, Pn[...],
                         preferred_element_type=jnp.float32)          # (2, Cout)
        mean = pooled[0:1, :]
        var = jnp.maximum(pooled[1:2, :] - mean * mean, 0.0)          # clamp >= 0
        s = gamma[...] * jax.lax.rsqrt(var + EPS)                     # (1, Cout)
        t = beta[...] - mean * s                                      # (1, Cout)
        # Broadcast per-channel (scale, shift) back to the (h, w, c) column layout.
        st = jnp.dot(jnp.concatenate([s, t], axis=0), Bc[...],
                     preferred_element_type=jnp.float32)              # (2, ncol)
        z = jnp.maximum(y * st[0:1, :] + st[1:2, :], 0.0)             # fma + ReLU
        return z.astype(jnp.bfloat16)                                 # feed next MXU dot

    a = conv_bn_relu(x_ref[...], M1, P1, B1, g1, t1)
    a = conv_bn_relu(a, M2, P2, B2, g2, t2)
    a = conv_bn_relu(a, M3, P3, B3, g3, t3)

    # Flatten is a no-op here: conv3's (h, w, c) column order was folded into W1
    # on the host, so fc1 is a single dot.
    h = jnp.dot(a, W1[...], preferred_element_type=jnp.float32) + b1[...]
    h = jnp.maximum(h, 0.0)
    h = jnp.dot(h.astype(jnp.bfloat16), W2[...],
                preferred_element_type=jnp.float32) + b2[...]
    h = jnp.maximum(h, 0.0)
    h = jnp.dot(h.astype(jnp.bfloat16), W3[...],
                preferred_element_type=jnp.float32) + b3[...]
    h = jnp.maximum(h, 0.0)
    o_ref[...] = h[:, :o_ref.shape[1]]   # drop the lane padding of the last FC


# ---------------------------------------------------------------------------
# Host-side, one-time parameter preparation (nothing is re-derived per forward)
# ---------------------------------------------------------------------------
def prepare_params(params, batch_size, im_size):
    N = int(batch_size)

    def conv_layer(w_oihw, gamma, beta, Hin, Win):
        w = np.asarray(w_oihw, np.float32)                 # (Cout, Cin, K, K)
        Cout, Cin, K, _ = w.shape
        Ho, Wo = _conv_out(Hin), _conv_out(Win)
        # Conv (stride 2, pad 2) as one GEMM: rows = NHWC-flat input positions,
        # cols = NHWC-flat output positions.  Padded taps are simply omitted.
        M = np.zeros((Hin * Win * Cin, Ho * Wo * Cout), np.float32)
        for i in range(Ho):
            for kh in range(K):
                p = 2 * i + kh - 2
                if not (0 <= p < Hin):
                    continue
                for j in range(Wo):
                    for kw in range(K):
                        q = 2 * j + kw - 2
                        if not (0 <= q < Win):
                            continue
                        r0 = (p * Win + q) * Cin
                        c0 = (i * Wo + j) * Cout
                        M[r0:r0 + Cin, c0:c0 + Cout] += w[:, :, kh, kw].T
        # Pool the (h, w, c)-ordered column sums down to per-channel means.
        Pn = np.tile(np.eye(Cout, dtype=np.float32), (Ho * Wo, 1)) / float(N * Ho * Wo)
        # Broadcast per-channel scale/shift back to the (h, w, c) column layout.
        Bc = np.tile(np.eye(Cout, dtype=np.float32), (1, Ho * Wo))
        g = np.asarray(gamma, np.float32)[None, :]
        b = np.asarray(beta, np.float32)[None, :]
        return [M, Pn, Bc, g, b], (Ho, Wo, Cout)

    H = W = int(im_size)
    c1, (H, W, _) = conv_layer(params["conv1_w"], params["bn1_g"], params["bn1_b"], H, W)
    c2, (H, W, _) = conv_layer(params["conv2_w"], params["bn2_g"], params["bn2_b"], H, W)
    c3, (H3, W3, C3) = conv_layer(params["conv3_w"], params["bn3_g"], params["bn3_b"], H, W)

    # fc1: fold the NCHW flatten permutation (c, h, w) -> (h, w, c) into the weight.
    fc1_w = np.asarray(params["fc1_w"], np.float32)        # (d1, C3*H3*W3)
    d1 = fc1_w.shape[0]
    assert fc1_w.shape[1] == C3 * H3 * W3
    W1 = fc1_w.reshape(d1, C3, H3, W3).transpose(2, 3, 1, 0).reshape(H3 * W3 * C3, d1)
    fc2_w = np.asarray(params["fc2_w"], np.float32).T      # (d1, d2)
    fc3_w = np.asarray(params["fc3_w"], np.float32).T      # (d2, dim_out)
    d2, dim_out = fc2_w.shape[1], fc3_w.shape[1]

    # Lane-dense FC layouts: zero-pad every FC width up to a multiple of 128.
    d1p = _round_up(d1, 128)
    d2p = _round_up(d2, 128)
    dop = _round_up(dim_out, 128)

    def pad2(a, rows, cols):
        return np.pad(a, ((0, rows - a.shape[0]), (0, cols - a.shape[1])))

    W1p = pad2(W1, W1.shape[0], d1p)
    b1p = pad2(np.asarray(params["fc1_b"], np.float32)[None, :], 1, d1p)
    W2p = pad2(fc2_w, d1p, d2p)
    b2p = pad2(np.asarray(params["fc2_b"], np.float32)[None, :], 1, d2p)
    W3p = pad2(fc3_w, d2p, dop)
    b3p = pad2(np.asarray(params["fc3_b"], np.float32)[None, :], 1, dop)

    def bf16(a):
        return jnp.asarray(a, jnp.bfloat16)

    def f32(a):
        return jnp.asarray(a, jnp.float32)

    def conv_inputs(c):
        M, Pn, Bc, g, b = c
        return [bf16(M), f32(Pn), f32(Bc), f32(g), f32(b)]

    inputs = (conv_inputs(c1) + conv_inputs(c2) + conv_inputs(c3)
              + [bf16(W1p), f32(b1p), bf16(W2p), f32(b2p), bf16(W3p), f32(b3p)])
    return {"inputs": inputs, "dim_out": int(dim_out)}


# ---------------------------------------------------------------------------
# Forward: tiny XLA glue (layout + bf16 cast of the input) + ONE pallas_call
# ---------------------------------------------------------------------------
def encoder_forward(prep, x_nchw):
    N, Cin, H, W = x_nchw.shape
    # NCHW -> NHWC -> (N, H*W*Cin); the bf16 cast happens host/XLA-side so the
    # kernel's elementwise path stays pure f32 (relevant on v5e).
    x2d = (jnp.transpose(x_nchw, (0, 2, 3, 1))
           .reshape(N, H * W * Cin)
           .astype(jnp.bfloat16))
    inputs = [x2d] + list(prep["inputs"])
    return pl.pallas_call(
        _encoder_kernel,
        out_shape=jax.ShapeDtypeStruct((N, prep["dim_out"]), jnp.float32),
        in_specs=[pl.BlockSpec(memory_space=pltpu.MemorySpace.VMEM) for _ in inputs],
        out_specs=pl.BlockSpec(memory_space=pltpu.MemorySpace.VMEM),
    )(*inputs)


# ---------------------------------------------------------------------------
# Parameter init (mirrors the PyTorch module's parameter set)
# ---------------------------------------------------------------------------
def init_encoder_params(key, dim_in=4, dim_out=16, dim1=8, dim2=32, im_size=16):
    dim_hidden = [dim1, dim1 * 2, dim1 * 4, dim2, dim2]
    keys = jax.random.split(key, 6)

    def conv_p(k, cout, cin, ksz=5):
        kw, kb = jax.random.split(k)
        bound = 1.0 / math.sqrt(cin * ksz * ksz)
        w = jax.random.uniform(kw, (cout, cin, ksz, ksz), jnp.float32, -bound, bound)
        b = jax.random.uniform(kb, (cout,), jnp.float32, -bound, bound)
        return w, b

    def lin_p(k, nout, nin):
        kw, kb = jax.random.split(k)
        bound = 1.0 / math.sqrt(nin)
        w = jax.random.uniform(kw, (nout, nin), jnp.float32, -bound, bound)
        b = jax.random.uniform(kb, (nout,), jnp.float32, -bound, bound)
        return w, b

    p = {}
    p["conv1_w"], p["conv1_b"] = conv_p(keys[0], dim_hidden[0], dim_in)
    p["conv2_w"], p["conv2_b"] = conv_p(keys[1], dim_hidden[1], dim_hidden[0])
    p["conv3_w"], p["conv3_b"] = conv_p(keys[2], dim_hidden[2], dim_hidden[1])
    for i, c in enumerate(dim_hidden[:3], start=1):        # BatchNorm2d default init
        p[f"bn{i}_g"] = jnp.ones((c,), jnp.float32)
        p[f"bn{i}_b"] = jnp.zeros((c,), jnp.float32)
    fc1_in = dim_hidden[2] * math.ceil(im_size / 8) ** 2
    p["fc1_w"], p["fc1_b"] = lin_p(keys[3], dim_hidden[3], fc1_in)
    p["fc2_w"], p["fc2_b"] = lin_p(keys[4], dim_hidden[4], dim_hidden[3])
    p["fc3_w"], p["fc3_b"] = lin_p(keys[5], dim_out, dim_hidden[4])
    return p


# ---------------------------------------------------------------------------
# Pure-JAX reference implementing the PyTorch module verbatim (f32)
# ---------------------------------------------------------------------------
def encoder_reference(params, x):
    def conv_bn_relu(h, w, b, g, beta):
        y = jax.lax.conv_general_dilated(
            h, w, window_strides=(2, 2), padding=((2, 2), (2, 2)),
            dimension_numbers=("NCHW", "OIHW", "NCHW"))
        y = y + b[None, :, None, None]
        mean = jnp.mean(y, axis=(0, 2, 3), keepdims=True)
        var = jnp.mean(jnp.square(y - mean), axis=(0, 2, 3), keepdims=True)
        y = (y - mean) * jax.lax.rsqrt(var + EPS)
        y = y * g[None, :, None, None] + beta[None, :, None, None]
        return jnp.maximum(y, 0.0)

    h = conv_bn_relu(x, params["conv1_w"], params["conv1_b"], params["bn1_g"], params["bn1_b"])
    h = conv_bn_relu(h, params["conv2_w"], params["conv2_b"], params["bn2_g"], params["bn2_b"])
    h = conv_bn_relu(h, params["conv3_w"], params["conv3_b"], params["bn3_g"], params["bn3_b"])
    h = h.reshape(h.shape[0], -1)                                  # NCHW flatten
    h = jnp.maximum(h @ params["fc1_w"].T + params["fc1_b"], 0.0)
    h = jnp.maximum(h @ params["fc2_w"].T + params["fc2_b"], 0.0)
    h = jnp.maximum(h @ params["fc3_w"].T + params["fc3_b"], 0.0)
    return h


if __name__ == "__main__":
    # Small-shape configuration consistent with the module:
    # dim_in=4, dim1=8, dim2=32, dim_out=16, im_size=16, batch=2.
    key = jax.random.PRNGKey(0)
    k_param, k_x = jax.random.split(key)
    params = init_encoder_params(k_param, dim_in=4, dim_out=16, dim1=8, dim2=32, im_size=16)
    x = jax.random.normal(k_x, (2, 4, 16, 16), jnp.float32)       # NCHW input

    # One-time host-side prep (conv GEMM matrices, permuted/padded FC weights).
    prep = prepare_params(params, batch_size=x.shape[0], im_size=16)

    forward = jax.jit(lambda inp: encoder_forward(prep, inp))
    out = jax.block_until_ready(forward(x))
    assert out.shape == (2, 16), out.shape

    # Correctness check vs. the pure-JAX f32 reference.  The kernel runs its
    # matmuls with bf16 operands (f32 accumulation), hence the loose tolerance;
    # a layout/semantics bug would produce O(1) errors and still be caught.
    ref = np.asarray(jax.block_until_ready(encoder_reference(params, x)))
    np.testing.assert_allclose(np.asarray(out), ref, atol=0.15, rtol=0.15)
    print("KERNEL_OK")
</pallas_src>

<mosaic_0001>
module attributes {stable_mosaic.version = 11 : i64} {
  func.func @_encoder_kernel(%arg0: memref<2x1024xbf16, #tpu.memory_space<vmem>>, %arg1: memref<1024x512xbf16, #tpu.memory_space<vmem>>, %arg2: memref<512x8xf32, #tpu.memory_space<vmem>>, %arg3: memref<8x512xf32, #tpu.memory_space<vmem>>, %arg4: memref<1x8xf32, #tpu.memory_space<vmem>>, %arg5: memref<1x8xf32, #tpu.memory_space<vmem>>, %arg6: memref<512x256xbf16, #tpu.memory_space<vmem>>, %arg7: memref<256x16xf32, #tpu.memory_space<vmem>>, %arg8: memref<16x256xf32, #tpu.memory_space<vmem>>, %arg9: memref<1x16xf32, #tpu.memory_space<vmem>>, %arg10: memref<1x16xf32, #tpu.memory_space<vmem>>, %arg11: memref<256x128xbf16, #tpu.memory_space<vmem>>, %arg12: memref<128x32xf32, #tpu.memory_space<vmem>>, %arg13: memref<32x128xf32, #tpu.memory_space<vmem>>, %arg14: memref<1x32xf32, #tpu.memory_space<vmem>>, %arg15: memref<1x32xf32, #tpu.memory_space<vmem>>, %arg16: memref<128x128xbf16, #tpu.memory_space<vmem>>, %arg17: memref<1x128xf32, #tpu.memory_space<vmem>>, %arg18: memref<128x128xbf16, #tpu.memory_space<vmem>>, %arg19: memref<1x128xf32, #tpu.memory_space<vmem>>, %arg20: memref<128x128xbf16, #tpu.memory_space<vmem>>, %arg21: memref<1x128xf32, #tpu.memory_space<vmem>>, %arg22: memref<2x16xf32, #tpu.memory_space<vmem>>) attributes {dimension_semantics = [], scalar_prefetch = 0 : i64, scratch_operands = 0 : i64, tpu.core_type = #tpu.core_type<tc>} {
    %c0 = arith.constant 0 : index
    %c0_0 = arith.constant 0 : index
    %0 = vector.load %arg0[%c0, %c0_0] : memref<2x1024xbf16, #tpu.memory_space<vmem>>, vector<2x1024xbf16>
    %c0_1 = arith.constant 0 : index
    %c0_2 = arith.constant 0 : index
    %1 = vector.load %arg1[%c0_1, %c0_2] : memref<1024x512xbf16, #tpu.memory_space<vmem>>, vector<1024x512xbf16>
    %cst = arith.constant dense<0.000000e+00> : vector<2x512xf32>
    %2 = tpu.matmul %0, %1, %cst {dimension_numbers = #tpu.dot_dimension_numbers<[1], [0], [0], [1], [0, 0, 1, 1], [], []>} : vector<2x1024xbf16>, vector<1024x512xbf16>, vector<2x512xf32> -> vector<2x512xf32>
    %cst_3 = arith.constant dense<0.000000e+00> : vector<512xf32>
    %3 = vector.multi_reduction <add>, %2, %cst_3 [0] : vector<2x512xf32> to vector<512xf32>
    %4 = vector.shape_cast %3 : vector<512xf32> to vector<1x512xf32>
    %5 = arith.mulf %2, %2 : vector<2x512xf32>
    %cst_4 = arith.constant dense<0.000000e+00> : vector<512xf32>
    %6 = vector.multi_reduction <add>, %5, %cst_4 [0] : vector<2x512xf32> to vector<512xf32>
    %7 = vector.shape_cast %6 : vector<512xf32> to vector<1x512xf32>
    %8 = tpu.concatenate %4, %7 in 0 : vector<1x512xf32>, vector<1x512xf32> -> vector<2x512xf32>
    %c0_5 = arith.constant 0 : index
    %c0_6 = arith.constant 0 : index
    %9 = vector.load %arg2[%c0_5, %c0_6] : memref<512x8xf32, #tpu.memory_space<vmem>>, vector<512x8xf32>
    %cst_7 = arith.constant dense<0.000000e+00> : vector<2x8xf32>
    %10 = tpu.matmul %8, %9, %cst_7 {dimension_numbers = #tpu.dot_dimension_numbers<[1], [0], [0], [1], [0, 0, 1, 1], [], []>} : vector<2x512xf32>, vector<512x8xf32>, vector<2x8xf32> -> vector<2x8xf32>
    %11 = vector.extract_strided_slice %10 {offsets = [0, 0], sizes = [1, 8], strides = [1, 1]} : vector<2x8xf32> to vector<1x8xf32>
    %12 = vector.extract_strided_slice %10 {offsets = [1, 0], sizes = [1, 8], strides = [1, 1]} : vector<2x8xf32> to vector<1x8xf32>
    %13 = arith.mulf %11, %11 : vector<1x8xf32>
    %14 = arith.subf %12, %13 : vector<1x8xf32>
    %cst_8 = arith.constant 0.000000e+00 : f32
    %15 = vector.broadcast %cst_8 : f32 to vector<1x8xf32>
    %16 = arith.maximumf %14, %15 : vector<1x8xf32>
    %c0_9 = arith.constant 0 : index
    %c0_10 = arith.constant 0 : index
    %17 = vector.load %arg4[%c0_9, %c0_10] : memref<1x8xf32, #tpu.memory_space<vmem>>, vector<1x8xf32>
    %cst_11 = arith.constant 9.99999974E-6 : f32
    %18 = vector.broadcast %cst_11 : f32 to vector<1x8xf32>
    %19 = arith.addf %16, %18 : vector<1x8xf32>
    %20 = math.rsqrt %19 : vector<1x8xf32>
    %21 = arith.mulf %17, %20 : vector<1x8xf32>
    %c0_12 = arith.constant 0 : index
    %c0_13 = arith.constant 0 : index
    %22 = vector.load %arg5[%c0_12, %c0_13] : memref<1x8xf32, #tpu.memory_space<vmem>>, vector<1x8xf32>
    %23 = arith.mulf %11, %21 : vector<1x8xf32>
    %24 = arith.subf %22, %23 : vector<1x8xf32>
    %25 = tpu.concatenate %21, %24 in 0 : vector<1x8xf32>, vector<1x8xf32> -> vector<2x8xf32>
    %c0_14 = arith.constant 0 : index
    %c0_15 = arith.constant 0 : index
    %26 = vector.load %arg3[%c0_14, %c0_15] : memref<8x512xf32, #tpu.memory_space<vmem>>, vector<8x512xf32>
    %cst_16 = arith.constant dense<0.000000e+00> : vector<2x512xf32>
    %27 = tpu.matmul %25, %26, %cst_16 {dimension_numbers = #tpu.dot_dimension_numbers<[1], [0], [0], [1], [0, 0, 1, 1], [], []>} : vector<2x8xf32>, vector<8x512xf32>, vector<2x512xf32> -> vector<2x512xf32>
    %28 = vector.extract_strided_slice %27 {offsets = [0, 0], sizes = [1, 512], strides = [1, 1]} : vector<2x512xf32> to vector<1x512xf32>
    %29 = vector.broadcast %28 : vector<1x512xf32> to vector<2x512xf32>
    %30 = arith.mulf %2, %29 : vector<2x512xf32>
    %31 = vector.extract_strided_slice %27 {offsets = [1, 0], sizes = [1, 512], strides = [1, 1]} : vector<2x512xf32> to vector<1x512xf32>
    %32 = vector.broadcast %31 : vector<1x512xf32> to vector<2x512xf32>
    %33 = arith.addf %30, %32 : vector<2x512xf32>
    %cst_17 = arith.constant 0.000000e+00 : f32
    %34 = vector.broadcast %cst_17 : f32 to vector<2x512xf32>
    %35 = arith.maximumf %33, %34 : vector<2x512xf32>
    %36 = arith.truncf %35 : vector<2x512xf32> to vector<2x512xbf16>
    %c0_18 = arith.constant 0 : index
    %c0_19 = arith.constant 0 : index
    %37 = vector.load %arg6[%c0_18, %c0_19] : memref<512x256xbf16, #tpu.memory_space<vmem>>, vector<512x256xbf16>
    %cst_20 = arith.constant dense<0.000000e+00> : vector<2x256xf32>
    %38 = tpu.matmul %36, %37, %cst_20 {dimension_numbers = #tpu.dot_dimension_numbers<[1], [0], [0], [1], [0, 0, 1, 1], [], []>} : vector<2x512xbf16>, vector<512x256xbf16>, vector<2x256xf32> -> vector<2x256xf32>
    %cst_21 = arith.constant dense<0.000000e+00> : vector<256xf32>
    %39 = vector.multi_reduction <add>, %38, %cst_21 [0] : vector<2x256xf32> to vector<256xf32>
    %40 = vector.shape_cast %39 : vector<256xf32> to vector<1x256xf32>
    %41 = arith.mulf %38, %38 : vector<2x256xf32>
    %cst_22 = arith.constant dense<0.000000e+00> : vector<256xf32>
    %42 = vector.multi_reduction <add>, %41, %cst_22 [0] : vector<2x256xf32> to vector<256xf32>
    %43 = vector.shape_cast %42 : vector<256xf32> to vector<1x256xf32>
    %44 = tpu.concatenate %40, %43 in 0 : vector<1x256xf32>, vector<1x256xf32> -> vector<2x256xf32>
    %c0_23 = arith.constant 0 : index
    %c0_24 = arith.constant 0 : index
    %45 = vector.load %arg7[%c0_23, %c0_24] : memref<256x16xf32, #tpu.memory_space<vmem>>, vector<256x16xf32>
    %cst_25 = arith.constant dense<0.000000e+00> : vector<2x16xf32>
    %46 = tpu.matmul %44, %45, %cst_25 {dimension_numbers = #tpu.dot_dimension_numbers<[1], [0], [0], [1], [0, 0, 1, 1], [], []>} : vector<2x256xf32>, vector<256x16xf32>, vector<2x16xf32> -> vector<2x16xf32>
    %47 = vector.extract_strided_slice %46 {offsets = [0, 0], sizes = [1, 16], strides = [1, 1]} : vector<2x16xf32> to vector<1x16xf32>
    %48 = vector.extract_strided_slice %46 {offsets = [1, 0], sizes = [1, 16], strides = [1, 1]} : vector<2x16xf32> to vector<1x16xf32>
    %49 = arith.mulf %47, %47 : vector<1x16xf32>
    %50 = arith.subf %48, %49 : vector<1x16xf32>
    %cst_26 = arith.constant 0.000000e+00 : f32
    %51 = vector.broadcast %cst_26 : f32 to vector<1x16xf32>
    %52 = arith.maximumf %50, %51 : vector<1x16xf32>
    %c0_27 = arith.constant 0 : index
    %c0_28 = arith.constant 0 : index
    %53 = vector.load %arg9[%c0_27, %c0_28] : memref<1x16xf32, #tpu.memory_space<vmem>>, vector<1x16xf32>
    %cst_29 = arith.constant 9.99999974E-6 : f32
    %54 = vector.broadcast %cst_29 : f32 to vector<1x16xf32>
    %55 = arith.addf %52, %54 : vector<1x16xf32>
    %56 = math.rsqrt %55 : vector<1x16xf32>
    %57 = arith.mulf %53, %56 : vector<1x16xf32>
    %c0_30 = arith.constant 0 : index
    %c0_31 = arith.constant 0 : index
    %58 = vector.load %arg10[%c0_30, %c0_31] : memref<1x16xf32, #tpu.memory_space<vmem>>, vector<1x16xf32>
    %59 = arith.mulf %47, %57 : vector<1x16xf32>
    %60 = arith.subf %58, %59 : vector<1x16xf32>
    %61 = tpu.concatenate %57, %60 in 0 : vector<1x16xf32>, vector<1x16xf32> -> vector<2x16xf32>
    %c0_32 = arith.constant 0 : index
    %c0_33 = arith.constant 0 : index
    %62 = vector.load %arg8[%c0_32, %c0_33] : memref<16x256xf32, #tpu.memory_space<vmem>>, vector<16x256xf32>
    %cst_34 = arith.constant dense<0.000000e+00> : vector<2x256xf32>
    %63 = tpu.matmul %61, %62, %cst_34 {dimension_numbers = #tpu.dot_dimension_numbers<[1], [0], [0], [1], [0, 0, 1, 1], [], []>} : vector<2x16xf32>, vector<16x256xf32>, vector<2x256xf32> -> vector<2x256xf32>
    %64 = vector.extract_strided_slice %63 {offsets = [0, 0], sizes = [1, 256], strides = [1, 1]} : vector<2x256xf32> to vector<1x256xf32>
    %65 = vector.broadcast %64 : vector<1x256xf32> to vector<2x256xf32>
    %66 = arith.mulf %38, %65 : vector<2x256xf32>
    %67 = vector.extract_strided_slice %63 {offsets = [1, 0], sizes = [1, 256], strides = [1, 1]} : vector<2x256xf32> to vector<1x256xf32>
    %68 = vector.broadcast %67 : vector<1x256xf32> to vector<2x256xf32>
    %69 = arith.addf %66, %68 : vector<2x256xf32>
    %cst_35 = arith.constant 0.000000e+00 : f32
    %70 = vector.broadcast %cst_35 : f32 to vector<2x256xf32>
    %71 = arith.maximumf %69, %70 : vector<2x256xf32>
    %72 = arith.truncf %71 : vector<2x256xf32> to vector<2x256xbf16>
    %c0_36 = arith.constant 0 : index
    %c0_37 = arith.constant 0 : index
    %73 = vector.load %arg11[%c0_36, %c0_37] : memref<256x128xbf16, #tpu.memory_space<vmem>>, vector<256x128xbf16>
    %cst_38 = arith.constant dense<0.000000e+00> : vector<2x128xf32>
    %74 = tpu.matmul %72, %73, %cst_38 {dimension_numbers = #tpu.dot_dimension_numbers<[1], [0], [0], [1], [0, 0, 1, 1], [], []>} : vector<2x256xbf16>, vector<256x128xbf16>, vector<2x128xf32> -> vector<2x128xf32>
    %cst_39 = arith.constant dense<0.000000e+00> : vector<128xf32>
    %75 = vector.multi_reduction <add>, %74, %cst_39 [0] : vector<2x128xf32> to vector<128xf32>
    %76 = vector.shape_cast %75 : vector<128xf32> to vector<1x128xf32>
    %77 = arith.mulf %74, %74 : vector<2x128xf32>
    %cst_40 = arith.constant dense<0.000000e+00> : vector<128xf32>
    %78 = vector.multi_reduction <add>, %77, %cst_40 [0] : vector<2x128xf32> to vector<128xf32>
    %79 = vector.shape_cast %78 : vector<128xf32> to vector<1x128xf32>
    %80 = tpu.concatenate %76, %79 in 0 : vector<1x128xf32>, vector<1x128xf32> -> vector<2x128xf32>
    %c0_41 = arith.constant 0 : index
    %c0_42 = arith.constant 0 : index
    %81 = vector.load %arg12[%c0_41, %c0_42] : memref<128x32xf32, #tpu.memory_space<vmem>>, vector<128x32xf32>
    %cst_43 = arith.constant dense<0.000000e+00> : vector<2x32xf32>
    %82 = tpu.matmul %80, %81, %cst_43 {dimension_numbers = #tpu.dot_dimension_numbers<[1], [0], [0], [1], [0, 0, 1, 1], [], []>} : vector<2x128xf32>, vector<128x32xf32>, vector<2x32xf32> -> vector<2x32xf32>
    %83 = vector.extract_strided_slice %82 {offsets = [0, 0], sizes = [1, 32], strides = [1, 1]} : vector<2x32xf32> to vector<1x32xf32>
    %84 = vector.extract_strided_slice %82 {offsets = [1, 0], sizes = [1, 32], strides = [1, 1]} : vector<2x32xf32> to vector<1x32xf32>
    %85 = arith.mulf %83, %83 : vector<1x32xf32>
    %86 = arith.subf %84, %85 : vector<1x32xf32>
    %cst_44 = arith.constant 0.000000e+00 : f32
    %87 = vector.broadcast %cst_44 : f32 to vector<1x32xf32>
    %88 = arith.maximumf %86, %87 : vector<1x32xf32>
    %c0_45 = arith.constant 0 : index
    %c0_46 = arith.constant 0 : index
    %89 = vector.load %arg14[%c0_45, %c0_46] : memref<1x32xf32, #tpu.memory_space<vmem>>, vector<1x32xf32>
    %cst_47 = arith.constant 9.99999974E-6 : f32
    %90 = vector.broadcast %cst_47 : f32 to vector<1x32xf32>
    %91 = arith.addf %88, %90 : vector<1x32xf32>
    %92 = math.rsqrt %91 : vector<1x32xf32>
    %93 = arith.mulf %89, %92 : vector<1x32xf32>
    %c0_48 = arith.constant 0 : index
    %c0_49 = arith.constant 0 : index
    %94 = vector.load %arg15[%c0_48, %c0_49] : memref<1x32xf32, #tpu.memory_space<vmem>>, vector<1x32xf32>
    %95 = arith.mulf %83, %93 : vector<1x32xf32>
    %96 = arith.subf %94, %95 : vector<1x32xf32>
    %97 = tpu.concatenate %93, %96 in 0 : vector<1x32xf32>, vector<1x32xf32> -> vector<2x32xf32>
    %c0_50 = arith.constant 0 : index
    %c0_51 = arith.constant 0 : index
    %98 = vector.load %arg13[%c0_50, %c0_51] : memref<32x128xf32, #tpu.memory_space<vmem>>, vector<32x128xf32>
    %cst_52 = arith.constant dense<0.000000e+00> : vector<2x128xf32>
    %99 = tpu.matmul %97, %98, %cst_52 {dimension_numbers = #tpu.dot_dimension_numbers<[1], [0], [0], [1], [0, 0, 1, 1], [], []>} : vector<2x32xf32>, vector<32x128xf32>, vector<2x128xf32> -> vector<2x128xf32>
    %100 = vector.extract_strided_slice %99 {offsets = [0, 0], sizes = [1, 128], strides = [1, 1]} : vector<2x128xf32> to vector<1x128xf32>
    %101 = vector.broadcast %100 : vector<1x128xf32> to vector<2x128xf32>
    %102 = arith.mulf %74, %101 : vector<2x128xf32>
    %103 = vector.extract_strided_slice %99 {offsets = [1, 0], sizes = [1, 128], strides = [1, 1]} : vector<2x128xf32> to vector<1x128xf32>
    %104 = vector.broadcast %103 : vector<1x128xf32> to vector<2x128xf32>
    %105 = arith.addf %102, %104 : vector<2x128xf32>
    %cst_53 = arith.constant 0.000000e+00 : f32
    %106 = vector.broadcast %cst_53 : f32 to vector<2x128xf32>
    %107 = arith.maximumf %105, %106 : vector<2x128xf32>
    %108 = arith.truncf %107 : vector<2x128xf32> to vector<2x128xbf16>
    %c0_54 = arith.constant 0 : index
    %c0_55 = arith.constant 0 : index
    %109 = vector.load %arg16[%c0_54, %c0_55] : memref<128x128xbf16, #tpu.memory_space<vmem>>, vector<128x128xbf16>
    %cst_56 = arith.constant dense<0.000000e+00> : vector<2x128xf32>
    %110 = tpu.matmul %108, %109, %cst_56 {dimension_numbers = #tpu.dot_dimension_numbers<[1], [0], [0], [1], [0, 0, 1, 1], [], []>} : vector<2x128xbf16>, vector<128x128xbf16>, vector<2x128xf32> -> vector<2x128xf32>
    %c0_57 = arith.constant 0 : index
    %c0_58 = arith.constant 0 : index
    %111 = vector.load %arg17[%c0_57, %c0_58] : memref<1x128xf32, #tpu.memory_space<vmem>>, vector<1x128xf32>
    %112 = vector.broadcast %111 : vector<1x128xf32> to vector<2x128xf32>
    %113 = arith.addf %110, %112 : vector<2x128xf32>
    %cst_59 = arith.constant 0.000000e+00 : f32
    %114 = vector.broadcast %cst_59 : f32 to vector<2x128xf32>
    %115 = arith.maximumf %113, %114 : vector<2x128xf32>
    %116 = arith.truncf %115 : vector<2x128xf32> to vector<2x128xbf16>
    %c0_60 = arith.constant 0 : index
    %c0_61 = arith.constant 0 : index
    %117 = vector.load %arg18[%c0_60, %c0_61] : memref<128x128xbf16, #tpu.memory_space<vmem>>, vector<128x128xbf16>
    %cst_62 = arith.constant dense<0.000000e+00> : vector<2x128xf32>
    %118 = tpu.matmul %116, %117, %cst_62 {dimension_numbers = #tpu.dot_dimension_numbers<[1], [0], [0], [1], [0, 0, 1, 1], [], []>} : vector<2x128xbf16>, vector<128x128xbf16>, vector<2x128xf32> -> vector<2x128xf32>
    %c0_63 = arith.constant 0 : index
    %c0_64 = arith.constant 0 : index
    %119 = vector.load %arg19[%c0_63, %c0_64] : memref<1x128xf32, #tpu.memory_space<vmem>>, vector<1x128xf32>
    %120 = vector.broadcast %119 : vector<1x128xf32> to vector<2x128xf32>
    %121 = arith.addf %118, %120 : vector<2x128xf32>
    %cst_65 = arith.constant 0.000000e+00 : f32
    %122 = vector.broadcast %cst_65 : f32 to vector<2x128xf32>
    %123 = arith.maximumf %121, %122 : vector<2x128xf32>
    %124 = arith.truncf %123 : vector<2x128xf32> to vector<2x128xbf16>
    %c0_66 = arith.constant 0 : index
    %c0_67 = arith.constant 0 : index
    %125 = vector.load %arg20[%c0_66, %c0_67] : memref<128x128xbf16, #tpu.memory_space<vmem>>, vector<128x128xbf16>
    %cst_68 = arith.constant dense<0.000000e+00> : vector<2x128xf32>
    %126 = tpu.matmul %124, %125, %cst_68 {dimension_numbers = #tpu.dot_dimension_numbers<[1], [0], [0], [1], [0, 0, 1, 1], [], []>} : vector<2x128xbf16>, vector<128x128xbf16>, vector<2x128xf32> -> vector<2x128xf32>
    %c0_69 = arith.constant 0 : index
    %c0_70 = arith.constant 0 : index
    %127 = vector.load %arg21[%c0_69, %c0_70] : memref<1x128xf32, #tpu.memory_space<vmem>>, vector<1x128xf32>
    %128 = vector.broadcast %127 : vector<1x128xf32> to vector<2x128xf32>
    %129 = arith.addf %126, %128 : vector<2x128xf32>
    %cst_71 = arith.constant 0.000000e+00 : f32
    %130 = vector.broadcast %cst_71 : f32 to vector<2x128xf32>
    %131 = arith.maximumf %129, %130 : vector<2x128xf32>
    %132 = vector.extract_strided_slice %131 {offsets = [0, 0], sizes = [2, 16], strides = [1, 1]} : vector<2x128xf32> to vector<2x16xf32>
    %c0_72 = arith.constant 0 : index
    %c0_73 = arith.constant 0 : index
    %133 = vector.load %arg22[%c0_72, %c0_73] : memref<2x16xf32, #tpu.memory_space<vmem>>, vector<2x16xf32>
    tpu.vector_store %arg22[%c0_72, %c0_73], %132 {strides = array<i32>} : memref<2x16xf32, #tpu.memory_space<vmem>>, vector<2x16xf32>,
    return
  }
}

</mosaic_0001>

<llo_original>
// kernel: _lambda_.1
$region0: #{_lambda_.1}
  #allocation0 [shape = 'u32[]', space=smem, size = 0x4, offset = 0x4, fixed_abs, tag = 'smem constant byte address 0x4 - core index']
  #allocation1 [shape = 'u32[144,128]{1,0:T(1,128)}', space=vmem, size = 0x12000, scoped, tag = 'internal scratch']
  %s0 = inlined_call_operand.vmem [shape: bf16[2,1024], index: 0, kind: input, shape index: {}]
  %s1 = inlined_call_operand.hbm [shape: bf16[1024,512], index: 1, kind: input, shape index: {}]
  %s2 = inlined_call_operand.vmem [shape: f32[512,8], index: 2, kind: input, shape index: {}]
  %s3 = inlined_call_operand.vmem [shape: f32[8,512], index: 3, kind: input, shape index: {}]
  %s4 = inlined_call_operand.vmem [shape: f32[1,8], index: 4, kind: input, shape index: {}]
  %s5 = inlined_call_operand.vmem [shape: f32[1,8], index: 5, kind: input, shape index: {}]
  %s6 = inlined_call_operand.hbm [shape: bf16[512,256], index: 6, kind: input, shape index: {}]
  %s7 = inlined_call_operand.vmem [shape: f32[256,16], index: 7, kind: input, shape index: {}]
  %s8 = inlined_call_operand.hbm [shape: f32[16,256], index: 8, kind: input, shape index: {}]
  %s9 = inlined_call_operand.vmem [shape: f32[1,16], index: 9, kind: input, shape index: {}]
  %s10 = inlined_call_operand.vmem [shape: f32[1,16], index: 10, kind: input, shape index: {}]
  %s11 = inlined_call_operand.hbm [shape: bf16[256,128], index: 11, kind: input, shape index: {}]
  %s12 = inlined_call_operand.hbm [shape: f32[128,32], index: 12, kind: input, shape index: {}]
  %s13 = inlined_call_operand.hbm [shape: f32[32,128], index: 13, kind: input, shape index: {}]
  %s14 = inlined_call_operand.vmem [shape: f32[1,32], index: 14, kind: input, shape index: {}]
  %s15 = inlined_call_operand.vmem [shape: f32[1,32], index: 15, kind: input, shape index: {}]
  %s16 = inlined_call_operand.hbm [shape: bf16[128,128], index: 16, kind: input, shape index: {}]
  %s17 = inlined_call_operand.vmem [shape: f32[1,128], index: 17, kind: input, shape index: {}]
  %s18 = inlined_call_operand.hbm [shape: bf16[128,128], index: 18, kind: input, shape index: {}]
  %s19 = inlined_call_operand.vmem [shape: f32[1,128], index: 19, kind: input, shape index: {}]
  %s20 = inlined_call_operand.hbm [shape: bf16[128,128], index: 20, kind: input, shape index: {}]
  %s21 = inlined_call_operand.vmem [shape: f32[1,128], index: 21, kind: input, shape index: {}]
  %s22 = inlined_call_operand.hbm [shape: f32[2,16], index: 22, kind: output, shape index: {}]
  %s23 = sld [smem:[#allocation0]]
  $region134: #{_lambda_.1} parent=0
    _
  %s25 = ssub.s32 1, %s23
  %s26 = scalar_select 0, %s25, %s23
  $region1: #{_lambda_.1} parent=0
    #allocation2 [shape = 'u8[1048576]{0}', space=vmem, size = 0x100000, scoped, tag = 'input window, operand 1, single buffered']
    #allocation3 [shape = 's32[1]{0}', space=sflag, size = 0x4, scoped, tag = 'scoped memory for _lambda_.1']
    #allocation4 [shape = 's32[1]{0}', space=sflag, size = 0x4, scoped, tag = 'scoped memory for _lambda_.1']
    #allocation5 [shape = 'u8[262144]{0}', space=vmem, size = 0x40000, scoped, tag = 'input window, operand 6, single buffered']
    #allocation6 [shape = 's32[1]{0}', space=sflag, size = 0x4, scoped, tag = 'scoped memory for _lambda_.1']
    #allocation7 [shape = 'u8[16384]{0}', space=vmem, size = 0x4000, scoped, tag = 'input window, operand 8, single buffered']
    #allocation8 [shape = 'u8[65536]{0}', space=vmem, size = 0x10000, scoped, tag = 'input window, operand 11, single buffered']
    #allocation9 [shape = 's32[1]{0}', space=sflag, size = 0x4, scoped, tag = 'scoped memory for _lambda_.1']
    #allocation10 [shape = 'u8[65536]{0}', space=vmem, size = 0x10000, scoped, tag = 'input window, operand 12, single buffered']
    #allocation11 [shape = 'u8[16384]{0}', space=vmem, size = 0x4000, scoped, tag = 'input window, operand 13, single buffered']
    #allocation12 [shape = 's32[1]{0}', space=sflag, size = 0x4, scoped, tag = 'scoped memory for _lambda_.1']
    #allocation13 [shape = 'u8[32768]{0}', space=vmem, size = 0x8000, scoped, tag = 'input window, operand 16, single buffered']
    #allocation14 [shape = 'u8[32768]{0}', space=vmem, size = 0x8000, scoped, tag = 'input window, operand 18, single buffered']
    #allocation15 [shape = 's32[1]{0}', space=sflag, size = 0x4, scoped, tag = 'scoped memory for _lambda_.1']
    #allocation16 [shape = 'u8[32768]{0}', space=vmem, size = 0x8000, scoped, tag = 'input window, operand 20, single buffered']
    #allocation17 [shape = 'u8[1024]{0}', space=vmem, size = 0x400, scoped, tag = 'output window, operand 0, single buffered']
    %27 = vsyncpa [#allocation3], 0
    %28 = vsyncpa [#allocation6], 0
    %29 = vsyncpa [#allocation9], 0
    %30 = vsyncpa [#allocation12], 0
    %31 = vsyncpa [#allocation15], 0
    %32 = vsyncpa [#allocation4], 0
    // Predicated region
    $region2: #{_lambda_.1} parent=1 // pred_check
      _
    $region3: #{_lambda_.1} parent=1 // pred_check_branch
      %34 = sbr.rel (0) target = $region5
    $region4: #{_lambda_.1} parent=1 // pred_region
      _
    $region5: #{_lambda_.1} parent=1 // pred_fallthru
      _
    // Predicated region
    $region6: #{_lambda_.1} parent=1 // pred_check
      _
    $region7: #{_lambda_.1} parent=1 // pred_check_branch
      %36 = sbr.rel (0) target = $region9
    $region8: #{_lambda_.1} parent=1 // pred_region
      %s38 = ssub.s32 32768, 32768
      %39 = vsyncadd [#allocation3], %s38
      %s40 = sshll.u32 [#allocation2], 4
      %s41 = int_to_ptr.vmem [resolvable:$true] %s40
      %46 = dma.hbm_to_vmem [thread:$0]  %s1, 32768, %s41, [#allocation3], 256, 256, 16
    $region9: #{_lambda_.1} parent=1 // pred_fallthru
      _
    // Predicated region
    $region10: #{_lambda_.1} parent=1 // pred_check
      _
    $region11: #{_lambda_.1} parent=1 // pred_check_branch
      %48 = sbr.rel (0) target = $region13
    $region12: #{_lambda_.1} parent=1 // pred_region
      _
    $region13: #{_lambda_.1} parent=1 // pred_fallthru
      _
    // Predicated region
    $region14: #{_lambda_.1} parent=1 // pred_check
      _
    $region15: #{_lambda_.1} parent=1 // pred_check_branch
      %50 = sbr.rel (0) target = $region17
    $region16: #{_lambda_.1} parent=1 // pred_region
      _
    $region17: #{_lambda_.1} parent=1 // pred_fallthru
      _
    // Predicated region
    $region18: #{_lambda_.1} parent=1 // pred_check
      _
    $region19: #{_lambda_.1} parent=1 // pred_check_branch
      %52 = sbr.rel (0) target = $region21
    $region20: #{_lambda_.1} parent=1 // pred_region
      _
    $region21: #{_lambda_.1} parent=1 // pred_fallthru
      _
    // Predicated region
    $region22: #{_lambda_.1} parent=1 // pred_check
      _
    $region23: #{_lambda_.1} parent=1 // pred_check_branch
      %54 = sbr.rel (0) target = $region25
    $region24: #{_lambda_.1} parent=1 // pred_region
      _
    $region25: #{_lambda_.1} parent=1 // pred_fallthru
      _
    // Predicated region
    $region26: #{_lambda_.1} parent=1 // pred_check
      _
    $region27: #{_lambda_.1} parent=1 // pred_check_branch
      %56 = sbr.rel (0) target = $region29
    $region28: #{_lambda_.1} parent=1 // pred_region
      %s58 = ssub.s32 8192, 8192
      %59 = vsyncadd [#allocation6], %s58
      %s60 = sshll.u32 [#allocation5], 4
      %s61 = int_to_ptr.vmem [resolvable:$true] %s60
      %66 = dma.hbm_to_vmem [thread:$0]  %s6, 8192, %s61, [#allocation6], 128, 128, 8
    $region29: #{_lambda_.1} parent=1 // pred_fallthru
      _
    // Predicated region
    $region30: #{_lambda_.1} parent=1 // pred_check
      _
    $region31: #{_lambda_.1} parent=1 // pred_check_branch
      %68 = sbr.rel (0) target = $region33
    $region32: #{_lambda_.1} parent=1 // pred_region
      _
    $region33: #{_lambda_.1} parent=1 // pred_fallthru
      _
    // Predicated region
    $region34: #{_lambda_.1} parent=1 // pred_check
      _
    $region35: #{_lambda_.1} parent=1 // pred_check_branch
      %70 = sbr.rel (0) target = $region37
    $region36: #{_lambda_.1} parent=1 // pred_region
      %s72 = ssub.s32 512, 512
      %73 = vsyncadd [#allocation6], %s72
      %s74 = sshll.u32 [#allocation7], 4
      %s75 = int_to_ptr.vmem [resolvable:$true] %s74
      %80 = dma.hbm_to_vmem [thread:$0]  %s8, 512, %s75, [#allocation6], 256, 256, 16
    $region37: #{_lambda_.1} parent=1 // pred_fallthru
      _
    // Predicated region
    $region38: #{_lambda_.1} parent=1 // pred_check
      _
    $region39: #{_lambda_.1} parent=1 // pred_check_branch
      %82 = sbr.rel (0) target = $region41
    $region40: #{_lambda_.1} parent=1 // pred_region
      _
    $region41: #{_lambda_.1} parent=1 // pred_fallthru
      _
    // Predicated region
    $region42: #{_lambda_.1} parent=1 // pred_check
      _
    $region43: #{_lambda_.1} parent=1 // pred_check_branch
      %84 = sbr.rel (0) target = $region45
    $region44: #{_lambda_.1} parent=1 // pred_region
      _
    $region45: #{_lambda_.1} parent=1 // pred_fallthru
      _
    // Predicated region
    $region46: #{_lambda_.1} parent=1 // pred_check
      _
    $region47: #{_lambda_.1} parent=1 // pred_check_branch
      %86 = sbr.rel (0) target = $region49
    $region48: #{_lambda_.1} parent=1 // pred_region
      %s88 = ssub.s32 2048, 2048
      %89 = vsyncadd [#allocation9], %s88
      %s90 = sshll.u32 [#allocation8], 4
      %s91 = int_to_ptr.vmem [resolvable:$true] %s90
      %96 = dma.hbm_to_vmem [thread:$0]  %s11, 2048, %s91, [#allocation9], 64, 64, 4
    $region49: #{_lambda_.1} parent=1 // pred_fallthru
      _
    // Predicated region
    $region50: #{_lambda_.1} parent=1 // pred_check
      _
    $region51: #{_lambda_.1} parent=1 // pred_check_branch
      %98 = sbr.rel (0) target = $region53
    $region52: #{_lambda_.1} parent=1 // pred_region
      %s100 = ssub.s32 2048, 2048
      %101 = vsyncadd [#allocation9], %s100
      %s102 = sshll.u32 [#allocation10], 4
      %s103 = int_to_ptr.vmem [resolvable:$true] %s102
      %108 = dma.hbm_to_vmem [thread:$0]  %s12, 2048, %s103, [#allocation9], 128, 128, 8
    $region53: #{_lambda_.1} parent=1 // pred_fallthru
      _
    // Predicated region
    $region54: #{_lambda_.1} parent=1 // pred_check
      _
    $region55: #{_lambda_.1} parent=1 // pred_check_branch
      %110 = sbr.rel (0) target = $region57
    $region56: #{_lambda_.1} parent=1 // pred_region
      %s112 = ssub.s32 512, 512
      %113 = vsyncadd [#allocation12], %s112
      %s114 = sshll.u32 [#allocation11], 4
      %s115 = int_to_ptr.vmem [resolvable:$true] %s114
      %120 = dma.hbm_to_vmem [thread:$0]  %s13, 512, %s115, [#allocation12], 128, 128, 8
    $region57: #{_lambda_.1} parent=1 // pred_fallthru
      _
    // Predicated region
    $region58: #{_lambda_.1} parent=1 // pred_check
      _
    $region59: #{_lambda_.1} parent=1 // pred_check_branch
      %122 = sbr.rel (0) target = $region61
    $region60: #{_lambda_.1} parent=1 // pred_region
      _
    $region61: #{_lambda_.1} parent=1 // pred_fallthru
      _
    // Predicated region
    $region62: #{_lambda_.1} parent=1 // pred_check
      _
    $region63: #{_lambda_.1} parent=1 // pred_check_branch
      %124 = sbr.rel (0) target = $region65
    $region64: #{_lambda_.1} parent=1 // pred_region
      _
    $region65: #{_lambda_.1} parent=1 // pred_fallthru
      _
    // Predicated region
    $region66: #{_lambda_.1} parent=1 // pred_check
      _
    $region67: #{_lambda_.1} parent=1 // pred_check_branch
      %126 = sbr.rel (0) target = $region69
    $region68: #{_lambda_.1} parent=1 // pred_region
      %s128 = ssub.s32 1024, 1024
      %129 = vsyncadd [#allocation12], %s128
      %s130 = sshll.u32 [#allocation13], 4
      %s131 = int_to_ptr.vmem [resolvable:$true] %s130
      %136 = dma.hbm_to_vmem [thread:$0]  %s16, 1024, %s131, [#allocation12], 64, 64, 4
    $region69: #{_lambda_.1} parent=1 // pred_fallthru
      _
    // Predicated region
    $region70: #{_lambda_.1} parent=1 // pred_check
      _
    $region71: #{_lambda_.1} parent=1 // pred_check_branch
      %138 = sbr.rel (0) target = $region73
    $region72: #{_lambda_.1} parent=1 // pred_region
      _
    $region73: #{_lambda_.1} parent=1 // pred_fallthru
      _
    // Predicated region
    $region74: #{_lambda_.1} parent=1 // pred_check
      _
    $region75: #{_lambda_.1} parent=1 // pred_check_branch
      %140 = sbr.rel (0) target = $region77
    $region76: #{_lambda_.1} parent=1 // pred_region
      %s142 = ssub.s32 1024, 1024
      %143 = vsyncadd [#allocation15], %s142
      %s144 = sshll.u32 [#allocation14], 4
      %s145 = int_to_ptr.vmem [resolvable:$true] %s144
      %150 = dma.hbm_to_vmem [thread:$0]  %s18, 1024, %s145, [#allocation15], 64, 64, 4
    $region77: #{_lambda_.1} parent=1 // pred_fallthru
      _
    // Predicated region
    $region78: #{_lambda_.1} parent=1 // pred_check
      _
    $region79: #{_lambda_.1} parent=1 // pred_check_branch
      %152 = sbr.rel (0) target = $region81
    $region80: #{_lambda_.1} parent=1 // pred_region
      _
    $region81: #{_lambda_.1} parent=1 // pred_fallthru
      _
    // Predicated region
    $region82: #{_lambda_.1} parent=1 // pred_check
      _
    $region83: #{_lambda_.1} parent=1 // pred_check_branch
      %154 = sbr.rel (0) target = $region85
    $region84: #{_lambda_.1} parent=1 // pred_region
      %s156 = ssub.s32 1024, 1024
      %157 = vsyncadd [#allocation15], %s156
      %s158 = sshll.u32 [#allocation16], 4
      %s159 = int_to_ptr.vmem [resolvable:$true] %s158
      %164 = dma.hbm_to_vmem [thread:$0]  %s20, 1024, %s159, [#allocation15], 64, 64, 4
    $region85: #{_lambda_.1} parent=1 // pred_fallthru
      _
    // Predicated region
    $region86: #{_lambda_.1} parent=1 // pred_check
      _
    $region87: #{_lambda_.1} parent=1 // pred_check_branch
      %166 = sbr.rel (0) target = $region89
    $region88: #{_lambda_.1} parent=1 // pred_region
      _
    $region89: #{_lambda_.1} parent=1 // pred_fallthru
      _
    // Predicated region
    $region90: #{_lambda_.1} parent=1 // pred_check
      _
    $region91: #{_lambda_.1} parent=1 // pred_check_branch
      %168 = sbr.rel (0) target = $region93
    $region92: #{_lambda_.1} parent=1 // pred_region
      %169 = dma.done [#allocation3], 32768
    $region93: #{_lambda_.1} parent=1 // pred_fallthru
      _
    // Predicated region
    $region94: #{_lambda_.1} parent=1 // pred_check
      _
    $region95: #{_lambda_.1} parent=1 // pred_check_branch
      %171 = sbr.rel (0) target = $region97
    $region96: #{_lambda_.1} parent=1 // pred_region
      %172 = dma.done [#allocation6], 8192
    $region97: #{_lambda_.1} parent=1 // pred_fallthru
      _
    // Predicated region
    $region98: #{_lambda_.1} parent=1 // pred_check
      _
    $region99: #{_lambda_.1} parent=1 // pred_check_branch
      %174 = sbr.rel (0) target = $region101
    $region100: #{_lambda_.1} parent=1 // pred_region
      %175 = dma.done [#allocation6], 512
    $region101: #{_lambda_.1} parent=1 // pred_fallthru
      _
    // Predicated region
    $region102: #{_lambda_.1} parent=1 // pred_check
      _
    $region103: #{_lambda_.1} parent=1 // pred_check_branch
      %177 = sbr.rel (0) target = $region105
    $region104: #{_lambda_.1} parent=1 // pred_region
      %178 = dma.done [#allocation9], 2048
    $region105: #{_lambda_.1} parent=1 // pred_fallthru
      _
    // Predicated region
    $region106: #{_lambda_.1} parent=1 // pred_check
      _
    $region107: #{_lambda_.1} parent=1 // pred_check_branch
      %180 = sbr.rel (0) target = $region109
    $region108: #{_lambda_.1} parent=1 // pred_region
      %181 = dma.done [#allocation9], 2048
    $region109: #{_lambda_.1} parent=1 // pred_fallthru
      _
    // Predicated region
    $region110: #{_lambda_.1} parent=1 // pred_check
      _
    $region111: #{_lambda_.1} parent=1 // pred_check_branch
      %183 = sbr.rel (0) target = $region113
    $region112: #{_lambda_.1} parent=1 // pred_region
      %184 = dma.done [#allocation12], 512
    $region113: #{_lambda_.1} parent=1 // pred_fallthru
      _
    // Predicated region
    $region114: #{_lambda_.1} parent=1 // pred_check
      _
    $region115: #{_lambda_.1} parent=1 // pred_check_branch
      %186 = sbr.rel (0) target = $region117
    $region116: #{_lambda_.1} parent=1 // pred_region
      %187 = dma.done [#allocation12], 1024
    $region117: #{_lambda_.1} parent=1 // pred_fallthru
      _
    // Predicated region
    $region118: #{_lambda_.1} parent=1 // pred_check
      _
    $region119: #{_lambda_.1} parent=1 // pred_check_branch
      %189 = sbr.rel (0) target = $region121
    $region120: #{_lambda_.1} parent=1 // pred_region
      %190 = dma.done [#allocation15], 1024
    $region121: #{_lambda_.1} parent=1 // pred_fallthru
      _
    // Predicated region
    $region122: #{_lambda_.1} parent=1 // pred_check
      _
    $region123: #{_lambda_.1} parent=1 // pred_check_branch
      %192 = sbr.rel (0) target = $region125
    $region124: #{_lambda_.1} parent=1 // pred_region
      %193 = dma.done [#allocation15], 1024
    $region125: #{_lambda_.1} parent=1 // pred_fallthru
      _
    %v195 = vld [vmem:[%s0] sm:$0xff]
    %v196 = vld [vmem:[#allocation2] sm:$0xff]
    %v197 = vld [vmem:[#allocation2 + $0x8] sm:$0xff]
    %v198 = vld [vmem:[#allocation2 + $0x10] sm:$0xff]
    %v199 = vld [vmem:[#allocation2 + $0x18] sm:$0xff]
    %v200 = vld [vmem:[#allocation2 + $0x20] sm:$0xff]
    %v201 = vld [vmem:[#allocation2 + $0x28] sm:$0xff]
    %v202 = vld [vmem:[#allocation2 + $0x30] sm:$0xff]
    %v203 = vld [vmem:[#allocation2 + $0x38] sm:$0xff]
    %v204 = vld [vmem:[#allocation2 + $0x40] sm:$0xff]
    %v205 = vld [vmem:[#allocation2 + $0x48] sm:$0xff]
    %v206 = vld [vmem:[#allocation2 + $0x50] sm:$0xff]
    %v207 = vld [vmem:[#allocation2 + $0x58] sm:$0xff]
    %v208 = vld [vmem:[#allocation2 + $0x60] sm:$0xff]
    %v209 = vld [vmem:[#allocation2 + $0x68] sm:$0xff]
    %v210 = vld [vmem:[#allocation2 + $0x70] sm:$0xff]
    %v211 = vld [vmem:[#allocation2 + $0x78] sm:$0xff]
    %v212 = vld [vmem:[#allocation2 + $0x80] sm:$0xff]
    %v213 = vld [vmem:[#allocation2 + $0x88] sm:$0xff]
    %v214 = vld [vmem:[#allocation2 + $0x90] sm:$0xff]
    %v215 = vld [vmem:[#allocation2 + $0x98] sm:$0xff]
    %v216 = vld [vmem:[#allocation2 + $0xa0] sm:$0xff]
    %v217 = vld [vmem:[#allocation2 + $0xa8] sm:$0xff]
    %v218 = vld [vmem:[#allocation2 + $0xb0] sm:$0xff]
    %v219 = vld [vmem:[#allocation2 + $0xb8] sm:$0xff]
    %v220 = vld [vmem:[#allocation2 + $0xc0] sm:$0xff]
    %v221 = vld [vmem:[#allocation2 + $0xc8] sm:$0xff]
    %v222 = vld [vmem:[#allocation2 + $0xd0] sm:$0xff]
    %v223 = vld [vmem:[#allocation2 + $0xd8] sm:$0xff]
    %v224 = vld [vmem:[#allocation2 + $0xe0] sm:$0xff]
    %v225 = vld [vmem:[#allocation2 + $0xe8] sm:$0xff]
    %v226 = vld [vmem:[#allocation2 + $0xf0] sm:$0xff]
    %v227 = vld [vmem:[#allocation2 + $0xf8] sm:$0xff]
    %v228 = vld [vmem:[#allocation2 + $0x100] sm:$0xff]
    %v229 = vld [vmem:[#allocation2 + $0x108] sm:$0xff]
    %v230 = vld [vmem:[#allocation2 + $0x110] sm:$0xff]
    %v231 = vld [vmem:[#allocation2 + $0x118] sm:$0xff]
    %v232 = vld [vmem:[#allocation2 + $0x120] sm:$0xff]
    %v233 = vld [vmem:[#allocation2 + $0x128] sm:$0xff]
    %v234 = vld [vmem:[#allocation2 + $0x130] sm:$0xff]
    %v235 = vld [vmem:[#allocation2 + $0x138] sm:$0xff]
    %v236 = vld [vmem:[#allocation2 + $0x140] sm:$0xff]
    %v237 = vld [vmem:[#allocation2 + $0x148] sm:$0xff]
    %v238 = vld [vmem:[#allocation2 + $0x150] sm:$0xff]
    %v239 = vld [vmem:[#allocation2 + $0x158] sm:$0xff]
    %v240 = vld [vmem:[#allocation2 + $0x160] sm:$0xff]
    %v241 = vld [vmem:[#allocation2 + $0x168] sm:$0xff]
    %v242 = vld [vmem:[#allocation2 + $0x170] sm:$0xff]
    %v243 = vld [vmem:[#allocation2 + $0x178] sm:$0xff]
    %v244 = vld [vmem:[#allocation2 + $0x180] sm:$0xff]
    %v245 = vld [vmem:[#allocation2 + $0x188] sm:$0xff]
    %v246 = vld [vmem:[#allocation2 + $0x190] sm:$0xff]
    %v247 = vld [vmem:[#allocation2 + $0x198] sm:$0xff]
    %v248 = vld [vmem:[#allocation2 + $0x1a0] sm:$0xff]
    %v249 = vld [vmem:[#allocation2 + $0x1a8] sm:$0xff]
    %v250 = vld [vmem:[#allocation2 + $0x1b0] sm:$0xff]
    %v251 = vld [vmem:[#allocation2 + $0x1b8] sm:$0xff]
    %v252 = vld [vmem:[#allocation2 + $0x1c0] sm:$0xff]
    %v253 = vld [vmem:[#allocation2 + $0x1c8] sm:$0xff]
    %v254 = vld [vmem:[#allocation2 + $0x1d0] sm:$0xff]
    %v255 = vld [vmem:[#allocation2 + $0x1d8] sm:$0xff]
    %v256 = vld [vmem:[#allocation2 + $0x1e0] sm:$0xff]
    %v257 = vld [vmem:[#allocation2 + $0x1e8] sm:$0xff]
    %v258 = vld [vmem:[#allocation2 + $0x1f0] sm:$0xff]
    %v259 = vld [vmem:[#allocation2 + $0x1f8] sm:$0xff]
    %v260 = vld [vmem:[#allocation2 + $0x200] sm:$0xff]
    %v261 = vld [vmem:[#allocation2 + $0x208] sm:$0xff]
    %v262 = vld [vmem:[#allocation2 + $0x210] sm:$0xff]
    %v263 = vld [vmem:[#allocation2 + $0x218] sm:$0xff]
    %v264 = vld [vmem:[#allocation2 + $0x220] sm:$0xff]
    %v265 = vld [vmem:[#allocation2 + $0x228] sm:$0xff]
    %v266 = vld [vmem:[#allocation2 + $0x230] sm:$0xff]
    %v267 = vld [vmem:[#allocation2 + $0x238] sm:$0xff]
    %v268 = vld [vmem:[#allocation2 + $0x240] sm:$0xff]
    %v269 = vld [vmem:[#allocation2 + $0x248] sm:$0xff]
    %v270 = vld [vmem:[#allocation2 + $0x250] sm:$0xff]
    %v271 = vld [vmem:[#allocation2 + $0x258] sm:$0xff]
    %v272 = vld [vmem:[#allocation2 + $0x260] sm:$0xff]
    %v273 = vld [vmem:[#allocation2 + $0x268] sm:$0xff]
    %v274 = vld [vmem:[#allocation2 + $0x270] sm:$0xff]
    %v275 = vld [vmem:[#allocation2 + $0x278] sm:$0xff]
    %v276 = vld [vmem:[#allocation2 + $0x280] sm:$0xff]
    %v277 = vld [vmem:[#allocation2 + $0x288] sm:$0xff]
    %v278 = vld [vmem:[#allocation2 + $0x290] sm:$0xff]
    %v279 = vld [vmem:[#allocation2 + $0x298] sm:$0xff]
    %v280 = vld [vmem:[#allocation2 + $0x2a0] sm:$0xff]
    %v281 = vld [vmem:[#allocation2 + $0x2a8] sm:$0xff]
    %v282 = vld [vmem:[#allocation2 + $0x2b0] sm:$0xff]
    %v283 = vld [vmem:[#allocation2 + $0x2b8] sm:$0xff]
    %v284 = vld [vmem:[#allocation2 + $0x2c0] sm:$0xff]
    %v285 = vld [vmem:[#allocation2 + $0x2c8] sm:$0xff]
    %v286 = vld [vmem:[#allocation2 + $0x2d0] sm:$0xff]
    %v287 = vld [vmem:[#allocation2 + $0x2d8] sm:$0xff]
    %v288 = vld [vmem:[#allocation2 + $0x2e0] sm:$0xff]
    %v289 = vld [vmem:[#allocation2 + $0x2e8] sm:$0xff]
    %v290 = vld [vmem:[#allocation2 + $0x2f0] sm:$0xff]
    %v291 = vld [vmem:[#allocation2 + $0x2f8] sm:$0xff]
    %v292 = vld [vmem:[#allocation2 + $0x300] sm:$0xff]
    %v293 = vld [vmem:[#allocation2 + $0x308] sm:$0xff]
    %v294 = vld [vmem:[#allocation2 + $0x310] sm:$0xff]
    %v295 = vld [vmem:[#allocation2 + $0x318] sm:$0xff]
    %v296 = vld [vmem:[#allocation2 + $0x320] sm:$0xff]
    %v297 = vld [vmem:[#allocation2 + $0x328] sm:$0xff]
    %v298 = vld [vmem:[#allocation2 + $0x330] sm:$0xff]
    %v299 = vld [vmem:[#allocation2 + $0x338] sm:$0xff]
    %v300 = vld [vmem:[#allocation2 + $0x340] sm:$0xff]
    %v301 = vld [vmem:[#allocation2 + $0x348] sm:$0xff]
    %v302 = vld [vmem:[#allocation2 + $0x350] sm:$0xff]
    %v303 = vld [vmem:[#allocation2 + $0x358] sm:$0xff]
    %v304 = vld [vmem:[#allocation2 + $0x360] sm:$0xff]
    %v305 = vld [vmem:[#allocation2 + $0x368] sm:$0xff]
    %v306 = vld [vmem:[#allocation2 + $0x370] sm:$0xff]
    %v307 = vld [vmem:[#allocation2 + $0x378] sm:$0xff]
    %v308 = vld [vmem:[#allocation2 + $0x380] sm:$0xff]
    %v309 = vld [vmem:[#allocation2 + $0x388] sm:$0xff]
    %v310 = vld [vmem:[#allocation2 + $0x390] sm:$0xff]
    %v311 = vld [vmem:[#allocation2 + $0x398] sm:$0xff]
    %v312 = vld [vmem:[#allocation2 + $0x3a0] sm:$0xff]
    %v313 = vld [vmem:[#allocation2 + $0x3a8] sm:$0xff]
    %v314 = vld [vmem:[#allocation2 + $0x3b0] sm:$0xff]
    %v315 = vld [vmem:[#allocation2 + $0x3b8] sm:$0xff]
    %v316 = vld [vmem:[#allocation2 + $0x3c0] sm:$0xff]
    %v317 = vld [vmem:[#allocation2 + $0x3c8] sm:$0xff]
    %v318 = vld [vmem:[#allocation2 + $0x3d0] sm:$0xff]
    %v319 = vld [vmem:[#allocation2 + $0x3d8] sm:$0xff]
    %v320 = vld [vmem:[#allocation2 + $0x3e0] sm:$0xff]
    %v321 = vld [vmem:[#allocation2 + $0x3e8] sm:$0xff]
    %v322 = vld [vmem:[#allocation2 + $0x3f0] sm:$0xff]
    %v323 = vld [vmem:[#allocation2 + $0x3f8] sm:$0xff]
    %v324 = vld [vmem:[#allocation2 + $0x400] sm:$0xff]
    %v325 = vld [vmem:[#allocation2 + $0x408] sm:$0xff]
    %v326 = vld [vmem:[#allocation2 + $0x410] sm:$0xff]
    %v327 = vld [vmem:[#allocation2 + $0x418] sm:$0xff]
    %v328 = vld [vmem:[#allocation2 + $0x420] sm:$0xff]
    %v329 = vld [vmem:[#allocation2 + $0x428] sm:$0xff]
    %v330 = vld [vmem:[#allocation2 + $0x430] sm:$0xff]
    %v331 = vld [vmem:[#allocation2 + $0x438] sm:$0xff]
    %v332 = vld [vmem:[#allocation2 + $0x440] sm:$0xff]
    %v333 = vld [vmem:[#allocation2 + $0x448] sm:$0xff]
    %v334 = vld [vmem:[#allocation2 + $0x450] sm:$0xff]
    %v335 = vld [vmem:[#allocation2 + $0x458] sm:$0xff]
    %v336 = vld [vmem:[#allocation2 + $0x460] sm:$0xff]
    %v337 = vld [vmem:[#allocation2 + $0x468] sm:$0xff]
    %v338 = vld [vmem:[#allocation2 + $0x470] sm:$0xff]
    %v339 = vld [vmem:[#allocation2 + $0x478] sm:$0xff]
    %v340 = vld [vmem:[#allocation2 + $0x480] sm:$0xff]
    %v341 = vld [vmem:[#allocation2 + $0x488] sm:$0xff]
    %v342 = vld [vmem:[#allocation2 + $0x490] sm:$0xff]
    %v343 = vld [vmem:[#allocation2 + $0x498] sm:$0xff]
    %v344 = vld [vmem:[#allocation2 + $0x4a0] sm:$0xff]
    %v345 = vld [vmem:[#allocation2 + $0x4a8] sm:$0xff]
    %v346 = vld [vmem:[#allocation2 + $0x4b0] sm:$0xff]
    %v347 = vld [vmem:[#allocation2 + $0x4b8] sm:$0xff]
    %v348 = vld [vmem:[#allocation2 + $0x4c0] sm:$0xff]
    %v349 = vld [vmem:[#allocation2 + $0x4c8] sm:$0xff]
    %v350 = vld [vmem:[#allocation2 + $0x4d0] sm:$0xff]
    %v351 = vld [vmem:[#allocation2 + $0x4d8] sm:$0xff]
    %v352 = vld [vmem:[#allocation2 + $0x4e0] sm:$0xff]
    %v353 = vld [vmem:[#allocation2 + $0x4e8] sm:$0xff]
    %v354 = vld [vmem:[#allocation2 + $0x4f0] sm:$0xff]
    %v355 = vld [vmem:[#allocation2 + $0x4f8] sm:$0xff]
    %v356 = vld [vmem:[#allocation2 + $0x500] sm:$0xff]
    %v357 = vld [vmem:[#allocation2 + $0x508] sm:$0xff]
    %v358 = vld [vmem:[#allocation2 + $0x510] sm:$0xff]
    %v359 = vld [vmem:[#allocation2 + $0x518] sm:$0xff]
    %v360 = vld [vmem:[#allocation2 + $0x520] sm:$0xff]
    %v361 = vld [vmem:[#allocation2 + $0x528] sm:$0xff]
    %v362 = vld [vmem:[#allocation2 + $0x530] sm:$0xff]
    %v363 = vld [vmem:[#allocation2 + $0x538] sm:$0xff]
    %v364 = vld [vmem:[#allocation2 + $0x540] sm:$0xff]
    %v365 = vld [vmem:[#allocation2 + $0x548] sm:$0xff]
    %v366 = vld [vmem:[#allocation2 + $0x550] sm:$0xff]
    %v367 = vld [vmem:[#allocation2 + $0x558] sm:$0xff]
    %v368 = vld [vmem:[#allocation2 + $0x560] sm:$0xff]
    %v369 = vld [vmem:[#allocation2 + $0x568] sm:$0xff]
    %v370 = vld [vmem:[#allocation2 + $0x570] sm:$0xff]
    %v371 = vld [vmem:[#allocation2 + $0x578] sm:$0xff]
    %v372 = vld [vmem:[#allocation2 + $0x580] sm:$0xff]
    %v373 = vld [vmem:[#allocation2 + $0x588] sm:$0xff]
    %v374 = vld [vmem:[#allocation2 + $0x590] sm:$0xff]
    %v375 = vld [vmem:[#allocation2 + $0x598] sm:$0xff]
    %v376 = vld [vmem:[#allocation2 + $0x5a0] sm:$0xff]
    %v377 = vld [vmem:[#allocation2 + $0x5a8] sm:$0xff]
    %v378 = vld [vmem:[#allocation2 + $0x5b0] sm:$0xff]
    %v379 = vld [vmem:[#allocation2 + $0x5b8] sm:$0xff]
    %v380 = vld [vmem:[#allocation2 + $0x5c0] sm:$0xff]
    %v381 = vld [vmem:[#allocation2 + $0x5c8] sm:$0xff]
    %v382 = vld [vmem:[#allocation2 + $0x5d0] sm:$0xff]
    %v383 = vld [vmem:[#allocation2 + $0x5d8] sm:$0xff]
    %v384 = vld [vmem:[#allocation2 + $0x5e0] sm:$0xff]
    %v385 = vld [vmem:[#allocation2 + $0x5e8] sm:$0xff]
    %v386 = vld [vmem:[#allocation2 + $0x5f0] sm:$0xff]
    %v387 = vld [vmem:[#allocation2 + $0x5f8] sm:$0xff]
    %v388 = vld [vmem:[#allocation2 + $0x600] sm:$0xff]
    %v389 = vld [vmem:[#allocation2 + $0x608] sm:$0xff]
    %v390 = vld [vmem:[#allocation2 + $0x610] sm:$0xff]
    %v391 = vld [vmem:[#allocation2 + $0x618] sm:$0xff]
    %v392 = vld [vmem:[#allocation2 + $0x620] sm:$0xff]
    %v393 = vld [vmem:[#allocation2 + $0x628] sm:$0xff]
    %v394 = vld [vmem:[#allocation2 + $0x630] sm:$0xff]
    %v395 = vld [vmem:[#allocation2 + $0x638] sm:$0xff]
    %v396 = vld [vmem:[#allocation2 + $0x640] sm:$0xff]
    %v397 = vld [vmem:[#allocation2 + $0x648] sm:$0xff]
    %v398 = vld [vmem:[#allocation2 + $0x650] sm:$0xff]
    %v399 = vld [vmem:[#allocation2 + $0x658] sm:$0xff]
    %v400 = vld [vmem:[#allocation2 + $0x660] sm:$0xff]
    %v401 = vld [vmem:[#allocation2 + $0x668] sm:$0xff]
    %v402 = vld [vmem:[#allocation2 + $0x670] sm:$0xff]
    %v403 = vld [vmem:[#allocation2 + $0x678] sm:$0xff]
    %v404 = vld [vmem:[#allocation2 + $0x680] sm:$0xff]
    %v405 = vld [vmem:[#allocation2 + $0x688] sm:$0xff]
    %v406 = vld [vmem:[#allocation2 + $0x690] sm:$0xff]
    %v407 = vld [vmem:[#allocation2 + $0x698] sm:$0xff]
    %v408 = vld [vmem:[#allocation2 + $0x6a0] sm:$0xff]
    %v409 = vld [vmem:[#allocation2 + $0x6a8] sm:$0xff]
    %v410 = vld [vmem:[#allocation2 + $0x6b0] sm:$0xff]
    %v411 = vld [vmem:[#allocation2 + $0x6b8] sm:$0xff]
    %v412 = vld [vmem:[#allocation2 + $0x6c0] sm:$0xff]
    %v413 = vld [vmem:[#allocation2 + $0x6c8] sm:$0xff]
    %v414 = vld [vmem:[#allocation2 + $0x6d0] sm:$0xff]
    %v415 = vld [vmem:[#allocation2 + $0x6d8] sm:$0xff]
    %v416 = vld [vmem:[#allocation2 + $0x6e0] sm:$0xff]
    %v417 = vld [vmem:[#allocation2 + $0x6e8] sm:$0xff]
    %v418 = vld [vmem:[#allocation2 + $0x6f0] sm:$0xff]
    %v419 = vld [vmem:[#allocation2 + $0x6f8] sm:$0xff]
    %v420 = vld [vmem:[#allocation2 + $0x700] sm:$0xff]
    %v421 = vld [vmem:[#allocation2 + $0x708] sm:$0xff]
    %v422 = vld [vmem:[#allocation2 + $0x710] sm:$0xff]
    %v423 = vld [vmem:[#allocation2 + $0x718] sm:$0xff]
    %v424 = vld [vmem:[#allocation2 + $0x720] sm:$0xff]
    %v425 = vld [vmem:[#allocation2 + $0x728] sm:$0xff]
    %v426 = vld [vmem:[#allocation2 + $0x730] sm:$0xff]
    %v427 = vld [vmem:[#allocation2 + $0x738] sm:$0xff]
    %v428 = vld [vmem:[#allocation2 + $0x740] sm:$0xff]
    %v429 = vld [vmem:[#allocation2 + $0x748] sm:$0xff]
    %v430 = vld [vmem:[#allocation2 + $0x750] sm:$0xff]
    %v431 = vld [vmem:[#allocation2 + $0x758] sm:$0xff]
    %v432 = vld [vmem:[#allocation2 + $0x760] sm:$0xff]
    %v433 = vld [vmem:[#allocation2 + $0x768] sm:$0xff]
    %v434 = vld [vmem:[#allocation2 + $0x770] sm:$0xff]
    %v435 = vld [vmem:[#allocation2 + $0x778] sm:$0xff]
    %v436 = vld [vmem:[#allocation2 + $0x780] sm:$0xff]
    %v437 = vld [vmem:[#allocation2 + $0x788] sm:$0xff]
    %v438 = vld [vmem:[#allocation2 + $0x790] sm:$0xff]
    %v439 = vld [vmem:[#allocation2 + $0x798] sm:$0xff]
    %v440 = vld [vmem:[#allocation2 + $0x7a0] sm:$0xff]
    %v441 = vld [vmem:[#allocation2 + $0x7a8] sm:$0xff]
    %v442 = vld [vmem:[#allocation2 + $0x7b0] sm:$0xff]
    %v443 = vld [vmem:[#allocation2 + $0x7b8] sm:$0xff]
    %v444 = vld [vmem:[#allocation2 + $0x7c0] sm:$0xff]
    %v445 = vld [vmem:[#allocation2 + $0x7c8] sm:$0xff]
    %v446 = vld [vmem:[#allocation2 + $0x7d0] sm:$0xff]
    %v447 = vld [vmem:[#allocation2 + $0x7d8] sm:$0xff]
    %v448 = vld [vmem:[#allocation2 + $0x7e0] sm:$0xff]
    %v449 = vld [vmem:[#allocation2 + $0x7e8] sm:$0xff]
    %v450 = vld [vmem:[#allocation2 + $0x7f0] sm:$0xff]
    %v451 = vld [vmem:[#allocation2 + $0x7f8] sm:$0xff]
    %v453 = vcombine.high %v195, %v195
    %v455 = vunpack.c.l.s4 1966171168
    %v456 = vunpack.c.0.s8 %v455
    %v457 = vlaneseq
    %v458 = vshrl.u32 %v457, 7
    %v459 = vsub.s32 %v456, %v458
    %v460 = vrot.slane %v195, %v459
    %v462 = vunpack.c.l.s4 1966171168
    %v463 = vunpack.c.0.s8 %v462
    %v464 = vlaneseq
    %v465 = vshrl.u32 %v464, 7
    %v466 = vsub.s32 %v463, %v465
    %v467 = vrot.slane %v453, %v466
    %v468 = vcombine.high %v460, %v460
    %v469 = vcombine.high %v467, %v467
    %v471 = vunpack.c.l.s4 1966171168
    %v472 = vunpack.c.0.s8 %v471
    %v473 = vlaneseq
    %v474 = vshrl.u32 %v473, 7
    %v475 = vsub.s32 %v472, %v474
    %v476 = vrot.slane %v460, %v475
    %v478 = vunpack.c.l.s4 1966171168
    %v479 = vunpack.c.0.s8 %v478
    %v480 = vlaneseq
    %v481 = vshrl.u32 %v480, 7
    %v482 = vsub.s32 %v479, %v481
    %v483 = vrot.slane %v467, %v482
    %v485 = vunpack.c.l.s4 1966171168
    %v486 = vunpack.c.0.s8 %v485
    %v487 = vlaneseq
    %v488 = vshrl.u32 %v487, 7
    %v489 = vsub.s32 %v486, %v488
    %v490 = vrot.slane %v468, %v489
    %v492 = vunpack.c.l.s4 1966171168
    %v493 = vunpack.c.0.s8 %v492
    %v494 = vlaneseq
    %v495 = vshrl.u32 %v494, 7
    %v496 = vsub.s32 %v493, %v495
    %v497 = vrot.slane %v469, %v496
    %v498 = vcombine.high %v476, %v476
    %v499 = vcombine.high %v483, %v483
    %v500 = vcombine.high %v490, %v490
    %v501 = vcombine.high %v497, %v497
    %v766 = vunpack.c.l.b16 %v196
    %v767 = vunpack.c.h.b16 %v196
    %v768 = vunpack.c.l.b16 %v197
    %v769 = vunpack.c.h.b16 %v197
    %v770 = vunpack.c.l.b16 %v198
    %v771 = vunpack.c.h.b16 %v198
    %v772 = vunpack.c.l.b16 %v199
    %v773 = vunpack.c.h.b16 %v199
    %v774 = vunpack.c.l.b16 %v200
    %v775 = vunpack.c.h.b16 %v200
    %v776 = vunpack.c.l.b16 %v201
    %v777 = vunpack.c.h.b16 %v201
    %v778 = vunpack.c.l.b16 %v202
    %v779 = vunpack.c.h.b16 %v202
    %v780 = vunpack.c.l.b16 %v203
    %v781 = vunpack.c.h.b16 %v203
    %v782 = vunpack.c.l.b16 %v204
    %v783 = vunpack.c.h.b16 %v204
    %v784 = vunpack.c.l.b16 %v205
    %v785 = vunpack.c.h.b16 %v205
    %v786 = vunpack.c.l.b16 %v206
    %v787 = vunpack.c.h.b16 %v206
    %v788 = vunpack.c.l.b16 %v207
    %v789 = vunpack.c.h.b16 %v207
    %v790 = vunpack.c.l.b16 %v208
    %v791 = vunpack.c.h.b16 %v208
    %v792 = vunpack.c.l.b16 %v209
    %v793 = vunpack.c.h.b16 %v209
    %v794 = vunpack.c.l.b16 %v210
    %v795 = vunpack.c.h.b16 %v210
    %v796 = vunpack.c.l.b16 %v211
    %v797 = vunpack.c.h.b16 %v211
    %v798 = vunpack.c.l.b16 %v212
    %v799 = vunpack.c.h.b16 %v212
    %v800 = vunpack.c.l.b16 %v213
    %v801 = vunpack.c.h.b16 %v213
    %v802 = vunpack.c.l.b16 %v214
    %v803 = vunpack.c.h.b16 %v214
    %v804 = vunpack.c.l.b16 %v215
    %v805 = vunpack.c.h.b16 %v215
    %v806 = vunpack.c.l.b16 %v216
    %v807 = vunpack.c.h.b16 %v216
    %v808 = vunpack.c.l.b16 %v217
    %v809 = vunpack.c.h.b16 %v217
    %v810 = vunpack.c.l.b16 %v218
    %v811 = vunpack.c.h.b16 %v218
    %v812 = vunpack.c.l.b16 %v219
    %v813 = vunpack.c.h.b16 %v219
    %v814 = vunpack.c.l.b16 %v220
    %v815 = vunpack.c.h.b16 %v220
    %v816 = vunpack.c.l.b16 %v221
    %v817 = vunpack.c.h.b16 %v221
    %v818 = vunpack.c.l.b16 %v222
    %v819 = vunpack.c.h.b16 %v222
    %v820 = vunpack.c.l.b16 %v223
    %v821 = vunpack.c.h.b16 %v223
    %v822 = vunpack.c.l.b16 %v224
    %v823 = vunpack.c.h.b16 %v224
    %v824 = vunpack.c.l.b16 %v225
    %v825 = vunpack.c.h.b16 %v225
    %v826 = vunpack.c.l.b16 %v226
    %v827 = vunpack.c.h.b16 %v226
    %v828 = vunpack.c.l.b16 %v227
    %v829 = vunpack.c.h.b16 %v227
    %v830 = vunpack.c.l.b16 %v228
    %v831 = vunpack.c.h.b16 %v228
    %v832 = vunpack.c.l.b16 %v229
    %v833 = vunpack.c.h.b16 %v229
    %v834 = vunpack.c.l.b16 %v230
    %v835 = vunpack.c.h.b16 %v230
    %v836 = vunpack.c.l.b16 %v231
    %v837 = vunpack.c.h.b16 %v231
    %v838 = vunpack.c.l.b16 %v232
    %v839 = vunpack.c.h.b16 %v232
    %v840 = vunpack.c.l.b16 %v233
    %v841 = vunpack.c.h.b16 %v233
    %v842 = vunpack.c.l.b16 %v234
    %v843 = vunpack.c.h.b16 %v234
    %v844 = vunpack.c.l.b16 %v235
    %v845 = vunpack.c.h.b16 %v235
    %v846 = vunpack.c.l.b16 %v236
    %v847 = vunpack.c.h.b16 %v236
    %v848 = vunpack.c.l.b16 %v237
    %v849 = vunpack.c.h.b16 %v237
    %v850 = vunpack.c.l.b16 %v238
    %v851 = vunpack.c.h.b16 %v238
    %v852 = vunpack.c.l.b16 %v239
    %v853 = vunpack.c.h.b16 %v239
    %v854 = vunpack.c.l.b16 %v240
    %v855 = vunpack.c.h.b16 %v240
    %v856 = vunpack.c.l.b16 %v241
    %v857 = vunpack.c.h.b16 %v241
    %v858 = vunpack.c.l.b16 %v242
    %v859 = vunpack.c.h.b16 %v242
    %v860 = vunpack.c.l.b16 %v243
    %v861 = vunpack.c.h.b16 %v243
    %v862 = vunpack.c.l.b16 %v244
    %v863 = vunpack.c.h.b16 %v244
    %v864 = vunpack.c.l.b16 %v245
    %v865 = vunpack.c.h.b16 %v245
    %v866 = vunpack.c.l.b16 %v246
    %v867 = vunpack.c.h.b16 %v246
    %v868 = vunpack.c.l.b16 %v247
    %v869 = vunpack.c.h.b16 %v247
    %v870 = vunpack.c.l.b16 %v248
    %v871 = vunpack.c.h.b16 %v248
    %v872 = vunpack.c.l.b16 %v249
    %v873 = vunpack.c.h.b16 %v249
    %v874 = vunpack.c.l.b16 %v250
    %v875 = vunpack.c.h.b16 %v250
    %v876 = vunpack.c.l.b16 %v251
    %v877 = vunpack.c.h.b16 %v251
    %v878 = vunpack.c.l.b16 %v252
    %v879 = vunpack.c.h.b16 %v252
    %v880 = vunpack.c.l.b16 %v253
    %v881 = vunpack.c.h.b16 %v253
    %v882 = vunpack.c.l.b16 %v254
    %v883 = vunpack.c.h.b16 %v254
    %v884 = vunpack.c.l.b16 %v255
    %v885 = vunpack.c.h.b16 %v255
    %v886 = vunpack.c.l.b16 %v256
    %v887 = vunpack.c.h.b16 %v256
    %v888 = vunpack.c.l.b16 %v257
    %v889 = vunpack.c.h.b16 %v257
    %v890 = vunpack.c.l.b16 %v258
    %v891 = vunpack.c.h.b16 %v258
    %v892 = vunpack.c.l.b16 %v259
    %v893 = vunpack.c.h.b16 %v259
    %v894 = vunpack.c.l.b16 %v260
    %v895 = vunpack.c.h.b16 %v260
    %v896 = vunpack.c.l.b16 %v261
    %v897 = vunpack.c.h.b16 %v261
    %v898 = vunpack.c.l.b16 %v262
    %v899 = vunpack.c.h.b16 %v262
    %v900 = vunpack.c.l.b16 %v263
    %v901 = vunpack.c.h.b16 %v263
    %v902 = vunpack.c.l.b16 %v264
    %v903 = vunpack.c.h.b16 %v264
    %v904 = vunpack.c.l.b16 %v265
    %v905 = vunpack.c.h.b16 %v265
    %v906 = vunpack.c.l.b16 %v266
    %v907 = vunpack.c.h.b16 %v266
    %v908 = vunpack.c.l.b16 %v267
    %v909 = vunpack.c.h.b16 %v267
    %v910 = vunpack.c.l.b16 %v268
    %v911 = vunpack.c.h.b16 %v268
    %v912 = vunpack.c.l.b16 %v269
    %v913 = vunpack.c.h.b16 %v269
    %v914 = vunpack.c.l.b16 %v270
    %v915 = vunpack.c.h.b16 %v270
    %v916 = vunpack.c.l.b16 %v271
    %v917 = vunpack.c.h.b16 %v271
    %v918 = vunpack.c.l.b16 %v272
    %v919 = vunpack.c.h.b16 %v272
    %v920 = vunpack.c.l.b16 %v273
    %v921 = vunpack.c.h.b16 %v273
    %v922 = vunpack.c.l.b16 %v274
    %v923 = vunpack.c.h.b16 %v274
    %v924 = vunpack.c.l.b16 %v275
    %v925 = vunpack.c.h.b16 %v275
    %v926 = vunpack.c.l.b16 %v276
    %v927 = vunpack.c.h.b16 %v276
    %v928 = vunpack.c.l.b16 %v277
    %v929 = vunpack.c.h.b16 %v277
    %v930 = vunpack.c.l.b16 %v278
    %v931 = vunpack.c.h.b16 %v278
    %v932 = vunpack.c.l.b16 %v279
    %v933 = vunpack.c.h.b16 %v279
    %v934 = vunpack.c.l.b16 %v280
    %v935 = vunpack.c.h.b16 %v280
    %v936 = vunpack.c.l.b16 %v281
    %v937 = vunpack.c.h.b16 %v281
    %v938 = vunpack.c.l.b16 %v282
    %v939 = vunpack.c.h.b16 %v282
    %v940 = vunpack.c.l.b16 %v283
    %v941 = vunpack.c.h.b16 %v283
    %v942 = vunpack.c.l.b16 %v284
    %v943 = vunpack.c.h.b16 %v284
    %v944 = vunpack.c.l.b16 %v285
    %v945 = vunpack.c.h.b16 %v285
    %v946 = vunpack.c.l.b16 %v286
    %v947 = vunpack.c.h.b16 %v286
    %v948 = vunpack.c.l.b16 %v287
    %v949 = vunpack.c.h.b16 %v287
    %v950 = vunpack.c.l.b16 %v288
    %v951 = vunpack.c.h.b16 %v288
    %v952 = vunpack.c.l.b16 %v289
    %v953 = vunpack.c.h.b16 %v289
    %v954 = vunpack.c.l.b16 %v290
    %v955 = vunpack.c.h.b16 %v290
    %v956 = vunpack.c.l.b16 %v291
    %v957 = vunpack.c.h.b16 %v291
    %v958 = vunpack.c.l.b16 %v292
    %v959 = vunpack.c.h.b16 %v292
    %v960 = vunpack.c.l.b16 %v293
    %v961 = vunpack.c.h.b16 %v293
    %v962 = vunpack.c.l.b16 %v294
    %v963 = vunpack.c.h.b16 %v294
    %v964 = vunpack.c.l.b16 %v295
    %v965 = vunpack.c.h.b16 %v295
    %v966 = vunpack.c.l.b16 %v296
    %v967 = vunpack.c.h.b16 %v296
    %v968 = vunpack.c.l.b16 %v297
    %v969 = vunpack.c.h.b16 %v297
    %v970 = vunpack.c.l.b16 %v298
    %v971 = vunpack.c.h.b16 %v298
    %v972 = vunpack.c.l.b16 %v299
    %v973 = vunpack.c.h.b16 %v299
    %v974 = vunpack.c.l.b16 %v300
    %v975 = vunpack.c.h.b16 %v300
    %v976 = vunpack.c.l.b16 %v301
    %v977 = vunpack.c.h.b16 %v301
    %v978 = vunpack.c.l.b16 %v302
    %v979 = vunpack.c.h.b16 %v302
    %v980 = vunpack.c.l.b16 %v303
    %v981 = vunpack.c.h.b16 %v303
    %v982 = vunpack.c.l.b16 %v304
    %v983 = vunpack.c.h.b16 %v304
    %v984 = vunpack.c.l.b16 %v305
    %v985 = vunpack.c.h.b16 %v305
    %v986 = vunpack.c.l.b16 %v306
    %v987 = vunpack.c.h.b16 %v306
    %v988 = vunpack.c.l.b16 %v307
    %v989 = vunpack.c.h.b16 %v307
    %v990 = vunpack.c.l.b16 %v308
    %v991 = vunpack.c.h.b16 %v308
    %v992 = vunpack.c.l.b16 %v309
    %v993 = vunpack.c.h.b16 %v309
    %v994 = vunpack.c.l.b16 %v310
    %v995 = vunpack.c.h.b16 %v310
    %v996 = vunpack.c.l.b16 %v311
    %v997 = vunpack.c.h.b16 %v311
    %v998 = vunpack.c.l.b16 %v312
    %v999 = vunpack.c.h.b16 %v312
    %v1000 = vunpack.c.l.b16 %v313
    %v1001 = vunpack.c.h.b16 %v313
    %v1002 = vunpack.c.l.b16 %v314
    %v1003 = vunpack.c.h.b16 %v314
    %v1004 = vunpack.c.l.b16 %v315
    %v1005 = vunpack.c.h.b16 %v315
    %v1006 = vunpack.c.l.b16 %v316
    %v1007 = vunpack.c.h.b16 %v316
    %v1008 = vunpack.c.l.b16 %v317
    %v1009 = vunpack.c.h.b16 %v317
    %v1010 = vunpack.c.l.b16 %v318
    %v1011 = vunpack.c.h.b16 %v318
    %v1012 = vunpack.c.l.b16 %v319
    %v1013 = vunpack.c.h.b16 %v319
    %v1014 = vunpack.c.l.b16 %v320
    %v1015 = vunpack.c.h.b16 %v320
    %v1016 = vunpack.c.l.b16 %v321
    %v1017 = vunpack.c.h.b16 %v321
    %v1018 = vunpack.c.l.b16 %v322
    %v1019 = vunpack.c.h.b16 %v322
    %v1020 = vunpack.c.l.b16 %v323
    %v1021 = vunpack.c.h.b16 %v323
    %v1022 = vunpack.c.l.b16 %v324
    %v1023 = vunpack.c.h.b16 %v324
    %v1024 = vunpack.c.l.b16 %v325
    %v1025 = vunpack.c.h.b16 %v325
    %v1026 = vunpack.c.l.b16 %v326
    %v1027 = vunpack.c.h.b16 %v326
    %v1028 = vunpack.c.l.b16 %v327
    %v1029 = vunpack.c.h.b16 %v327
    %v1030 = vunpack.c.l.b16 %v328
    %v1031 = vunpack.c.h.b16 %v328
    %v1032 = vunpack.c.l.b16 %v329
    %v1033 = vunpack.c.h.b16 %v329
    %v1034 = vunpack.c.l.b16 %v330
    %v1035 = vunpack.c.h.b16 %v330
    %v1036 = vunpack.c.l.b16 %v331
    %v1037 = vunpack.c.h.b16 %v331
    %v1038 = vunpack.c.l.b16 %v332
    %v1039 = vunpack.c.h.b16 %v332
    %v1040 = vunpack.c.l.b16 %v333
    %v1041 = vunpack.c.h.b16 %v333
    %v1042 = vunpack.c.l.b16 %v334
    %v1043 = vunpack.c.h.b16 %v334
    %v1044 = vunpack.c.l.b16 %v335
    %v1045 = vunpack.c.h.b16 %v335
    %v1046 = vunpack.c.l.b16 %v336
    %v1047 = vunpack.c.h.b16 %v336
    %v1048 = vunpack.c.l.b16 %v337
    %v1049 = vunpack.c.h.b16 %v337
    %v1050 = vunpack.c.l.b16 %v338
    %v1051 = vunpack.c.h.b16 %v338
    %v1052 = vunpack.c.l.b16 %v339
    %v1053 = vunpack.c.h.b16 %v339
    %v1054 = vunpack.c.l.b16 %v340
    %v1055 = vunpack.c.h.b16 %v340
    %v1056 = vunpack.c.l.b16 %v341
    %v1057 = vunpack.c.h.b16 %v341
    %v1058 = vunpack.c.l.b16 %v342
    %v1059 = vunpack.c.h.b16 %v342
    %v1060 = vunpack.c.l.b16 %v343
    %v1061 = vunpack.c.h.b16 %v343
    %v1062 = vunpack.c.l.b16 %v344
    %v1063 = vunpack.c.h.b16 %v344
    %v1064 = vunpack.c.l.b16 %v345
    %v1065 = vunpack.c.h.b16 %v345
    %v1066 = vunpack.c.l.b16 %v346
    %v1067 = vunpack.c.h.b16 %v346
    %v1068 = vunpack.c.l.b16 %v347
    %v1069 = vunpack.c.h.b16 %v347
    %v1070 = vunpack.c.l.b16 %v348
    %v1071 = vunpack.c.h.b16 %v348
    %v1072 = vunpack.c.l.b16 %v349
    %v1073 = vunpack.c.h.b16 %v349
    %v1074 = vunpack.c.l.b16 %v350
    %v1075 = vunpack.c.h.b16 %v350
    %v1076 = vunpack.c.l.b16 %v351
    %v1077 = vunpack.c.h.b16 %v351
    %v1078 = vunpack.c.l.b16 %v352
    %v1079 = vunpack.c.h.b16 %v352
    %v1080 = vunpack.c.l.b16 %v353
    %v1081 = vunpack.c.h.b16 %v353
    %v1082 = vunpack.c.l.b16 %v354
    %v1083 = vunpack.c.h.b16 %v354
    %v1084 = vunpack.c.l.b16 %v355
    %v1085 = vunpack.c.h.b16 %v355
    %v1086 = vunpack.c.l.b16 %v356
    %v1087 = vunpack.c.h.b16 %v356
    %v1088 = vunpack.c.l.b16 %v357
    %v1089 = vunpack.c.h.b16 %v357
    %v1090 = vunpack.c.l.b16 %v358
    %v1091 = vunpack.c.h.b16 %v358
    %v1092 = vunpack.c.l.b16 %v359
    %v1093 = vunpack.c.h.b16 %v359
    %v1094 = vunpack.c.l.b16 %v360
    %v1095 = vunpack.c.h.b16 %v360
    %v1096 = vunpack.c.l.b16 %v361
    %v1097 = vunpack.c.h.b16 %v361
    %v1098 = vunpack.c.l.b16 %v362
    %v1099 = vunpack.c.h.b16 %v362
    %v1100 = vunpack.c.l.b16 %v363
    %v1101 = vunpack.c.h.b16 %v363
    %v1102 = vunpack.c.l.b16 %v364
    %v1103 = vunpack.c.h.b16 %v364
    %v1104 = vunpack.c.l.b16 %v365
    %v1105 = vunpack.c.h.b16 %v365
    %v1106 = vunpack.c.l.b16 %v366
    %v1107 = vunpack.c.h.b16 %v366
    %v1108 = vunpack.c.l.b16 %v367
    %v1109 = vunpack.c.h.b16 %v367
    %v1110 = vunpack.c.l.b16 %v368
    %v1111 = vunpack.c.h.b16 %v368
    %v1112 = vunpack.c.l.b16 %v369
    %v1113 = vunpack.c.h.b16 %v369
    %v1114 = vunpack.c.l.b16 %v370
    %v1115 = vunpack.c.h.b16 %v370
    %v1116 = vunpack.c.l.b16 %v371
    %v1117 = vunpack.c.h.b16 %v371
    %v1118 = vunpack.c.l.b16 %v372
    %v1119 = vunpack.c.h.b16 %v372
    %v1120 = vunpack.c.l.b16 %v373
    %v1121 = vunpack.c.h.b16 %v373
    %v1122 = vunpack.c.l.b16 %v374
    %v1123 = vunpack.c.h.b16 %v374
    %v1124 = vunpack.c.l.b16 %v375
    %v1125 = vunpack.c.h.b16 %v375
    %v1126 = vunpack.c.l.b16 %v376
    %v1127 = vunpack.c.h.b16 %v376
    %v1128 = vunpack.c.l.b16 %v377
    %v1129 = vunpack.c.h.b16 %v377
    %v1130 = vunpack.c.l.b16 %v378
    %v1131 = vunpack.c.h.b16 %v378
    %v1132 = vunpack.c.l.b16 %v379
    %v1133 = vunpack.c.h.b16 %v379
    %v1134 = vunpack.c.l.b16 %v380
    %v1135 = vunpack.c.h.b16 %v380
    %v1136 = vunpack.c.l.b16 %v381
    %v1137 = vunpack.c.h.b16 %v381
    %v1138 = vunpack.c.l.b16 %v382
    %v1139 = vunpack.c.h.b16 %v382
    %v1140 = vunpack.c.l.b16 %v383
    %v1141 = vunpack.c.h.b16 %v383
    %v1142 = vunpack.c.l.b16 %v384
    %v1143 = vunpack.c.h.b16 %v384
    %v1144 = vunpack.c.l.b16 %v385
    %v1145 = vunpack.c.h.b16 %v385
    %v1146 = vunpack.c.l.b16 %v386
    %v1147 = vunpack.c.h.b16 %v386
    %v1148 = vunpack.c.l.b16 %v387
    %v1149 = vunpack.c.h.b16 %v387
    %v1150 = vunpack.c.l.b16 %v388
    %v1151 = vunpack.c.h.b16 %v388
    %v1152 = vunpack.c.l.b16 %v389
    %v1153 = vunpack.c.h.b16 %v389
    %v1154 = vunpack.c.l.b16 %v390
    %v1155 = vunpack.c.h.b16 %v390
    %v1156 = vunpack.c.l.b16 %v391
    %v1157 = vunpack.c.h.b16 %v391
    %v1158 = vunpack.c.l.b16 %v392
    %v1159 = vunpack.c.h.b16 %v392
    %v1160 = vunpack.c.l.b16 %v393
    %v1161 = vunpack.c.h.b16 %v393
    %v1162 = vunpack.c.l.b16 %v394
    %v1163 = vunpack.c.h.b16 %v394
    %v1164 = vunpack.c.l.b16 %v395
    %v1165 = vunpack.c.h.b16 %v395
    %v1166 = vunpack.c.l.b16 %v396
    %v1167 = vunpack.c.h.b16 %v396
    %v1168 = vunpack.c.l.b16 %v397
    %v1169 = vunpack.c.h.b16 %v397
    %v1170 = vunpack.c.l.b16 %v398
    %v1171 = vunpack.c.h.b16 %v398
    %v1172 = vunpack.c.l.b16 %v399
    %v1173 = vunpack.c.h.b16 %v399
    %v1174 = vunpack.c.l.b16 %v400
    %v1175 = vunpack.c.h.b16 %v400
    %v1176 = vunpack.c.l.b16 %v401
    %v1177 = vunpack.c.h.b16 %v401
    %v1178 = vunpack.c.l.b16 %v402
    %v1179 = vunpack.c.h.b16 %v402
    %v1180 = vunpack.c.l.b16 %v403
    %v1181 = vunpack.c.h.b16 %v403
    %v1182 = vunpack.c.l.b16 %v404
    %v1183 = vunpack.c.h.b16 %v404
    %v1184 = vunpack.c.l.b16 %v405
    %v1185 = vunpack.c.h.b16 %v405
    %v1186 = vunpack.c.l.b16 %v406
    %v1187 = vunpack.c.h.b16 %v406
    %v1188 = vunpack.c.l.b16 %v407
    %v1189 = vunpack.c.h.b16 %v407
    %v1190 = vunpack.c.l.b16 %v408
    %v1191 = vunpack.c.h.b16 %v408
    %v1192 = vunpack.c.l.b16 %v409
    %v1193 = vunpack.c.h.b16 %v409
    %v1194 = vunpack.c.l.b16 %v410
    %v1195 = vunpack.c.h.b16 %v410
    %v1196 = vunpack.c.l.b16 %v411
    %v1197 = vunpack.c.h.b16 %v411
    %v1198 = vunpack.c.l.b16 %v412
    %v1199 = vunpack.c.h.b16 %v412
    %v1200 = vunpack.c.l.b16 %v413
    %v1201 = vunpack.c.h.b16 %v413
    %v1202 = vunpack.c.l.b16 %v414
    %v1203 = vunpack.c.h.b16 %v414
    %v1204 = vunpack.c.l.b16 %v415
    %v1205 = vunpack.c.h.b16 %v415
    %v1206 = vunpack.c.l.b16 %v416
    %v1207 = vunpack.c.h.b16 %v416
    %v1208 = vunpack.c.l.b16 %v417
    %v1209 = vunpack.c.h.b16 %v417
    %v1210 = vunpack.c.l.b16 %v418
    %v1211 = vunpack.c.h.b16 %v418
    %v1212 = vunpack.c.l.b16 %v419
    %v1213 = vunpack.c.h.b16 %v419
    %v1214 = vunpack.c.l.b16 %v420
    %v1215 = vunpack.c.h.b16 %v420
    %v1216 = vunpack.c.l.b16 %v421
    %v1217 = vunpack.c.h.b16 %v421
    %v1218 = vunpack.c.l.b16 %v422
    %v1219 = vunpack.c.h.b16 %v422
    %v1220 = vunpack.c.l.b16 %v423
    %v1221 = vunpack.c.h.b16 %v423
    %v1222 = vunpack.c.l.b16 %v424
    %v1223 = vunpack.c.h.b16 %v424
    %v1224 = vunpack.c.l.b16 %v425
    %v1225 = vunpack.c.h.b16 %v425
    %v1226 = vunpack.c.l.b16 %v426
    %v1227 = vunpack.c.h.b16 %v426
    %v1228 = vunpack.c.l.b16 %v427
    %v1229 = vunpack.c.h.b16 %v427
    %v1230 = vunpack.c.l.b16 %v428
    %v1231 = vunpack.c.h.b16 %v428
    %v1232 = vunpack.c.l.b16 %v429
    %v1233 = vunpack.c.h.b16 %v429
    %v1234 = vunpack.c.l.b16 %v430
    %v1235 = vunpack.c.h.b16 %v430
    %v1236 = vunpack.c.l.b16 %v431
    %v1237 = vunpack.c.h.b16 %v431
    %v1238 = vunpack.c.l.b16 %v432
    %v1239 = vunpack.c.h.b16 %v432
    %v1240 = vunpack.c.l.b16 %v433
    %v1241 = vunpack.c.h.b16 %v433
    %v1242 = vunpack.c.l.b16 %v434
    %v1243 = vunpack.c.h.b16 %v434
    %v1244 = vunpack.c.l.b16 %v435
    %v1245 = vunpack.c.h.b16 %v435
    %v1246 = vunpack.c.l.b16 %v436
    %v1247 = vunpack.c.h.b16 %v436
    %v1248 = vunpack.c.l.b16 %v437
    %v1249 = vunpack.c.h.b16 %v437
    %v1250 = vunpack.c.l.b16 %v438
    %v1251 = vunpack.c.h.b16 %v438
    %v1252 = vunpack.c.l.b16 %v439
    %v1253 = vunpack.c.h.b16 %v439
    %v1254 = vunpack.c.l.b16 %v440
    %v1255 = vunpack.c.h.b16 %v440
    %v1256 = vunpack.c.l.b16 %v441
    %v1257 = vunpack.c.h.b16 %v441
    %v1258 = vunpack.c.l.b16 %v442
    %v1259 = vunpack.c.h.b16 %v442
    %v1260 = vunpack.c.l.b16 %v443
    %v1261 = vunpack.c.h.b16 %v443
    %v1262 = vunpack.c.l.b16 %v444
    %v1263 = vunpack.c.h.b16 %v444
    %v1264 = vunpack.c.l.b16 %v445
    %v1265 = vunpack.c.h.b16 %v445
    %v1266 = vunpack.c.l.b16 %v446
    %v1267 = vunpack.c.h.b16 %v446
    %v1268 = vunpack.c.l.b16 %v447
    %v1269 = vunpack.c.h.b16 %v447
    %v1270 = vunpack.c.l.b16 %v448
    %v1271 = vunpack.c.h.b16 %v448
    %v1272 = vunpack.c.l.b16 %v449
    %v1273 = vunpack.c.h.b16 %v449
    %v1274 = vunpack.c.l.b16 %v450
    %v1275 = vunpack.c.h.b16 %v450
    %v1276 = vunpack.c.l.b16 %v451
    %v1277 = vunpack.c.h.b16 %v451
    %v1278 = vpack.c.b16 %v770, %v766
    %v1279 = vpack.c.b16 %v771, %v767
    %v1280 = vpack.c.b16 %v772, %v768
    %v1281 = vpack.c.b16 %v773, %v769
    %v1282 = vpack.c.b16 %v778, %v774
    %v1283 = vpack.c.b16 %v779, %v775
    %v1284 = vpack.c.b16 %v780, %v776
    %v1285 = vpack.c.b16 %v781, %v777
    %v1286 = vpack.c.b16 %v786, %v782
    %v1287 = vpack.c.b16 %v787, %v783
    %v1288 = vpack.c.b16 %v788, %v784
    %v1289 = vpack.c.b16 %v789, %v785
    %v1290 = vpack.c.b16 %v794, %v790
    %v1291 = vpack.c.b16 %v795, %v791
    %v1292 = vpack.c.b16 %v796, %v792
    %v1293 = vpack.c.b16 %v797, %v793
    %v1294 = vpack.c.b16 %v802, %v798
    %v1295 = vpack.c.b16 %v803, %v799
    %v1296 = vpack.c.b16 %v804, %v800
    %v1297 = vpack.c.b16 %v805, %v801
    %v1298 = vpack.c.b16 %v810, %v806
    %v1299 = vpack.c.b16 %v811, %v807
    %v1300 = vpack.c.b16 %v812, %v808
    %v1301 = vpack.c.b16 %v813, %v809
    %v1302 = vpack.c.b16 %v818, %v814
    %v1303 = vpack.c.b16 %v819, %v815
    %v1304 = vpack.c.b16 %v820, %v816
    %v1305 = vpack.c.b16 %v821, %v817
    %v1306 = vpack.c.b16 %v826, %v822
    %v1307 = vpack.c.b16 %v827, %v823
    %v1308 = vpack.c.b16 %v828, %v824
    %v1309 = vpack.c.b16 %v829, %v825
    %v1310 = vpack.c.b16 %v834, %v830
    %v1311 = vpack.c.b16 %v835, %v831
    %v1312 = vpack.c.b16 %v836, %v832
    %v1313 = vpack.c.b16 %v837, %v833
    %v1314 = vpack.c.b16 %v842, %v838
    %v1315 = vpack.c.b16 %v843, %v839
    %v1316 = vpack.c.b16 %v844, %v840
    %v1317 = vpack.c.b16 %v845, %v841
    %v1318 = vpack.c.b16 %v850, %v846
    %v1319 = vpack.c.b16 %v851, %v847
    %v1320 = vpack.c.b16 %v852, %v848
    %v1321 = vpack.c.b16 %v853, %v849
    %v1322 = vpack.c.b16 %v858, %v854
    %v1323 = vpack.c.b16 %v859, %v855
    %v1324 = vpack.c.b16 %v860, %v856
    %v1325 = vpack.c.b16 %v861, %v857
    %v1326 = vpack.c.b16 %v866, %v862
    %v1327 = vpack.c.b16 %v867, %v863
    %v1328 = vpack.c.b16 %v868, %v864
    %v1329 = vpack.c.b16 %v869, %v865
    %v1330 = vpack.c.b16 %v874, %v870
    %v1331 = vpack.c.b16 %v875, %v871
    %v1332 = vpack.c.b16 %v876, %v872
    %v1333 = vpack.c.b16 %v877, %v873
    %v1334 = vpack.c.b16 %v882, %v878
    %v1335 = vpack.c.b16 %v883, %v879
    %v1336 = vpack.c.b16 %v884, %v880
    %v1337 = vpack.c.b16 %v885, %v881
    %v1338 = vpack.c.b16 %v890, %v886
    %v1339 = vpack.c.b16 %v891, %v887
    %v1340 = vpack.c.b16 %v892, %v888
    %v1341 = vpack.c.b16 %v893, %v889
    %v1342 = vpack.c.b16 %v898, %v894
    %v1343 = vpack.c.b16 %v899, %v895
    %v1344 = vpack.c.b16 %v900, %v896
    %v1345 = vpack.c.b16 %v901, %v897
    %v1346 = vpack.c.b16 %v906, %v902
    %v1347 = vpack.c.b16 %v907, %v903
    %v1348 = vpack.c.b16 %v908, %v904
    %v1349 = vpack.c.b16 %v909, %v905
    %v1350 = vpack.c.b16 %v914, %v910
    %v1351 = vpack.c.b16 %v915, %v911
    %v1352 = vpack.c.b16 %v916, %v912
    %v1353 = vpack.c.b16 %v917, %v913
    %v1354 = vpack.c.b16 %v922, %v918
    %v1355 = vpack.c.b16 %v923, %v919
    %v1356 = vpack.c.b16 %v924, %v920
    %v1357 = vpack.c.b16 %v925, %v921
    %v1358 = vpack.c.b16 %v930, %v926
    %v1359 = vpack.c.b16 %v931, %v927
    %v1360 = vpack.c.b16 %v932, %v928
    %v1361 = vpack.c.b16 %v933, %v929
    %v1362 = vpack.c.b16 %v938, %v934
    %v1363 = vpack.c.b16 %v939, %v935
    %v1364 = vpack.c.b16 %v940, %v936
    %v1365 = vpack.c.b16 %v941, %v937
    %v1366 = vpack.c.b16 %v946, %v942
    %v1367 = vpack.c.b16 %v947, %v943
    %v1368 = vpack.c.b16 %v948, %v944
    %v1369 = vpack.c.b16 %v949, %v945
    %v1370 = vpack.c.b16 %v954, %v950
    %v1371 = vpack.c.b16 %v955, %v951
    %v1372 = vpack.c.b16 %v956, %v952
    %v1373 = vpack.c.b16 %v957, %v953
    %v1374 = vpack.c.b16 %v962, %v958
    %v1375 = vpack.c.b16 %v963, %v959
    %v1376 = vpack.c.b16 %v964, %v960
    %v1377 = vpack.c.b16 %v965, %v961
    %v1378 = vpack.c.b16 %v970, %v966
    %v1379 = vpack.c.b16 %v971, %v967
    %v1380 = vpack.c.b16 %v972, %v968
    %v1381 = vpack.c.b16 %v973, %v969
    %v1382 = vpack.c.b16 %v978, %v974
    %v1383 = vpack.c.b16 %v979, %v975
    %v1384 = vpack.c.b16 %v980, %v976
    %v1385 = vpack.c.b16 %v981, %v977
    %v1386 = vpack.c.b16 %v986, %v982
    %v1387 = vpack.c.b16 %v987, %v983
    %v1388 = vpack.c.b16 %v988, %v984
    %v1389 = vpack.c.b16 %v989, %v985
    %v1390 = vpack.c.b16 %v994, %v990
    %v1391 = vpack.c.b16 %v995, %v991
    %v1392 = vpack.c.b16 %v996, %v992
    %v1393 = vpack.c.b16 %v997, %v993
    %v1394 = vpack.c.b16 %v1002, %v998
    %v1395 = vpack.c.b16 %v1003, %v999
    %v1396 = vpack.c.b16 %v1004, %v1000
    %v1397 = vpack.c.b16 %v1005, %v1001
    %v1398 = vpack.c.b16 %v1010, %v1006
    %v1399 = vpack.c.b16 %v1011, %v1007
    %v1400 = vpack.c.b16 %v1012, %v1008
    %v1401 = vpack.c.b16 %v1013, %v1009
    %v1402 = vpack.c.b16 %v1018, %v1014
    %v1403 = vpack.c.b16 %v1019, %v1015
    %v1404 = vpack.c.b16 %v1020, %v1016
    %v1405 = vpack.c.b16 %v1021, %v1017
    %v1406 = vpack.c.b16 %v1026, %v1022
    %v1407 = vpack.c.b16 %v1027, %v1023
    %v1408 = vpack.c.b16 %v1028, %v1024
    %v1409 = vpack.c.b16 %v1029, %v1025
    %v1410 = vpack.c.b16 %v1034, %v1030
    %v1411 = vpack.c.b16 %v1035, %v1031
    %v1412 = vpack.c.b16 %v1036, %v1032
    %v1413 = vpack.c.b16 %v1037, %v1033
    %v1414 = vpack.c.b16 %v1042, %v1038
    %v1415 = vpack.c.b16 %v1043, %v1039
    %v1416 = vpack.c.b16 %v1044, %v1040
    %v1417 = vpack.c.b16 %v1045, %v1041
    %v1418 = vpack.c.b16 %v1050, %v1046
    %v1419 = vpack.c.b16 %v1051, %v1047
    %v1420 = vpack.c.b16 %v1052, %v1048
    %v1421 = vpack.c.b16 %v1053, %v1049
    %v1422 = vpack.c.b16 %v1058, %v1054
    %v1423 = vpack.c.b16 %v1059, %v1055
    %v1424 = vpack.c.b16 %v1060, %v1056
    %v1425 = vpack.c.b16 %v1061, %v1057
    %v1426 = vpack.c.b16 %v1066, %v1062
    %v1427 = vpack.c.b16 %v1067, %v1063
    %v1428 = vpack.c.b16 %v1068, %v1064
    %v1429 = vpack.c.b16 %v1069, %v1065
    %v1430 = vpack.c.b16 %v1074, %v1070
    %v1431 = vpack.c.b16 %v1075, %v1071
    %v1432 = vpack.c.b16 %v1076, %v1072
    %v1433 = vpack.c.b16 %v1077, %v1073
    %v1434 = vpack.c.b16 %v1082, %v1078
    %v1435 = vpack.c.b16 %v1083, %v1079
    %v1436 = vpack.c.b16 %v1084, %v1080
    %v1437 = vpack.c.b16 %v1085, %v1081
    %v1438 = vpack.c.b16 %v1090, %v1086
    %v1439 = vpack.c.b16 %v1091, %v1087
    %v1440 = vpack.c.b16 %v1092, %v1088
    %v1441 = vpack.c.b16 %v1093, %v1089
    %v1442 = vpack.c.b16 %v1098, %v1094
    %v1443 = vpack.c.b16 %v1099, %v1095
    %v1444 = vpack.c.b16 %v1100, %v1096
    %v1445 = vpack.c.b16 %v1101, %v1097
    %v1446 = vpack.c.b16 %v1106, %v1102
    %v1447 = vpack.c.b16 %v1107, %v1103
    %v1448 = vpack.c.b16 %v1108, %v1104
    %v1449 = vpack.c.b16 %v1109, %v1105
    %v1450 = vpack.c.b16 %v1114, %v1110
    %v1451 = vpack.c.b16 %v1115, %v1111
    %v1452 = vpack.c.b16 %v1116, %v1112
    %v1453 = vpack.c.b16 %v1117, %v1113
    %v1454 = vpack.c.b16 %v1122, %v1118
    %v1455 = vpack.c.b16 %v1123, %v1119
    %v1456 = vpack.c.b16 %v1124, %v1120
    %v1457 = vpack.c.b16 %v1125, %v1121
    %v1458 = vpack.c.b16 %v1130, %v1126
    %v1459 = vpack.c.b16 %v1131, %v1127
    %v1460 = vpack.c.b16 %v1132, %v1128
    %v1461 = vpack.c.b16 %v1133, %v1129
    %v1462 = vpack.c.b16 %v1138, %v1134
    %v1463 = vpack.c.b16 %v1139, %v1135
    %v1464 = vpack.c.b16 %v1140, %v1136
    %v1465 = vpack.c.b16 %v1141, %v1137
    %v1466 = vpack.c.b16 %v1146, %v1142
    %v1467 = vpack.c.b16 %v1147, %v1143
    %v1468 = vpack.c.b16 %v1148, %v1144
    %v1469 = vpack.c.b16 %v1149, %v1145
    %v1470 = vpack.c.b16 %v1154, %v1150
    %v1471 = vpack.c.b16 %v1155, %v1151
    %v1472 = vpack.c.b16 %v1156, %v1152
    %v1473 = vpack.c.b16 %v1157, %v1153
    %v1474 = vpack.c.b16 %v1162, %v1158
    %v1475 = vpack.c.b16 %v1163, %v1159
    %v1476 = vpack.c.b16 %v1164, %v1160
    %v1477 = vpack.c.b16 %v1165, %v1161
    %v1478 = vpack.c.b16 %v1170, %v1166
    %v1479 = vpack.c.b16 %v1171, %v1167
    %v1480 = vpack.c.b16 %v1172, %v1168
    %v1481 = vpack.c.b16 %v1173, %v1169
    %v1482 = vpack.c.b16 %v1178, %v1174
    %v1483 = vpack.c.b16 %v1179, %v1175
    %v1484 = vpack.c.b16 %v1180, %v1176
    %v1485 = vpack.c.b16 %v1181, %v1177
    %v1486 = vpack.c.b16 %v1186, %v1182
    %v1487 = vpack.c.b16 %v1187, %v1183
    %v1488 = vpack.c.b16 %v1188, %v1184
    %v1489 = vpack.c.b16 %v1189, %v1185
    %v1490 = vpack.c.b16 %v1194, %v1190
    %v1491 = vpack.c.b16 %v1195, %v1191
    %v1492 = vpack.c.b16 %v1196, %v1192
    %v1493 = vpack.c.b16 %v1197, %v1193
    %v1494 = vpack.c.b16 %v1202, %v1198
    %v1495 = vpack.c.b16 %v1203, %v1199
    %v1496 = vpack.c.b16 %v1204, %v1200
    %v1497 = vpack.c.b16 %v1205, %v1201
    %v1498 = vpack.c.b16 %v1210, %v1206
    %v1499 = vpack.c.b16 %v1211, %v1207
    %v1500 = vpack.c.b16 %v1212, %v1208
    %v1501 = vpack.c.b16 %v1213, %v1209
    %v1502 = vpack.c.b16 %v1218, %v1214
    %v1503 = vpack.c.b16 %v1219, %v1215
    %v1504 = vpack.c.b16 %v1220, %v1216
    %v1505 = vpack.c.b16 %v1221, %v1217
    %v1506 = vpack.c.b16 %v1226, %v1222
    %v1507 = vpack.c.b16 %v1227, %v1223
    %v1508 = vpack.c.b16 %v1228, %v1224
    %v1509 = vpack.c.b16 %v1229, %v1225
    %v1510 = vpack.c.b16 %v1234, %v1230
    %v1511 = vpack.c.b16 %v1235, %v1231
    %v1512 = vpack.c.b16 %v1236, %v1232
    %v1513 = vpack.c.b16 %v1237, %v1233
    %v1514 = vpack.c.b16 %v1242, %v1238
    %v1515 = vpack.c.b16 %v1243, %v1239
    %v1516 = vpack.c.b16 %v1244, %v1240
    %v1517 = vpack.c.b16 %v1245, %v1241
    %v1518 = vpack.c.b16 %v1250, %v1246
    %v1519 = vpack.c.b16 %v1251, %v1247
    %v1520 = vpack.c.b16 %v1252, %v1248
    %v1521 = vpack.c.b16 %v1253, %v1249
    %v1522 = vpack.c.b16 %v1258, %v1254
    %v1523 = vpack.c.b16 %v1259, %v1255
    %v1524 = vpack.c.b16 %v1260, %v1256
    %v1525 = vpack.c.b16 %v1261, %v1257
    %v1526 = vpack.c.b16 %v1266, %v1262
    %v1527 = vpack.c.b16 %v1267, %v1263
    %v1528 = vpack.c.b16 %v1268, %v1264
    %v1529 = vpack.c.b16 %v1269, %v1265
    %v1530 = vpack.c.b16 %v1274, %v1270
    %v1531 = vpack.c.b16 %v1275, %v1271
    %v1532 = vpack.c.b16 %v1276, %v1272
    %v1533 = vpack.c.b16 %v1277, %v1273
    %1790 = vmatprep.subr.bf16.mxu0 %v1307
    %1791 = vmatpush1.bf16.msra.mxu0 %v1306
    %1792 = vmatprep.subr.bf16.mxu0 %v1303
    %1793 = vmatpush1.bf16.msra.mxu0 %v1302
    %1794 = vmatprep.subr.bf16.mxu0 %v1299
    %1795 = vmatpush1.bf16.msra.mxu0 %v1298
    %1796 = vmatprep.subr.bf16.mxu0 %v1295
    %1797 = vmatpush1.bf16.msra.mxu0 %v1294
    %1798 = vmatprep.subr.bf16.mxu0 %v1291
    %1799 = vmatpush1.bf16.msra.mxu0 %v1290
    %1800 = vmatprep.subr.bf16.mxu0 %v1287
    %1801 = vmatpush1.bf16.msra.mxu0 %v1286
    %1802 = vmatprep.subr.bf16.mxu0 %v1283
    %1803 = vmatpush1.bf16.msra.mxu0 %v1282
    %1804 = vmatprep.subr.bf16.mxu0 %v1279
    %1805 = vmatpush1.bf16.msra.mxu0 %v1278
    %1806 = vmatprep.subr.bf16.mxu0 %v1339
    %1807 = vmatpush2.bf16.msra.mxu0 %v1338
    %1808 = vmatprep.subr.bf16.mxu0 %v1335
    %1809 = vmatpush2.bf16.msra.mxu0 %v1334
    %1810 = vmatprep.subr.bf16.mxu0 %v1331
    %1811 = vmatpush2.bf16.msra.mxu0 %v1330
    %1812 = vmatprep.subr.bf16.mxu0 %v1327
    %1813 = vmatpush2.bf16.msra.mxu0 %v1326
    %1814 = vmatprep.subr.bf16.mxu0 %v1323
    %1815 = vmatpush2.bf16.msra.mxu0 %v1322
    %1816 = vmatprep.subr.bf16.mxu0 %v1319
    %1817 = vmatpush2.bf16.msra.mxu0 %v1318
    %1818 = vmatprep.subr.bf16.mxu0 %v1315
    %1819 = vmatpush2.bf16.msra.mxu0 %v1314
    %1820 = vmatprep.subr.bf16.mxu0 %v1311
    %1821 = vmatpush2.bf16.msra.mxu0 %v1310
    %1822 = vmatprep.mubr.bf16.mxu0 %v490
    %1823 = vmatmul.mubr.bf16.gmra.mxu0 %v476
    %v1824 = vpop.f32.mrf.mxu0
    %v1825 = vadd.f32 0.0, %v1824
    %v1826 = vpop.f32.mrf.mxu0
    %v1827 = vadd.f32 0.0, %v1826
    %v1828 = vpop.f32.mrf.mxu0
    %v1829 = vpop.f32.mrf.mxu0
    %1830 = vdwg.mxu0
    %1831 = vmatprep.subr.bf16.mxu0 %v1371
    %1832 = vmatpush1.bf16.msra.mxu0 %v1370
    %1833 = vmatprep.subr.bf16.mxu0 %v1367
    %1834 = vmatpush1.bf16.msra.mxu0 %v1366
    %1835 = vmatprep.subr.bf16.mxu0 %v1363
    %1836 = vmatpush1.bf16.msra.mxu0 %v1362
    %1837 = vmatprep.subr.bf16.mxu0 %v1359
    %1838 = vmatpush1.bf16.msra.mxu0 %v1358
    %1839 = vmatprep.subr.bf16.mxu0 %v1355
    %1840 = vmatpush1.bf16.msra.mxu0 %v1354
    %1841 = vmatprep.subr.bf16.mxu0 %v1351
    %1842 = vmatpush1.bf16.msra.mxu0 %v1350
    %1843 = vmatprep.subr.bf16.mxu0 %v1347
    %1844 = vmatpush1.bf16.msra.mxu0 %v1346
    %1845 = vmatprep.subr.bf16.mxu0 %v1343
    %1846 = vmatpush1.bf16.msra.mxu0 %v1342
    %1847 = vmatprep.subr.bf16.mxu0 %v1403
    %1848 = vmatpush2.bf16.msra.mxu0 %v1402
    %1849 = vmatprep.subr.bf16.mxu0 %v1399
    %1850 = vmatpush2.bf16.msra.mxu0 %v1398
    %1851 = vmatprep.subr.bf16.mxu0 %v1395
    %1852 = vmatpush2.bf16.msra.mxu0 %v1394
    %1853 = vmatprep.subr.bf16.mxu0 %v1391
    %1854 = vmatpush2.bf16.msra.mxu0 %v1390
    %1855 = vmatprep.subr.bf16.mxu0 %v1387
    %1856 = vmatpush2.bf16.msra.mxu0 %v1386
    %1857 = vmatprep.subr.bf16.mxu0 %v1383
    %1858 = vmatpush2.bf16.msra.mxu0 %v1382
    %1859 = vmatprep.subr.bf16.mxu0 %v1379
    %1860 = vmatpush2.bf16.msra.mxu0 %v1378
    %1861 = vmatprep.subr.bf16.mxu0 %v1375
    %1862 = vmatpush2.bf16.msra.mxu0 %v1374
    %1863 = vmatprep.mubr.bf16.mxu0 %v500
    %1864 = vmatmul.mubr.bf16.gmra.mxu0 %v498
    %v1865 = vpop.f32.mrf.mxu0
    %v1866 = vadd.f32 %v1825, %v1865
    %v1867 = vpop.f32.mrf.mxu0
    %v1868 = vadd.f32 %v1827, %v1867
    %v1869 = vpop.f32.mrf.mxu0
    %v1870 = vpop.f32.mrf.mxu0
    %1871 = vdwg.mxu0
    %1872 = vmatprep.subr.bf16.mxu0 %v1435
    %1873 = vmatpush1.bf16.msra.mxu0 %v1434
    %1874 = vmatprep.subr.bf16.mxu0 %v1431
    %1875 = vmatpush1.bf16.msra.mxu0 %v1430
    %1876 = vmatprep.subr.bf16.mxu0 %v1427
    %1877 = vmatpush1.bf16.msra.mxu0 %v1426
    %1878 = vmatprep.subr.bf16.mxu0 %v1423
    %1879 = vmatpush1.bf16.msra.mxu0 %v1422
    %1880 = vmatprep.subr.bf16.mxu0 %v1419
    %1881 = vmatpush1.bf16.msra.mxu0 %v1418
    %1882 = vmatprep.subr.bf16.mxu0 %v1415
    %1883 = vmatpush1.bf16.msra.mxu0 %v1414
    %1884 = vmatprep.subr.bf16.mxu0 %v1411
    %1885 = vmatpush1.bf16.msra.mxu0 %v1410
    %1886 = vmatprep.subr.bf16.mxu0 %v1407
    %1887 = vmatpush1.bf16.msra.mxu0 %v1406
    %1888 = vmatprep.subr.bf16.mxu0 %v1467
    %1889 = vmatpush2.bf16.msra.mxu0 %v1466
    %1890 = vmatprep.subr.bf16.mxu0 %v1463
    %1891 = vmatpush2.bf16.msra.mxu0 %v1462
    %1892 = vmatprep.subr.bf16.mxu0 %v1459
    %1893 = vmatpush2.bf16.msra.mxu0 %v1458
    %1894 = vmatprep.subr.bf16.mxu0 %v1455
    %1895 = vmatpush2.bf16.msra.mxu0 %v1454
    %1896 = vmatprep.subr.bf16.mxu0 %v1451
    %1897 = vmatpush2.bf16.msra.mxu0 %v1450
    %1898 = vmatprep.subr.bf16.mxu0 %v1447
    %1899 = vmatpush2.bf16.msra.mxu0 %v1446
    %1900 = vmatprep.subr.bf16.mxu0 %v1443
    %1901 = vmatpush2.bf16.msra.mxu0 %v1442
    %1902 = vmatprep.subr.bf16.mxu0 %v1439
    %1903 = vmatpush2.bf16.msra.mxu0 %v1438
    %1904 = vmatprep.mubr.bf16.mxu0 %v497
    %1905 = vmatmul.mubr.bf16.gmra.mxu0 %v483
    %v1906 = vpop.f32.mrf.mxu0
    %v1907 = vadd.f32 %v1866, %v1906
    %v1908 = vpop.f32.mrf.mxu0
    %v1909 = vadd.f32 %v1868, %v1908
    %v1910 = vpop.f32.mrf.mxu0
    %v1911 = vpop.f32.mrf.mxu0
    %1912 = vdwg.mxu0
    %1913 = vmatprep.subr.bf16.mxu0 %v1499
    %1914 = vmatpush1.bf16.msra.mxu0 %v1498
    %1915 = vmatprep.subr.bf16.mxu0 %v1495
    %1916 = vmatpush1.bf16.msra.mxu0 %v1494
    %1917 = vmatprep.subr.bf16.mxu0 %v1491
    %1918 = vmatpush1.bf16.msra.mxu0 %v1490
    %1919 = vmatprep.subr.bf16.mxu0 %v1487
    %1920 = vmatpush1.bf16.msra.mxu0 %v1486
    %1921 = vmatprep.subr.bf16.mxu0 %v1483
    %1922 = vmatpush1.bf16.msra.mxu0 %v1482
    %1923 = vmatprep.subr.bf16.mxu0 %v1479
    %1924 = vmatpush1.bf16.msra.mxu0 %v1478
    %1925 = vmatprep.subr.bf16.mxu0 %v1475
    %1926 = vmatpush1.bf16.msra.mxu0 %v1474
    %1927 = vmatprep.subr.bf16.mxu0 %v1471
    %1928 = vmatpush1.bf16.msra.mxu0 %v1470
    %1929 = vmatprep.subr.bf16.mxu0 %v1531
    %1930 = vmatpush2.bf16.msra.mxu0 %v1530
    %1931 = vmatprep.subr.bf16.mxu0 %v1527
    %1932 = vmatpush2.bf16.msra.mxu0 %v1526
    %1933 = vmatprep.subr.bf16.mxu0 %v1523
    %1934 = vmatpush2.bf16.msra.mxu0 %v1522
    %1935 = vmatprep.subr.bf16.mxu0 %v1519
    %1936 = vmatpush2.bf16.msra.mxu0 %v1518
    %1937 = vmatprep.subr.bf16.mxu0 %v1515
    %1938 = vmatpush2.bf16.msra.mxu0 %v1514
    %1939 = vmatprep.subr.bf16.mxu0 %v1511
    %1940 = vmatpush2.bf16.msra.mxu0 %v1510
    %1941 = vmatprep.subr.bf16.mxu0 %v1507
    %1942 = vmatpush2.bf16.msra.mxu0 %v1506
    %1943 = vmatprep.subr.bf16.mxu0 %v1503
    %1944 = vmatpush2.bf16.msra.mxu0 %v1502
    %1945 = vmatprep.mubr.bf16.mxu0 %v501
    %1946 = vmatmul.mubr.bf16.gmra.mxu0 %v499
    %v1947 = vpop.f32.mrf.mxu0
    %v1948 = vadd.f32 %v1907, %v1947
    %v1949 = vpop.f32.mrf.mxu0
    %v1950 = vadd.f32 %v1909, %v1949
    %v1951 = vpop.f32.mrf.mxu0
    %v1952 = vpop.f32.mrf.mxu0
    %1953 = vdwg.mxu0
    %1954 = vmatprep.subr.bf16.mxu0 %v1309
    %1955 = vmatpush1.bf16.msra.mxu0 %v1308
    %1956 = vmatprep.subr.bf16.mxu0 %v1305
    %1957 = vmatpush1.bf16.msra.mxu0 %v1304
    %1958 = vmatprep.subr.bf16.mxu0 %v1301
    %1959 = vmatpush1.bf16.msra.mxu0 %v1300
    %1960 = vmatprep.subr.bf16.mxu0 %v1297
    %1961 = vmatpush1.bf16.msra.mxu0 %v1296
    %1962 = vmatprep.subr.bf16.mxu0 %v1293
    %1963 = vmatpush1.bf16.msra.mxu0 %v1292
    %1964 = vmatprep.subr.bf16.mxu0 %v1289
    %1965 = vmatpush1.bf16.msra.mxu0 %v1288
    %1966 = vmatprep.subr.bf16.mxu0 %v1285
    %1967 = vmatpush1.bf16.msra.mxu0 %v1284
    %1968 = vmatprep.subr.bf16.mxu0 %v1281
    %1969 = vmatpush1.bf16.msra.mxu0 %v1280
    %1970 = vmatprep.subr.bf16.mxu0 %v1341
    %1971 = vmatpush2.bf16.msra.mxu0 %v1340
    %1972 = vmatprep.subr.bf16.mxu0 %v1337
    %1973 = vmatpush2.bf16.msra.mxu0 %v1336
    %1974 = vmatprep.subr.bf16.mxu0 %v1333
    %1975 = vmatpush2.bf16.msra.mxu0 %v1332
    %1976 = vmatprep.subr.bf16.mxu0 %v1329
    %1977 = vmatpush2.bf16.msra.mxu0 %v1328
    %1978 = vmatprep.subr.bf16.mxu0 %v1325
    %1979 = vmatpush2.bf16.msra.mxu0 %v1324
    %1980 = vmatprep.subr.bf16.mxu0 %v1321
    %1981 = vmatpush2.bf16.msra.mxu0 %v1320
    %1982 = vmatprep.subr.bf16.mxu0 %v1317
    %1983 = vmatpush2.bf16.msra.mxu0 %v1316
    %1984 = vmatprep.subr.bf16.mxu0 %v1313
    %1985 = vmatpush2.bf16.msra.mxu0 %v1312
    %1986 = vmatprep.mubr.bf16.mxu0 %v490
    %1987 = vmatmul.mubr.bf16.gmra.mxu0 %v476
    %v1988 = vpop.f32.mrf.mxu0
    %v1989 = vadd.f32 0.0, %v1988
    %v1990 = vpop.f32.mrf.mxu0
    %v1991 = vadd.f32 0.0, %v1990
    %v1992 = vpop.f32.mrf.mxu0
    %v1993 = vpop.f32.mrf.mxu0
    %1994 = vdwg.mxu0
    %1995 = vmatprep.subr.bf16.mxu0 %v1373
    %1996 = vmatpush1.bf16.msra.mxu0 %v1372
    %1997 = vmatprep.subr.bf16.mxu0 %v1369
    %1998 = vmatpush1.bf16.msra.mxu0 %v1368
    %1999 = vmatprep.subr.bf16.mxu0 %v1365
    %2000 = vmatpush1.bf16.msra.mxu0 %v1364
    %2001 = vmatprep.subr.bf16.mxu0 %v1361
    %2002 = vmatpush1.bf16.msra.mxu0 %v1360
    %2003 = vmatprep.subr.bf16.mxu0 %v1357
    %2004 = vmatpush1.bf16.msra.mxu0 %v1356
    %2005 = vmatprep.subr.bf16.mxu0 %v1353
    %2006 = vmatpush1.bf16.msra.mxu0 %v1352
    %2007 = vmatprep.subr.bf16.mxu0 %v1349
    %2008 = vmatpush1.bf16.msra.mxu0 %v1348
    %2009 = vmatprep.subr.bf16.mxu0 %v1345
    %2010 = vmatpush1.bf16.msra.mxu0 %v1344
    %2011 = vmatprep.subr.bf16.mxu0 %v1405
    %2012 = vmatpush2.bf16.msra.mxu0 %v1404
    %2013 = vmatprep.subr.bf16.mxu0 %v1401
    %2014 = vmatpush2.bf16.msra.mxu0 %v1400
    %2015 = vmatprep.subr.bf16.mxu0 %v1397
    %2016 = vmatpush2.bf16.msra.mxu0 %v1396
    %2017 = vmatprep.subr.bf16.mxu0 %v1393
    %2018 = vmatpush2.bf16.msra.mxu0 %v1392
    %2019 = vmatprep.subr.bf16.mxu0 %v1389
    %2020 = vmatpush2.bf16.msra.mxu0 %v1388
    %2021 = vmatprep.subr.bf16.mxu0 %v1385
    %2022 = vmatpush2.bf16.msra.mxu0 %v1384
    %2023 = vmatprep.subr.bf16.mxu0 %v1381
    %2024 = vmatpush2.bf16.msra.mxu0 %v1380
    %2025 = vmatprep.subr.bf16.mxu0 %v1377
    %2026 = vmatpush2.bf16.msra.mxu0 %v1376
    %2027 = vmatprep.mubr.bf16.mxu0 %v500
    %2028 = vmatmul.mubr.bf16.gmra.mxu0 %v498
    %v2029 = vpop.f32.mrf.mxu0
    %v2030 = vadd.f32 %v1989, %v2029
    %v2031 = vpop.f32.mrf.mxu0
    %v2032 = vadd.f32 %v1991, %v2031
    %v2033 = vpop.f32.mrf.mxu0
    %v2034 = vpop.f32.mrf.mxu0
    %2035 = vdwg.mxu0
    %2036 = vmatprep.subr.bf16.mxu0 %v1437
    %2037 = vmatpush1.bf16.msra.mxu0 %v1436
    %2038 = vmatprep.subr.bf16.mxu0 %v1433
    %2039 = vmatpush1.bf16.msra.mxu0 %v1432
    %2040 = vmatprep.subr.bf16.mxu0 %v1429
    %2041 = vmatpush1.bf16.msra.mxu0 %v1428
    %2042 = vmatprep.subr.bf16.mxu0 %v1425
    %2043 = vmatpush1.bf16.msra.mxu0 %v1424
    %2044 = vmatprep.subr.bf16.mxu0 %v1421
    %2045 = vmatpush1.bf16.msra.mxu0 %v1420
    %2046 = vmatprep.subr.bf16.mxu0 %v1417
    %2047 = vmatpush1.bf16.msra.mxu0 %v1416
    %2048 = vmatprep.subr.bf16.mxu0 %v1413
    %2049 = vmatpush1.bf16.msra.mxu0 %v1412
    %2050 = vmatprep.subr.bf16.mxu0 %v1409
    %2051 = vmatpush1.bf16.msra.mxu0 %v1408
    %2052 = vmatprep.subr.bf16.mxu0 %v1469
    %2053 = vmatpush2.bf16.msra.mxu0 %v1468
    %2054 = vmatprep.subr.bf16.mxu0 %v1465
    %2055 = vmatpush2.bf16.msra.mxu0 %v1464
    %2056 = vmatprep.subr.bf16.mxu0 %v1461
    %2057 = vmatpush2.bf16.msra.mxu0 %v1460
    %2058 = vmatprep.subr.bf16.mxu0 %v1457
    %2059 = vmatpush2.bf16.msra.mxu0 %v1456
    %2060 = vmatprep.subr.bf16.mxu0 %v1453
    %2061 = vmatpush2.bf16.msra.mxu0 %v1452
    %2062 = vmatprep.subr.bf16.mxu0 %v1449
    %2063 = vmatpush2.bf16.msra.mxu0 %v1448
    %2064 = vmatprep.subr.bf16.mxu0 %v1445
    %2065 = vmatpush2.bf16.msra.mxu0 %v1444
    %2066 = vmatprep.subr.bf16.mxu0 %v1441
    %2067 = vmatpush2.bf16.msra.mxu0 %v1440
    %2068 = vmatprep.mubr.bf16.mxu0 %v497
    %2069 = vmatmul.mubr.bf16.gmra.mxu0 %v483
    %v2070 = vpop.f32.mrf.mxu0
    %v2071 = vadd.f32 %v2030, %v2070
    %v2072 = vpop.f32.mrf.mxu0
    %v2073 = vadd.f32 %v2032, %v2072
    %v2074 = vpop.f32.mrf.mxu0
    %v2075 = vpop.f32.mrf.mxu0
    %2076 = vdwg.mxu0
    %2077 = vmatprep.subr.bf16.mxu0 %v1501
    %2078 = vmatpush1.bf16.msra.mxu0 %v1500
    %2079 = vmatprep.subr.bf16.mxu0 %v1497
    %2080 = vmatpush1.bf16.msra.mxu0 %v1496
    %2081 = vmatprep.subr.bf16.mxu0 %v1493
    %2082 = vmatpush1.bf16.msra.mxu0 %v1492
    %2083 = vmatprep.subr.bf16.mxu0 %v1489
    %2084 = vmatpush1.bf16.msra.mxu0 %v1488
    %2085 = vmatprep.subr.bf16.mxu0 %v1485
    %2086 = vmatpush1.bf16.msra.mxu0 %v1484
    %2087 = vmatprep.subr.bf16.mxu0 %v1481
    %2088 = vmatpush1.bf16.msra.mxu0 %v1480
    %2089 = vmatprep.subr.bf16.mxu0 %v1477
    %2090 = vmatpush1.bf16.msra.mxu0 %v1476
    %2091 = vmatprep.subr.bf16.mxu0 %v1473
    %2092 = vmatpush1.bf16.msra.mxu0 %v1472
    %2093 = vmatprep.subr.bf16.mxu0 %v1533
    %2094 = vmatpush2.bf16.msra.mxu0 %v1532
    %2095 = vmatprep.subr.bf16.mxu0 %v1529
    %2096 = vmatpush2.bf16.msra.mxu0 %v1528
    %2097 = vmatprep.subr.bf16.mxu0 %v1525
    %2098 = vmatpush2.bf16.msra.mxu0 %v1524
    %2099 = vmatprep.subr.bf16.mxu0 %v1521
    %2100 = vmatpush2.bf16.msra.mxu0 %v1520
    %2101 = vmatprep.subr.bf16.mxu0 %v1517
    %2102 = vmatpush2.bf16.msra.mxu0 %v1516
    %2103 = vmatprep.subr.bf16.mxu0 %v1513
    %2104 = vmatpush2.bf16.msra.mxu0 %v1512
    %2105 = vmatprep.subr.bf16.mxu0 %v1509
    %2106 = vmatpush2.bf16.msra.mxu0 %v1508
    %2107 = vmatprep.subr.bf16.mxu0 %v1505
    %2108 = vmatpush2.bf16.msra.mxu0 %v1504
    %2109 = vmatprep.mubr.bf16.mxu0 %v501
    %2110 = vmatmul.mubr.bf16.gmra.mxu0 %v499
    %v2111 = vpop.f32.mrf.mxu0
    %v2112 = vadd.f32 %v2071, %v2111
    %v2113 = vpop.f32.mrf.mxu0
    %v2114 = vadd.f32 %v2073, %v2113
    %v2115 = vpop.f32.mrf.mxu0
    %v2116 = vpop.f32.mrf.mxu0
    %2117 = vdwg.mxu0
    %vm2118 = vcmask 1041408
    %v2119 = vsel %vm2118, %v1948, 0.0
    %v2120 = vrot.slane %v2119, 4
    %v2121 = vadd.f32 %v2119, %v2120
    %v2122 = vrot.slane %v2121, 2
    %v2123 = vadd.f32 %v2121, %v2122
    %v2124 = vrot.slane %v2123, 1
    %v2125 = vadd.f32 %v2123, %v2124
    %v2126 = vsel %vm2118, %v1950, 0.0
    %v2127 = vrot.slane %v2126, 4
    %v2128 = vadd.f32 %v2126, %v2127
    %v2129 = vrot.slane %v2128, 2
    %v2130 = vadd.f32 %v2128, %v2129
    %v2131 = vrot.slane %v2130, 1
    %v2132 = vadd.f32 %v2130, %v2131
    %v2133 = vsel %vm2118, %v2112, 0.0
    %v2134 = vrot.slane %v2133, 4
    %v2135 = vadd.f32 %v2133, %v2134
    %v2136 = vrot.slane %v2135, 2
    %v2137 = vadd.f32 %v2135, %v2136
    %v2138 = vrot.slane %v2137, 1
    %v2139 = vadd.f32 %v2137, %v2138
    %v2140 = vsel %vm2118, %v2114, 0.0
    %v2141 = vrot.slane %v2140, 4
    %v2142 = vadd.f32 %v2140, %v2141
    %v2143 = vrot.slane %v2142, 2
    %v2144 = vadd.f32 %v2142, %v2143
    %v2145 = vrot.slane %v2144, 1
    %v2146 = vadd.f32 %v2144, %v2145
    %v2147 = vmul.f32 %v1948, %v1948
    %v2148 = vmul.f32 %v1950, %v1950
    %v2149 = vmul.f32 %v2112, %v2112
    %v2150 = vmul.f32 %v2114, %v2114
    %v2151 = vsel %vm2118, %v2147, 0.0
    %v2152 = vrot.slane %v2151, 4
    %v2153 = vadd.f32 %v2151, %v2152
    %v2154 = vrot.slane %v2153, 2
    %v2155 = vadd.f32 %v2153, %v2154
    %v2156 = vrot.slane %v2155, 1
    %v2157 = vadd.f32 %v2155, %v2156
    %v2158 = vsel %vm2118, %v2148, 0.0
    %v2159 = vrot.slane %v2158, 4
    %v2160 = vadd.f32 %v2158, %v2159
    %v2161 = vrot.slane %v2160, 2
    %v2162 = vadd.f32 %v2160, %v2161
    %v2163 = vrot.slane %v2162, 1
    %v2164 = vadd.f32 %v2162, %v2163
    %v2165 = vsel %vm2118, %v2149, 0.0
    %v2166 = vrot.slane %v2165, 4
    %v2167 = vadd.f32 %v2165, %v2166
    %v2168 = vrot.slane %v2167, 2
    %v2169 = vadd.f32 %v2167, %v2168
    %v2170 = vrot.slane %v2169, 1
    %v2171 = vadd.f32 %v2169, %v2170
    %v2172 = vsel %vm2118, %v2150, 0.0
    %v2173 = vrot.slane %v2172, 4
    %v2174 = vadd.f32 %v2172, %v2173
    %v2175 = vrot.slane %v2174, 2
    %v2176 = vadd.f32 %v2174, %v2175
    %v2177 = vrot.slane %v2176, 1
    %v2178 = vadd.f32 %v2176, %v2177
    %vm2179 = vcmask 1040384
    %v2180 = vsel %vm2179, %v2125, %v2157
    %v2181 = vsel %vm2179, %v2132, %v2164
    %v2182 = vsel %vm2179, %v2139, %v2171
    %v2183 = vsel %vm2179, %v2146, %v2178
    %v2184 = vld [vmem:[%s2] sm:$0xff]
    %v2185 = vld [vmem:[%s2 + $0x8] sm:$0xff]
    %v2186 = vld [vmem:[%s2 + $0x10] sm:$0xff]
    %v2187 = vld [vmem:[%s2 + $0x18] sm:$0xff]
    %v2188 = vld [vmem:[%s2 + $0x20] sm:$0xff]
    %v2189 = vld [vmem:[%s2 + $0x28] sm:$0xff]
    %v2190 = vld [vmem:[%s2 + $0x30] sm:$0xff]
    %v2191 = vld [vmem:[%s2 + $0x38] sm:$0xff]
    %v2192 = vld [vmem:[%s2 + $0x40] sm:$0xff]
    %v2193 = vld [vmem:[%s2 + $0x48] sm:$0xff]
    %v2194 = vld [vmem:[%s2 + $0x50] sm:$0xff]
    %v2195 = vld [vmem:[%s2 + $0x58] sm:$0xff]
    %v2196 = vld [vmem:[%s2 + $0x60] sm:$0xff]
    %v2197 = vld [vmem:[%s2 + $0x68] sm:$0xff]
    %v2198 = vld [vmem:[%s2 + $0x70] sm:$0xff]
    %v2199 = vld [vmem:[%s2 + $0x78] sm:$0xff]
    %v2200 = vld [vmem:[%s2 + $0x80] sm:$0xff]
    %v2201 = vld [vmem:[%s2 + $0x88] sm:$0xff]
    %v2202 = vld [vmem:[%s2 + $0x90] sm:$0xff]
    %v2203 = vld [vmem:[%s2 + $0x98] sm:$0xff]
    %v2204 = vld [vmem:[%s2 + $0xa0] sm:$0xff]
    %v2205 = vld [vmem:[%s2 + $0xa8] sm:$0xff]
    %v2206 = vld [vmem:[%s2 + $0xb0] sm:$0xff]
    %v2207 = vld [vmem:[%s2 + $0xb8] sm:$0xff]
    %v2208 = vld [vmem:[%s2 + $0xc0] sm:$0xff]
    %v2209 = vld [vmem:[%s2 + $0xc8] sm:$0xff]
    %v2210 = vld [vmem:[%s2 + $0xd0] sm:$0xff]
    %v2211 = vld [vmem:[%s2 + $0xd8] sm:$0xff]
    %v2212 = vld [vmem:[%s2 + $0xe0] sm:$0xff]
    %v2213 = vld [vmem:[%s2 + $0xe8] sm:$0xff]
    %v2214 = vld [vmem:[%s2 + $0xf0] sm:$0xff]
    %v2215 = vld [vmem:[%s2 + $0xf8] sm:$0xff]
    %v2216 = vld [vmem:[%s2 + $0x100] sm:$0xff]
    %v2217 = vld [vmem:[%s2 + $0x108] sm:$0xff]
    %v2218 = vld [vmem:[%s2 + $0x110] sm:$0xff]
    %v2219 = vld [vmem:[%s2 + $0x118] sm:$0xff]
    %v2220 = vld [vmem:[%s2 + $0x120] sm:$0xff]
    %v2221 = vld [vmem:[%s2 + $0x128] sm:$0xff]
    %v2222 = vld [vmem:[%s2 + $0x130] sm:$0xff]
    %v2223 = vld [vmem:[%s2 + $0x138] sm:$0xff]
    %v2224 = vld [vmem:[%s2 + $0x140] sm:$0xff]
    %v2225 = vld [vmem:[%s2 + $0x148] sm:$0xff]
    %v2226 = vld [vmem:[%s2 + $0x150] sm:$0xff]
    %v2227 = vld [vmem:[%s2 + $0x158] sm:$0xff]
    %v2228 = vld [vmem:[%s2 + $0x160] sm:$0xff]
    %v2229 = vld [vmem:[%s2 + $0x168] sm:$0xff]
    %v2230 = vld [vmem:[%s2 + $0x170] sm:$0xff]
    %v2231 = vld [vmem:[%s2 + $0x178] sm:$0xff]
    %v2232 = vld [vmem:[%s2 + $0x180] sm:$0xff]
    %v2233 = vld [vmem:[%s2 + $0x188] sm:$0xff]
    %v2234 = vld [vmem:[%s2 + $0x190] sm:$0xff]
    %v2235 = vld [vmem:[%s2 + $0x198] sm:$0xff]
    %v2236 = vld [vmem:[%s2 + $0x1a0] sm:$0xff]
    %v2237 = vld [vmem:[%s2 + $0x1a8] sm:$0xff]
    %v2238 = vld [vmem:[%s2 + $0x1b0] sm:$0xff]
    %v2239 = vld [vmem:[%s2 + $0x1b8] sm:$0xff]
    %v2240 = vld [vmem:[%s2 + $0x1c0] sm:$0xff]
    %v2241 = vld [vmem:[%s2 + $0x1c8] sm:$0xff]
    %v2242 = vld [vmem:[%s2 + $0x1d0] sm:$0xff]
    %v2243 = vld [vmem:[%s2 + $0x1d8] sm:$0xff]
    %v2244 = vld [vmem:[%s2 + $0x1e0] sm:$0xff]
    %v2245 = vld [vmem:[%s2 + $0x1e8] sm:$0xff]
    %v2246 = vld [vmem:[%s2 + $0x1f0] sm:$0xff]
    %v2247 = vld [vmem:[%s2 + $0x1f8] sm:$0xff]
    %2248 = vmatprep.subr.mxu0 0.0
    %2249 = vmatpush1.msra.mxu0 %v2199
    %2250 = vmatprep.subr.mxu0 0.0
    %2251 = vmatpush1.msra.mxu0 %v2198
    %2252 = vmatprep.subr.mxu0 0.0
    %2253 = vmatpush1.msra.mxu0 %v2197
    %2254 = vmatprep.subr.mxu0 0.0
    %2255 = vmatpush1.msra.mxu0 %v2196
    %2256 = vmatprep.subr.mxu0 0.0
    %2257 = vmatpush1.msra.mxu0 %v2195
    %2258 = vmatprep.subr.mxu0 0.0
    %2259 = vmatpush1.msra.mxu0 %v2194
    %2260 = vmatprep.subr.mxu0 0.0
    %2261 = vmatpush1.msra.mxu0 %v2193
    %2262 = vmatprep.subr.mxu0 0.0
    %2263 = vmatpush1.msra.mxu0 %v2192
    %2264 = vmatprep.subr.mxu0 0.0
    %2265 = vmatpush1.msra.mxu0 %v2191
    %2266 = vmatprep.subr.mxu0 0.0
    %2267 = vmatpush1.msra.mxu0 %v2190
    %2268 = vmatprep.subr.mxu0 0.0
    %2269 = vmatpush1.msra.mxu0 %v2189
    %2270 = vmatprep.subr.mxu0 0.0
    %2271 = vmatpush1.msra.mxu0 %v2188
    %2272 = vmatprep.subr.mxu0 0.0
    %2273 = vmatpush1.msra.mxu0 %v2187
    %2274 = vmatprep.subr.mxu0 0.0
    %2275 = vmatpush1.msra.mxu0 %v2186
    %2276 = vmatprep.subr.mxu0 0.0
    %2277 = vmatpush1.msra.mxu0 %v2185
    %2278 = vmatprep.subr.mxu0 0.0
    %2279 = vmatpush1.msra.mxu0 %v2184
    %2280 = vmatprep.subr.mxu0 0.0
    %2281 = vmatpush2.msra.mxu0 %v2215
    %2282 = vmatprep.subr.mxu0 0.0
    %2283 = vmatpush2.msra.mxu0 %v2214
    %2284 = vmatprep.subr.mxu0 0.0
    %2285 = vmatpush2.msra.mxu0 %v2213
    %2286 = vmatprep.subr.mxu0 0.0
    %2287 = vmatpush2.msra.mxu0 %v2212
    %2288 = vmatprep.subr.mxu0 0.0
    %2289 = vmatpush2.msra.mxu0 %v2211
    %2290 = vmatprep.subr.mxu0 0.0
    %2291 = vmatpush2.msra.mxu0 %v2210
    %2292 = vmatprep.subr.mxu0 0.0
    %2293 = vmatpush2.msra.mxu0 %v2209
    %2294 = vmatprep.subr.mxu0 0.0
    %2295 = vmatpush2.msra.mxu0 %v2208
    %2296 = vmatprep.subr.mxu0 0.0
    %2297 = vmatpush2.msra.mxu0 %v2207
    %2298 = vmatprep.subr.mxu0 0.0
    %2299 = vmatpush2.msra.mxu0 %v2206
    %2300 = vmatprep.subr.mxu0 0.0
    %2301 = vmatpush2.msra.mxu0 %v2205
    %2302 = vmatprep.subr.mxu0 0.0
    %2303 = vmatpush2.msra.mxu0 %v2204
    %2304 = vmatprep.subr.mxu0 0.0
    %2305 = vmatpush2.msra.mxu0 %v2203
    %2306 = vmatprep.subr.mxu0 0.0
    %2307 = vmatpush2.msra.mxu0 %v2202
    %2308 = vmatprep.subr.mxu0 0.0
    %2309 = vmatpush2.msra.mxu0 %v2201
    %2310 = vmatprep.subr.mxu0 0.0
    %2311 = vmatpush2.msra.mxu0 %v2200
    %2312 = vmatprep.mubr.f32.mxu0 %v2181
    %2313 = vmatmul.mubr.f32.gmra.mxu0 %v2180
    %v2314 = vpop.f32.mrf.mxu0
    %v2315 = vadd.f32 0.0, %v2314
    %v2316 = vpop.f32.mrf.mxu0
    %2317 = vdwg.mxu0
    %2318 = vmatprep.subr.mxu0 0.0
    %2319 = vmatpush1.msra.mxu0 %v2231
    %2320 = vmatprep.subr.mxu0 0.0
    %2321 = vmatpush1.msra.mxu0 %v2230
    %2322 = vmatprep.subr.mxu0 0.0
    %2323 = vmatpush1.msra.mxu0 %v2229
    %2324 = vmatprep.subr.mxu0 0.0
    %2325 = vmatpush1.msra.mxu0 %v2228
    %2326 = vmatprep.subr.mxu0 0.0
    %2327 = vmatpush1.msra.mxu0 %v2227
    %2328 = vmatprep.subr.mxu0 0.0
    %2329 = vmatpush1.msra.mxu0 %v2226
    %2330 = vmatprep.subr.mxu0 0.0
    %2331 = vmatpush1.msra.mxu0 %v2225
    %2332 = vmatprep.subr.mxu0 0.0
    %2333 = vmatpush1.msra.mxu0 %v2224
    %2334 = vmatprep.subr.mxu0 0.0
    %2335 = vmatpush1.msra.mxu0 %v2223
    %2336 = vmatprep.subr.mxu0 0.0
    %2337 = vmatpush1.msra.mxu0 %v2222
    %2338 = vmatprep.subr.mxu0 0.0
    %2339 = vmatpush1.msra.mxu0 %v2221
    %2340 = vmatprep.subr.mxu0 0.0
    %2341 = vmatpush1.msra.mxu0 %v2220
    %2342 = vmatprep.subr.mxu0 0.0
    %2343 = vmatpush1.msra.mxu0 %v2219
    %2344 = vmatprep.subr.mxu0 0.0
    %2345 = vmatpush1.msra.mxu0 %v2218
    %2346 = vmatprep.subr.mxu0 0.0
    %2347 = vmatpush1.msra.mxu0 %v2217
    %2348 = vmatprep.subr.mxu0 0.0
    %2349 = vmatpush1.msra.mxu0 %v2216
    %2350 = vmatprep.subr.mxu0 0.0
    %2351 = vmatpush2.msra.mxu0 %v2247
    %2352 = vmatprep.subr.mxu0 0.0
    %2353 = vmatpush2.msra.mxu0 %v2246
    %2354 = vmatprep.subr.mxu0 0.0
    %2355 = vmatpush2.msra.mxu0 %v2245
    %2356 = vmatprep.subr.mxu0 0.0
    %2357 = vmatpush2.msra.mxu0 %v2244
    %2358 = vmatprep.subr.mxu0 0.0
    %2359 = vmatpush2.msra.mxu0 %v2243
    %2360 = vmatprep.subr.mxu0 0.0
    %2361 = vmatpush2.msra.mxu0 %v2242
    %2362 = vmatprep.subr.mxu0 0.0
    %2363 = vmatpush2.msra.mxu0 %v2241
    %2364 = vmatprep.subr.mxu0 0.0
    %2365 = vmatpush2.msra.mxu0 %v2240
    %2366 = vmatprep.subr.mxu0 0.0
    %2367 = vmatpush2.msra.mxu0 %v2239
    %2368 = vmatprep.subr.mxu0 0.0
    %2369 = vmatpush2.msra.mxu0 %v2238
    %2370 = vmatprep.subr.mxu0 0.0
    %2371 = vmatpush2.msra.mxu0 %v2237
    %2372 = vmatprep.subr.mxu0 0.0
    %2373 = vmatpush2.msra.mxu0 %v2236
    %2374 = vmatprep.subr.mxu0 0.0
    %2375 = vmatpush2.msra.mxu0 %v2235
    %2376 = vmatprep.subr.mxu0 0.0
    %2377 = vmatpush2.msra.mxu0 %v2234
    %2378 = vmatprep.subr.mxu0 0.0
    %2379 = vmatpush2.msra.mxu0 %v2233
    %2380 = vmatprep.subr.mxu0 0.0
    %2381 = vmatpush2.msra.mxu0 %v2232
    %2382 = vmatprep.mubr.f32.mxu0 %v2183
    %2383 = vmatmul.mubr.f32.gmra.mxu0 %v2182
    %v2384 = vpop.f32.mrf.mxu0
    %v2385 = vadd.f32 %v2315, %v2384
    %v2386 = vpop.f32.mrf.mxu0
    %2387 = vdwg.mxu0
    %v2388 = vmul.f32 %v2385, %v2385
    %v2390 = vrot.slane %v2388, 7
    %v2392 = vsub.f32 %v2385, %v2390
    %v2393 = vmax.f32 %v2392, 0.0
    %v2394 = vld [vmem:[%s4] sm:$0x1]
    %v2395 = vadd.f32 %v2393, 1e-05
    %v2396 = vrsqrt.pop %v2395
    %v2399 = vunpack.c.l.s4 1966171168
    %v2400 = vunpack.c.0.s8 %v2399
    %v2401 = vlaneseq
    %v2402 = vshrl.u32 %v2401, 7
    %v2403 = vsub.s32 %v2400, %v2402
    %v2404 = vrot.slane %v2396, %v2403
    %v2405 = vcombine.high %v2404, %v2404
    %v2407 = vunpack.c.l.s4 1966171168
    %v2408 = vunpack.c.0.s8 %v2407
    %v2409 = vlaneseq
    %v2410 = vshrl.u32 %v2409, 7
    %v2411 = vsub.s32 %v2408, %v2410
    %v2412 = vrot.slane %v2405, %v2411
    %v2414 = vmul.f32 %v2394, %v2412
    %v2415 = vld [vmem:[%s5] sm:$0x1]
    %v2416 = vmul.f32 %v2385, %v2414
    %v2417 = vsub.f32 %v2415, %v2416
    %v2419 = vlaneseq
    %v2420 = vshrl.u32 %v2419, 7
    %v2421 = vsub.s32 0, %v2420
    %v2422 = vrot.slane %v2417, %v2421
    %v2424 = vsel %vm2179, %v2414, %v2422
    %v2425 = vld [vmem:[%s3] sm:$0xff]
    %v2426 = vld [vmem:[%s3 + $0x8] sm:$0xff]
    %v2427 = vld [vmem:[%s3 + $0x10] sm:$0xff]
    %v2428 = vld [vmem:[%s3 + $0x18] sm:$0xff]
    %vm2429 = vcmask 64512
    %v2431 = vsel %vm2429, %v2424, 0
    %2433 = vmatprep.subr.mxu0 0.0
    %2434 = vmatpush1.msra.mxu0 0.0
    %2435 = vmatprep.subr.mxu0 0.0
    %2436 = vmatpush1.msra.mxu0 0.0
    %2437 = vmatprep.subr.mxu0 0.0
    %2438 = vmatpush1.msra.mxu0 0.0
    %2439 = vmatprep.subr.mxu0 0.0
    %2440 = vmatpush1.msra.mxu0 0.0
    %2441 = vmatprep.subr.mxu0 0.0
    %2442 = vmatpush1.msra.mxu0 0.0
    %2443 = vmatprep.subr.mxu0 0.0
    %2444 = vmatpush1.msra.mxu0 0.0
    %2445 = vmatprep.subr.mxu0 0.0
    %2446 = vmatpush1.msra.mxu0 0.0
    %2447 = vmatprep.subr.mxu0 0.0
    %2448 = vmatpush1.msra.mxu0 0.0
    %2449 = vmatprep.subr.mxu0 0.0
    %2450 = vmatpush1.msra.mxu0 0.0
    %2451 = vmatprep.subr.mxu0 0.0
    %2452 = vmatpush1.msra.mxu0 0.0
    %2453 = vmatprep.subr.mxu0 0.0
    %2454 = vmatpush1.msra.mxu0 0.0
    %2455 = vmatprep.subr.mxu0 0.0
    %2456 = vmatpush1.msra.mxu0 0.0
    %2457 = vmatprep.subr.mxu0 0.0
    %2458 = vmatpush1.msra.mxu0 0.0
    %2459 = vmatprep.subr.mxu0 0.0
    %2460 = vmatpush1.msra.mxu0 0.0
    %2461 = vmatprep.subr.mxu0 0.0
    %2462 = vmatpush1.msra.mxu0 0.0
    %2463 = vmatprep.subr.mxu0 %v2426
    %2464 = vmatpush1.msra.mxu0 %v2425
    %2465 = vmatprep.subr.mxu0 0.0
    %2466 = vmatpush2.msra.mxu0 0.0
    %2467 = vmatprep.subr.mxu0 0.0
    %2468 = vmatpush2.msra.mxu0 0.0
    %2469 = vmatprep.subr.mxu0 0.0
    %2470 = vmatpush2.msra.mxu0 0.0
    %2471 = vmatprep.subr.mxu0 0.0
    %2472 = vmatpush2.msra.mxu0 0.0
    %2473 = vmatprep.subr.mxu0 0.0
    %2474 = vmatpush2.msra.mxu0 0.0
    %2475 = vmatprep.subr.mxu0 0.0
    %2476 = vmatpush2.msra.mxu0 0.0
    %2477 = vmatprep.subr.mxu0 0.0
    %2478 = vmatpush2.msra.mxu0 0.0
    %2479 = vmatprep.subr.mxu0 0.0
    %2480 = vmatpush2.msra.mxu0 0.0
    %2481 = vmatprep.subr.mxu0 0.0
    %2482 = vmatpush2.msra.mxu0 0.0
    %2483 = vmatprep.subr.mxu0 0.0
    %2484 = vmatpush2.msra.mxu0 0.0
    %2485 = vmatprep.subr.mxu0 0.0
    %2486 = vmatpush2.msra.mxu0 0.0
    %2487 = vmatprep.subr.mxu0 0.0
    %2488 = vmatpush2.msra.mxu0 0.0
    %2489 = vmatprep.subr.mxu0 0.0
    %2490 = vmatpush2.msra.mxu0 0.0
    %2491 = vmatprep.subr.mxu0 0.0
    %2492 = vmatpush2.msra.mxu0 0.0
    %2493 = vmatprep.subr.mxu0 0.0
    %2494 = vmatpush2.msra.mxu0 0.0
    %2495 = vmatprep.subr.mxu0 0.0
    %2496 = vmatpush2.msra.mxu0 0.0
    %2497 = vmatprep.mubr.f32.mxu0 0.0
    %2498 = vmatmul.mubr.f32.gmra.mxu0 %v2431
    %v2499 = vpop.f32.mrf.mxu0
    %v2500 = vadd.f32 0.0, %v2499
    %v2501 = vpop.f32.mrf.mxu0
    %v2502 = vadd.f32 0.0, %v2501
    %2503 = vdwg.mxu0
    %2504 = vmatprep.subr.mxu0 0.0
    %2505 = vmatpush1.msra.mxu0 0.0
    %2506 = vmatprep.subr.mxu0 0.0
    %2507 = vmatpush1.msra.mxu0 0.0
    %2508 = vmatprep.subr.mxu0 0.0
    %2509 = vmatpush1.msra.mxu0 0.0
    %2510 = vmatprep.subr.mxu0 0.0
    %2511 = vmatpush1.msra.mxu0 0.0
    %2512 = vmatprep.subr.mxu0 0.0
    %2513 = vmatpush1.msra.mxu0 0.0
    %2514 = vmatprep.subr.mxu0 0.0
    %2515 = vmatpush1.msra.mxu0 0.0
    %2516 = vmatprep.subr.mxu0 0.0
    %2517 = vmatpush1.msra.mxu0 0.0
    %2518 = vmatprep.subr.mxu0 0.0
    %2519 = vmatpush1.msra.mxu0 0.0
    %2520 = vmatprep.subr.mxu0 0.0
    %2521 = vmatpush1.msra.mxu0 0.0
    %2522 = vmatprep.subr.mxu0 0.0
    %2523 = vmatpush1.msra.mxu0 0.0
    %2524 = vmatprep.subr.mxu0 0.0
    %2525 = vmatpush1.msra.mxu0 0.0
    %2526 = vmatprep.subr.mxu0 0.0
    %2527 = vmatpush1.msra.mxu0 0.0
    %2528 = vmatprep.subr.mxu0 0.0
    %2529 = vmatpush1.msra.mxu0 0.0
    %2530 = vmatprep.subr.mxu0 0.0
    %2531 = vmatpush1.msra.mxu0 0.0
    %2532 = vmatprep.subr.mxu0 0.0
    %2533 = vmatpush1.msra.mxu0 0.0
    %2534 = vmatprep.subr.mxu0 %v2428
    %2535 = vmatpush1.msra.mxu0 %v2427
    %2536 = vmatprep.subr.mxu0 0.0
    %2537 = vmatpush2.msra.mxu0 0.0
    %2538 = vmatprep.subr.mxu0 0.0
    %2539 = vmatpush2.msra.mxu0 0.0
    %2540 = vmatprep.subr.mxu0 0.0
    %2541 = vmatpush2.msra.mxu0 0.0
    %2542 = vmatprep.subr.mxu0 0.0
    %2543 = vmatpush2.msra.mxu0 0.0
    %2544 = vmatprep.subr.mxu0 0.0
    %2545 = vmatpush2.msra.mxu0 0.0
    %2546 = vmatprep.subr.mxu0 0.0
    %2547 = vmatpush2.msra.mxu0 0.0
    %2548 = vmatprep.subr.mxu0 0.0
    %2549 = vmatpush2.msra.mxu0 0.0
    %2550 = vmatprep.subr.mxu0 0.0
    %2551 = vmatpush2.msra.mxu0 0.0
    %2552 = vmatprep.subr.mxu0 0.0
    %2553 = vmatpush2.msra.mxu0 0.0
    %2554 = vmatprep.subr.mxu0 0.0
    %2555 = vmatpush2.msra.mxu0 0.0
    %2556 = vmatprep.subr.mxu0 0.0
    %2557 = vmatpush2.msra.mxu0 0.0
    %2558 = vmatprep.subr.mxu0 0.0
    %2559 = vmatpush2.msra.mxu0 0.0
    %2560 = vmatprep.subr.mxu0 0.0
    %2561 = vmatpush2.msra.mxu0 0.0
    %2562 = vmatprep.subr.mxu0 0.0
    %2563 = vmatpush2.msra.mxu0 0.0
    %2564 = vmatprep.subr.mxu0 0.0
    %2565 = vmatpush2.msra.mxu0 0.0
    %2566 = vmatprep.subr.mxu0 0.0
    %2567 = vmatpush2.msra.mxu0 0.0
    %2568 = vmatprep.mubr.f32.mxu0 0.0
    %2569 = vmatmul.mubr.f32.gmra.mxu0 %v2431
    %v2570 = vpop.f32.mrf.mxu0
    %v2571 = vadd.f32 0.0, %v2570
    %v2572 = vpop.f32.mrf.mxu0
    %v2573 = vadd.f32 0.0, %v2572
    %2574 = vdwg.mxu0
    %v2575 = vlaneseq
    %v2576 = vshrl.u32 %v2575, 7
    %v2577 = vsub.s32 0, %v2576
    %v2578 = vrot.slane %v2500, %v2577
    %v2579 = vlaneseq
    %v2580 = vshrl.u32 %v2579, 7
    %v2581 = vsub.s32 0, %v2580
    %v2582 = vrot.slane %v2502, %v2581
    %v2583 = vlaneseq
    %v2584 = vshrl.u32 %v2583, 7
    %v2585 = vsub.s32 0, %v2584
    %v2586 = vrot.slane %v2571, %v2585
    %v2587 = vlaneseq
    %v2588 = vshrl.u32 %v2587, 7
    %v2589 = vsub.s32 0, %v2588
    %v2590 = vrot.slane %v2573, %v2589
    %v2591 = vmul.f32 %v1948, %v2578
    %v2592 = vmul.f32 %v1950, %v2582
    %v2593 = vmul.f32 %v2112, %v2586
    %v2594 = vmul.f32 %v2114, %v2590
    %v2595 = vlaneseq
    %v2596 = vshrl.u32 %v2595, 7
    %v2597 = vsub.s32 1, %v2596
    %v2598 = vrot.slane %v2500, %v2597
    %v2599 = vlaneseq
    %v2600 = vshrl.u32 %v2599, 7
    %v2601 = vsub.s32 1, %v2600
    %v2602 = vrot.slane %v2502, %v2601
    %v2603 = vlaneseq
    %v2604 = vshrl.u32 %v2603, 7
    %v2605 = vsub.s32 1, %v2604
    %v2606 = vrot.slane %v2571, %v2605
    %v2607 = vlaneseq
    %v2608 = vshrl.u32 %v2607, 7
    %v2609 = vsub.s32 1, %v2608
    %v2610 = vrot.slane %v2573, %v2609
    %v2611 = vadd.f32 %v2591, %v2598
    %v2612 = vadd.f32 %v2592, %v2602
    %v2613 = vadd.f32 %v2593, %v2606
    %v2614 = vadd.f32 %v2594, %v2610
    %v2615 = vmax.f32 %v2611, 0.0
    %v2616 = vmax.f32 %v2612, 0.0
    %v2617 = vmax.f32 %v2613, 0.0
    %v2618 = vmax.f32 %v2614, 0.0
    %v2619 = vpack.c.bf16 %v2615, %v2615
    %v2620 = vpack.c.bf16 %v2616, %v2616
    %v2621 = vpack.c.bf16 %v2617, %v2617
    %v2622 = vpack.c.bf16 %v2618, %v2618
    %v2623 = vld [vmem:[#allocation5] sm:$0xff]
    %v2624 = vld [vmem:[#allocation5 + $0x8] sm:$0xff]
    %v2625 = vld [vmem:[#allocation5 + $0x10] sm:$0xff]
    %v2626 = vld [vmem:[#allocation5 + $0x18] sm:$0xff]
    %v2627 = vld [vmem:[#allocation5 + $0x20] sm:$0xff]
    %v2628 = vld [vmem:[#allocation5 + $0x28] sm:$0xff]
    %v2629 = vld [vmem:[#allocation5 + $0x30] sm:$0xff]
    %v2630 = vld [vmem:[#allocation5 + $0x38] sm:$0xff]
    %v2631 = vld [vmem:[#allocation5 + $0x40] sm:$0xff]
    %v2632 = vld [vmem:[#allocation5 + $0x48] sm:$0xff]
    %v2633 = vld [vmem:[#allocation5 + $0x50] sm:$0xff]
    %v2634 = vld [vmem:[#allocation5 + $0x58] sm:$0xff]
    %v2635 = vld [vmem:[#allocation5 + $0x60] sm:$0xff]
    %v2636 = vld [vmem:[#allocation5 + $0x68] sm:$0xff]
    %v2637 = vld [vmem:[#allocation5 + $0x70] sm:$0xff]
    %v2638 = vld [vmem:[#allocation5 + $0x78] sm:$0xff]
    %v2639 = vld [vmem:[#allocation5 + $0x80] sm:$0xff]
    %v2640 = vld [vmem:[#allocation5 + $0x88] sm:$0xff]
    %v2641 = vld [vmem:[#allocation5 + $0x90] sm:$0xff]
    %v2642 = vld [vmem:[#allocation5 + $0x98] sm:$0xff]
    %v2643 = vld [vmem:[#allocation5 + $0xa0] sm:$0xff]
    %v2644 = vld [vmem:[#allocation5 + $0xa8] sm:$0xff]
    %v2645 = vld [vmem:[#allocation5 + $0xb0] sm:$0xff]
    %v2646 = vld [vmem:[#allocation5 + $0xb8] sm:$0xff]
    %v2647 = vld [vmem:[#allocation5 + $0xc0] sm:$0xff]
    %v2648 = vld [vmem:[#allocation5 + $0xc8] sm:$0xff]
    %v2649 = vld [vmem:[#allocation5 + $0xd0] sm:$0xff]
    %v2650 = vld [vmem:[#allocation5 + $0xd8] sm:$0xff]
    %v2651 = vld [vmem:[#allocation5 + $0xe0] sm:$0xff]
    %v2652 = vld [vmem:[#allocation5 + $0xe8] sm:$0xff]
    %v2653 = vld [vmem:[#allocation5 + $0xf0] sm:$0xff]
    %v2654 = vld [vmem:[#allocation5 + $0xf8] sm:$0xff]
    %v2655 = vld [vmem:[#allocation5 + $0x100] sm:$0xff]
    %v2656 = vld [vmem:[#allocation5 + $0x108] sm:$0xff]
    %v2657 = vld [vmem:[#allocation5 + $0x110] sm:$0xff]
    %v2658 = vld [vmem:[#allocation5 + $0x118] sm:$0xff]
    %v2659 = vld [vmem:[#allocation5 + $0x120] sm:$0xff]
    %v2660 = vld [vmem:[#allocation5 + $0x128] sm:$0xff]
    %v2661 = vld [vmem:[#allocation5 + $0x130] sm:$0xff]
    %v2662 = vld [vmem:[#allocation5 + $0x138] sm:$0xff]
    %v2663 = vld [vmem:[#allocation5 + $0x140] sm:$0xff]
    %v2664 = vld [vmem:[#allocation5 + $0x148] sm:$0xff]
    %v2665 = vld [vmem:[#allocation5 + $0x150] sm:$0xff]
    %v2666 = vld [vmem:[#allocation5 + $0x158] sm:$0xff]
    %v2667 = vld [vmem:[#allocation5 + $0x160] sm:$0xff]
    %v2668 = vld [vmem:[#allocation5 + $0x168] sm:$0xff]
    %v2669 = vld [vmem:[#allocation5 + $0x170] sm:$0xff]
    %v2670 = vld [vmem:[#allocation5 + $0x178] sm:$0xff]
    %v2671 = vld [vmem:[#allocation5 + $0x180] sm:$0xff]
    %v2672 = vld [vmem:[#allocation5 + $0x188] sm:$0xff]
    %v2673 = vld [vmem:[#allocation5 + $0x190] sm:$0xff]
    %v2674 = vld [vmem:[#allocation5 + $0x198] sm:$0xff]
    %v2675 = vld [vmem:[#allocation5 + $0x1a0] sm:$0xff]
    %v2676 = vld [vmem:[#allocation5 + $0x1a8] sm:$0xff]
    %v2677 = vld [vmem:[#allocation5 + $0x1b0] sm:$0xff]
    %v2678 = vld [vmem:[#allocation5 + $0x1b8] sm:$0xff]
    %v2679 = vld [vmem:[#allocation5 + $0x1c0] sm:$0xff]
    %v2680 = vld [vmem:[#allocation5 + $0x1c8] sm:$0xff]
    %v2681 = vld [vmem:[#allocation5 + $0x1d0] sm:$0xff]
    %v2682 = vld [vmem:[#allocation5 + $0x1d8] sm:$0xff]
    %v2683 = vld [vmem:[#allocation5 + $0x1e0] sm:$0xff]
    %v2684 = vld [vmem:[#allocation5 + $0x1e8] sm:$0xff]
    %v2685 = vld [vmem:[#allocation5 + $0x1f0] sm:$0xff]
    %v2686 = vld [vmem:[#allocation5 + $0x1f8] sm:$0xff]
    %v2751 = vunpack.c.l.b16 %v2623
    %v2752 = vunpack.c.h.b16 %v2623
    %v2753 = vunpack.c.l.b16 %v2624
    %v2754 = vunpack.c.h.b16 %v2624
    %v2755 = vunpack.c.l.b16 %v2625
    %v2756 = vunpack.c.h.b16 %v2625
    %v2757 = vunpack.c.l.b16 %v2626
    %v2758 = vunpack.c.h.b16 %v2626
    %v2759 = vunpack.c.l.b16 %v2627
    %v2760 = vunpack.c.h.b16 %v2627
    %v2761 = vunpack.c.l.b16 %v2628
    %v2762 = vunpack.c.h.b16 %v2628
    %v2763 = vunpack.c.l.b16 %v2629
    %v2764 = vunpack.c.h.b16 %v2629
    %v2765 = vunpack.c.l.b16 %v2630
    %v2766 = vunpack.c.h.b16 %v2630
    %v2767 = vunpack.c.l.b16 %v2631
    %v2768 = vunpack.c.h.b16 %v2631
    %v2769 = vunpack.c.l.b16 %v2632
    %v2770 = vunpack.c.h.b16 %v2632
    %v2771 = vunpack.c.l.b16 %v2633
    %v2772 = vunpack.c.h.b16 %v2633
    %v2773 = vunpack.c.l.b16 %v2634
    %v2774 = vunpack.c.h.b16 %v2634
    %v2775 = vunpack.c.l.b16 %v2635
    %v2776 = vunpack.c.h.b16 %v2635
    %v2777 = vunpack.c.l.b16 %v2636
    %v2778 = vunpack.c.h.b16 %v2636
    %v2779 = vunpack.c.l.b16 %v2637
    %v2780 = vunpack.c.h.b16 %v2637
    %v2781 = vunpack.c.l.b16 %v2638
    %v2782 = vunpack.c.h.b16 %v2638
    %v2783 = vunpack.c.l.b16 %v2639
    %v2784 = vunpack.c.h.b16 %v2639
    %v2785 = vunpack.c.l.b16 %v2640
    %v2786 = vunpack.c.h.b16 %v2640
    %v2787 = vunpack.c.l.b16 %v2641
    %v2788 = vunpack.c.h.b16 %v2641
    %v2789 = vunpack.c.l.b16 %v2642
    %v2790 = vunpack.c.h.b16 %v2642
    %v2791 = vunpack.c.l.b16 %v2643
    %v2792 = vunpack.c.h.b16 %v2643
    %v2793 = vunpack.c.l.b16 %v2644
    %v2794 = vunpack.c.h.b16 %v2644
    %v2795 = vunpack.c.l.b16 %v2645
    %v2796 = vunpack.c.h.b16 %v2645
    %v2797 = vunpack.c.l.b16 %v2646
    %v2798 = vunpack.c.h.b16 %v2646
    %v2799 = vunpack.c.l.b16 %v2647
    %v2800 = vunpack.c.h.b16 %v2647
    %v2801 = vunpack.c.l.b16 %v2648
    %v2802 = vunpack.c.h.b16 %v2648
    %v2803 = vunpack.c.l.b16 %v2649
    %v2804 = vunpack.c.h.b16 %v2649
    %v2805 = vunpack.c.l.b16 %v2650
    %v2806 = vunpack.c.h.b16 %v2650
    %v2807 = vunpack.c.l.b16 %v2651
    %v2808 = vunpack.c.h.b16 %v2651
    %v2809 = vunpack.c.l.b16 %v2652
    %v2810 = vunpack.c.h.b16 %v2652
    %v2811 = vunpack.c.l.b16 %v2653
    %v2812 = vunpack.c.h.b16 %v2653
    %v2813 = vunpack.c.l.b16 %v2654
    %v2814 = vunpack.c.h.b16 %v2654
    %v2815 = vunpack.c.l.b16 %v2655
    %v2816 = vunpack.c.h.b16 %v2655
    %v2817 = vunpack.c.l.b16 %v2656
    %v2818 = vunpack.c.h.b16 %v2656
    %v2819 = vunpack.c.l.b16 %v2657
    %v2820 = vunpack.c.h.b16 %v2657
    %v2821 = vunpack.c.l.b16 %v2658
    %v2822 = vunpack.c.h.b16 %v2658
    %v2823 = vunpack.c.l.b16 %v2659
    %v2824 = vunpack.c.h.b16 %v2659
    %v2825 = vunpack.c.l.b16 %v2660
    %v2826 = vunpack.c.h.b16 %v2660
    %v2827 = vunpack.c.l.b16 %v2661
    %v2828 = vunpack.c.h.b16 %v2661
    %v2829 = vunpack.c.l.b16 %v2662
    %v2830 = vunpack.c.h.b16 %v2662
    %v2831 = vunpack.c.l.b16 %v2663
    %v2832 = vunpack.c.h.b16 %v2663
    %v2833 = vunpack.c.l.b16 %v2664
    %v2834 = vunpack.c.h.b16 %v2664
    %v2835 = vunpack.c.l.b16 %v2665
    %v2836 = vunpack.c.h.b16 %v2665
    %v2837 = vunpack.c.l.b16 %v2666
    %v2838 = vunpack.c.h.b16 %v2666
    %v2839 = vunpack.c.l.b16 %v2667
    %v2840 = vunpack.c.h.b16 %v2667
    %v2841 = vunpack.c.l.b16 %v2668
    %v2842 = vunpack.c.h.b16 %v2668
    %v2843 = vunpack.c.l.b16 %v2669
    %v2844 = vunpack.c.h.b16 %v2669
    %v2845 = vunpack.c.l.b16 %v2670
    %v2846 = vunpack.c.h.b16 %v2670
    %v2847 = vunpack.c.l.b16 %v2671
    %v2848 = vunpack.c.h.b16 %v2671
    %v2849 = vunpack.c.l.b16 %v2672
    %v2850 = vunpack.c.h.b16 %v2672
    %v2851 = vunpack.c.l.b16 %v2673
    %v2852 = vunpack.c.h.b16 %v2673
    %v2853 = vunpack.c.l.b16 %v2674
    %v2854 = vunpack.c.h.b16 %v2674
    %v2855 = vunpack.c.l.b16 %v2675
    %v2856 = vunpack.c.h.b16 %v2675
    %v2857 = vunpack.c.l.b16 %v2676
    %v2858 = vunpack.c.h.b16 %v2676
    %v2859 = vunpack.c.l.b16 %v2677
    %v2860 = vunpack.c.h.b16 %v2677
    %v2861 = vunpack.c.l.b16 %v2678
    %v2862 = vunpack.c.h.b16 %v2678
    %v2863 = vunpack.c.l.b16 %v2679
    %v2864 = vunpack.c.h.b16 %v2679
    %v2865 = vunpack.c.l.b16 %v2680
    %v2866 = vunpack.c.h.b16 %v2680
    %v2867 = vunpack.c.l.b16 %v2681
    %v2868 = vunpack.c.h.b16 %v2681
    %v2869 = vunpack.c.l.b16 %v2682
    %v2870 = vunpack.c.h.b16 %v2682
    %v2871 = vunpack.c.l.b16 %v2683
    %v2872 = vunpack.c.h.b16 %v2683
    %v2873 = vunpack.c.l.b16 %v2684
    %v2874 = vunpack.c.h.b16 %v2684
    %v2875 = vunpack.c.l.b16 %v2685
    %v2876 = vunpack.c.h.b16 %v2685
    %v2877 = vunpack.c.l.b16 %v2686
    %v2878 = vunpack.c.h.b16 %v2686
    %v2879 = vpack.c.b16 %v2753, %v2751
    %v2880 = vpack.c.b16 %v2754, %v2752
    %v2881 = vpack.c.b16 %v2757, %v2755
    %v2882 = vpack.c.b16 %v2758, %v2756
    %v2883 = vpack.c.b16 %v2761, %v2759
    %v2884 = vpack.c.b16 %v2762, %v2760
    %v2885 = vpack.c.b16 %v2765, %v2763
    %v2886 = vpack.c.b16 %v2766, %v2764
    %v2887 = vpack.c.b16 %v2769, %v2767
    %v2888 = vpack.c.b16 %v2770, %v2768
    %v2889 = vpack.c.b16 %v2773, %v2771
    %v2890 = vpack.c.b16 %v2774, %v2772
    %v2891 = vpack.c.b16 %v2777, %v2775
    %v2892 = vpack.c.b16 %v2778, %v2776
    %v2893 = vpack.c.b16 %v2781, %v2779
    %v2894 = vpack.c.b16 %v2782, %v2780
    %v2895 = vpack.c.b16 %v2785, %v2783
    %v2896 = vpack.c.b16 %v2786, %v2784
    %v2897 = vpack.c.b16 %v2789, %v2787
    %v2898 = vpack.c.b16 %v2790, %v2788
    %v2899 = vpack.c.b16 %v2793, %v2791
    %v2900 = vpack.c.b16 %v2794, %v2792
    %v2901 = vpack.c.b16 %v2797, %v2795
    %v2902 = vpack.c.b16 %v2798, %v2796
    %v2903 = vpack.c.b16 %v2801, %v2799
    %v2904 = vpack.c.b16 %v2802, %v2800
    %v2905 = vpack.c.b16 %v2805, %v2803
    %v2906 = vpack.c.b16 %v2806, %v2804
    %v2907 = vpack.c.b16 %v2809, %v2807
    %v2908 = vpack.c.b16 %v2810, %v2808
    %v2909 = vpack.c.b16 %v2813, %v2811
    %v2910 = vpack.c.b16 %v2814, %v2812
    %v2911 = vpack.c.b16 %v2817, %v2815
    %v2912 = vpack.c.b16 %v2818, %v2816
    %v2913 = vpack.c.b16 %v2821, %v2819
    %v2914 = vpack.c.b16 %v2822, %v2820
    %v2915 = vpack.c.b16 %v2825, %v2823
    %v2916 = vpack.c.b16 %v2826, %v2824
    %v2917 = vpack.c.b16 %v2829, %v2827
    %v2918 = vpack.c.b16 %v2830, %v2828
    %v2919 = vpack.c.b16 %v2833, %v2831
    %v2920 = vpack.c.b16 %v2834, %v2832
    %v2921 = vpack.c.b16 %v2837, %v2835
    %v2922 = vpack.c.b16 %v2838, %v2836
    %v2923 = vpack.c.b16 %v2841, %v2839
    %v2924 = vpack.c.b16 %v2842, %v2840
    %v2925 = vpack.c.b16 %v2845, %v2843
    %v2926 = vpack.c.b16 %v2846, %v2844
    %v2927 = vpack.c.b16 %v2849, %v2847
    %v2928 = vpack.c.b16 %v2850, %v2848
    %v2929 = vpack.c.b16 %v2853, %v2851
    %v2930 = vpack.c.b16 %v2854, %v2852
    %v2931 = vpack.c.b16 %v2857, %v2855
    %v2932 = vpack.c.b16 %v2858, %v2856
    %v2933 = vpack.c.b16 %v2861, %v2859
    %v2934 = vpack.c.b16 %v2862, %v2860
    %v2935 = vpack.c.b16 %v2865, %v2863
    %v2936 = vpack.c.b16 %v2866, %v2864
    %v2937 = vpack.c.b16 %v2869, %v2867
    %v2938 = vpack.c.b16 %v2870, %v2868
    %v2939 = vpack.c.b16 %v2873, %v2871
    %v2940 = vpack.c.b16 %v2874, %v2872
    %v2941 = vpack.c.b16 %v2877, %v2875
    %v2942 = vpack.c.b16 %v2878, %v2876
    %3007 = vmatprep.subr.bf16.mxu0 %v2894
    %3008 = vmatpush1.bf16.msra.mxu0 %v2893
    %3009 = vmatprep.subr.bf16.mxu0 %v2892
    %3010 = vmatpush1.bf16.msra.mxu0 %v2891
    %3011 = vmatprep.subr.bf16.mxu0 %v2890
    %3012 = vmatpush1.bf16.msra.mxu0 %v2889
    %3013 = vmatprep.subr.bf16.mxu0 %v2888
    %3014 = vmatpush1.bf16.msra.mxu0 %v2887
    %3015 = vmatprep.subr.bf16.mxu0 %v2886
    %3016 = vmatpush1.bf16.msra.mxu0 %v2885
    %3017 = vmatprep.subr.bf16.mxu0 %v2884
    %3018 = vmatpush1.bf16.msra.mxu0 %v2883
    %3019 = vmatprep.subr.bf16.mxu0 %v2882
    %3020 = vmatpush1.bf16.msra.mxu0 %v2881
    %3021 = vmatprep.subr.bf16.mxu0 %v2880
    %3022 = vmatpush1.bf16.msra.mxu0 %v2879
    %3023 = vmatprep.subr.bf16.mxu0 %v2910
    %3024 = vmatpush2.bf16.msra.mxu0 %v2909
    %3025 = vmatprep.subr.bf16.mxu0 %v2908
    %3026 = vmatpush2.bf16.msra.mxu0 %v2907
    %3027 = vmatprep.subr.bf16.mxu0 %v2906
    %3028 = vmatpush2.bf16.msra.mxu0 %v2905
    %3029 = vmatprep.subr.bf16.mxu0 %v2904
    %3030 = vmatpush2.bf16.msra.mxu0 %v2903
    %3031 = vmatprep.subr.bf16.mxu0 %v2902
    %3032 = vmatpush2.bf16.msra.mxu0 %v2901
    %3033 = vmatprep.subr.bf16.mxu0 %v2900
    %3034 = vmatpush2.bf16.msra.mxu0 %v2899
    %3035 = vmatprep.subr.bf16.mxu0 %v2898
    %3036 = vmatpush2.bf16.msra.mxu0 %v2897
    %3037 = vmatprep.subr.bf16.mxu0 %v2896
    %3038 = vmatpush2.bf16.msra.mxu0 %v2895
    %3039 = vmatprep.mubr.bf16.mxu0 %v2620
    %3040 = vmatmul.mubr.bf16.gmra.mxu0 %v2619
    %v3041 = vpop.f32.mrf.mxu0
    %v3042 = vadd.f32 0.0, %v3041
    %v3043 = vpop.f32.mrf.mxu0
    %v3044 = vadd.f32 0.0, %v3043
    %v3045 = vpop.f32.mrf.mxu0
    %v3046 = vpop.f32.mrf.mxu0
    %3047 = vdwg.mxu0
    %3048 = vmatprep.subr.bf16.mxu0 %v2926
    %3049 = vmatpush1.bf16.msra.mxu0 %v2925
    %3050 = vmatprep.subr.bf16.mxu0 %v2924
    %3051 = vmatpush1.bf16.msra.mxu0 %v2923
    %3052 = vmatprep.subr.bf16.mxu0 %v2922
    %3053 = vmatpush1.bf16.msra.mxu0 %v2921
    %3054 = vmatprep.subr.bf16.mxu0 %v2920
    %3055 = vmatpush1.bf16.msra.mxu0 %v2919
    %3056 = vmatprep.subr.bf16.mxu0 %v2918
    %3057 = vmatpush1.bf16.msra.mxu0 %v2917
    %3058 = vmatprep.subr.bf16.mxu0 %v2916
    %3059 = vmatpush1.bf16.msra.mxu0 %v2915
    %3060 = vmatprep.subr.bf16.mxu0 %v2914
    %3061 = vmatpush1.bf16.msra.mxu0 %v2913
    %3062 = vmatprep.subr.bf16.mxu0 %v2912
    %3063 = vmatpush1.bf16.msra.mxu0 %v2911
    %3064 = vmatprep.subr.bf16.mxu0 %v2942
    %3065 = vmatpush2.bf16.msra.mxu0 %v2941
    %3066 = vmatprep.subr.bf16.mxu0 %v2940
    %3067 = vmatpush2.bf16.msra.mxu0 %v2939
    %3068 = vmatprep.subr.bf16.mxu0 %v2938
    %3069 = vmatpush2.bf16.msra.mxu0 %v2937
    %3070 = vmatprep.subr.bf16.mxu0 %v2936
    %3071 = vmatpush2.bf16.msra.mxu0 %v2935
    %3072 = vmatprep.subr.bf16.mxu0 %v2934
    %3073 = vmatpush2.bf16.msra.mxu0 %v2933
    %3074 = vmatprep.subr.bf16.mxu0 %v2932
    %3075 = vmatpush2.bf16.msra.mxu0 %v2931
    %3076 = vmatprep.subr.bf16.mxu0 %v2930
    %3077 = vmatpush2.bf16.msra.mxu0 %v2929
    %3078 = vmatprep.subr.bf16.mxu0 %v2928
    %3079 = vmatpush2.bf16.msra.mxu0 %v2927
    %3080 = vmatprep.mubr.bf16.mxu0 %v2622
    %3081 = vmatmul.mubr.bf16.gmra.mxu0 %v2621
    %v3082 = vpop.f32.mrf.mxu0
    %v3083 = vadd.f32 %v3042, %v3082
    %v3084 = vpop.f32.mrf.mxu0
    %v3085 = vadd.f32 %v3044, %v3084
    %v3086 = vpop.f32.mrf.mxu0
    %v3087 = vpop.f32.mrf.mxu0
    %3088 = vdwg.mxu0
    %v3089 = vsel %vm2118, %v3083, 0.0
    %v3090 = vrot.slane %v3089, 4
    %v3091 = vadd.f32 %v3089, %v3090
    %v3092 = vrot.slane %v3091, 2
    %v3093 = vadd.f32 %v3091, %v3092
    %v3094 = vrot.slane %v3093, 1
    %v3095 = vadd.f32 %v3093, %v3094
    %v3096 = vsel %vm2118, %v3085, 0.0
    %v3097 = vrot.slane %v3096, 4
    %v3098 = vadd.f32 %v3096, %v3097
    %v3099 = vrot.slane %v3098, 2
    %v3100 = vadd.f32 %v3098, %v3099
    %v3101 = vrot.slane %v3100, 1
    %v3102 = vadd.f32 %v3100, %v3101
    %v3103 = vmul.f32 %v3083, %v3083
    %v3104 = vmul.f32 %v3085, %v3085
    %v3105 = vsel %vm2118, %v3103, 0.0
    %v3106 = vrot.slane %v3105, 4
    %v3107 = vadd.f32 %v3105, %v3106
    %v3108 = vrot.slane %v3107, 2
    %v3109 = vadd.f32 %v3107, %v3108
    %v3110 = vrot.slane %v3109, 1
    %v3111 = vadd.f32 %v3109, %v3110
    %v3112 = vsel %vm2118, %v3104, 0.0
    %v3113 = vrot.slane %v3112, 4
    %v3114 = vadd.f32 %v3112, %v3113
    %v3115 = vrot.slane %v3114, 2
    %v3116 = vadd.f32 %v3114, %v3115
    %v3117 = vrot.slane %v3116, 1
    %v3118 = vadd.f32 %v3116, %v3117
    %v3119 = vsel %vm2179, %v3095, %v3111
    %v3120 = vsel %vm2179, %v3102, %v3118
    %v3121 = vld [vmem:[%s7] sm:$0xff]
    %v3122 = vld [vmem:[%s7 + $0x8] sm:$0xff]
    %v3123 = vld [vmem:[%s7 + $0x10] sm:$0xff]
    %v3124 = vld [vmem:[%s7 + $0x18] sm:$0xff]
    %v3125 = vld [vmem:[%s7 + $0x20] sm:$0xff]
    %v3126 = vld [vmem:[%s7 + $0x28] sm:$0xff]
    %v3127 = vld [vmem:[%s7 + $0x30] sm:$0xff]
    %v3128 = vld [vmem:[%s7 + $0x38] sm:$0xff]
    %v3129 = vld [vmem:[%s7 + $0x40] sm:$0xff]
    %v3130 = vld [vmem:[%s7 + $0x48] sm:$0xff]
    %v3131 = vld [vmem:[%s7 + $0x50] sm:$0xff]
    %v3132 = vld [vmem:[%s7 + $0x58] sm:$0xff]
    %v3133 = vld [vmem:[%s7 + $0x60] sm:$0xff]
    %v3134 = vld [vmem:[%s7 + $0x68] sm:$0xff]
    %v3135 = vld [vmem:[%s7 + $0x70] sm:$0xff]
    %v3136 = vld [vmem:[%s7 + $0x78] sm:$0xff]
    %v3137 = vld [vmem:[%s7 + $0x80] sm:$0xff]
    %v3138 = vld [vmem:[%s7 + $0x88] sm:$0xff]
    %v3139 = vld [vmem:[%s7 + $0x90] sm:$0xff]
    %v3140 = vld [vmem:[%s7 + $0x98] sm:$0xff]
    %v3141 = vld [vmem:[%s7 + $0xa0] sm:$0xff]
    %v3142 = vld [vmem:[%s7 + $0xa8] sm:$0xff]
    %v3143 = vld [vmem:[%s7 + $0xb0] sm:$0xff]
    %v3144 = vld [vmem:[%s7 + $0xb8] sm:$0xff]
    %v3145 = vld [vmem:[%s7 + $0xc0] sm:$0xff]
    %v3146 = vld [vmem:[%s7 + $0xc8] sm:$0xff]
    %v3147 = vld [vmem:[%s7 + $0xd0] sm:$0xff]
    %v3148 = vld [vmem:[%s7 + $0xd8] sm:$0xff]
    %v3149 = vld [vmem:[%s7 + $0xe0] sm:$0xff]
    %v3150 = vld [vmem:[%s7 + $0xe8] sm:$0xff]
    %v3151 = vld [vmem:[%s7 + $0xf0] sm:$0xff]
    %v3152 = vld [vmem:[%s7 + $0xf8] sm:$0xff]
    %3153 = vmatprep.subr.mxu0 0.0
    %3154 = vmatpush1.msra.mxu0 %v3136
    %3155 = vmatprep.subr.mxu0 0.0
    %3156 = vmatpush1.msra.mxu0 %v3135
    %3157 = vmatprep.subr.mxu0 0.0
    %3158 = vmatpush1.msra.mxu0 %v3134
    %3159 = vmatprep.subr.mxu0 0.0
    %3160 = vmatpush1.msra.mxu0 %v3133
    %3161 = vmatprep.subr.mxu0 0.0
    %3162 = vmatpush1.msra.mxu0 %v3132
    %3163 = vmatprep.subr.mxu0 0.0
    %3164 = vmatpush1.msra.mxu0 %v3131
    %3165 = vmatprep.subr.mxu0 0.0
    %3166 = vmatpush1.msra.mxu0 %v3130
    %3167 = vmatprep.subr.mxu0 0.0
    %3168 = vmatpush1.msra.mxu0 %v3129
    %3169 = vmatprep.subr.mxu0 0.0
    %3170 = vmatpush1.msra.mxu0 %v3128
    %3171 = vmatprep.subr.mxu0 0.0
    %3172 = vmatpush1.msra.mxu0 %v3127
    %3173 = vmatprep.subr.mxu0 0.0
    %3174 = vmatpush1.msra.mxu0 %v3126
    %3175 = vmatprep.subr.mxu0 0.0
    %3176 = vmatpush1.msra.mxu0 %v3125
    %3177 = vmatprep.subr.mxu0 0.0
    %3178 = vmatpush1.msra.mxu0 %v3124
    %3179 = vmatprep.subr.mxu0 0.0
    %3180 = vmatpush1.msra.mxu0 %v3123
    %3181 = vmatprep.subr.mxu0 0.0
    %3182 = vmatpush1.msra.mxu0 %v3122
    %3183 = vmatprep.subr.mxu0 0.0
    %3184 = vmatpush1.msra.mxu0 %v3121
    %3185 = vmatprep.subr.mxu0 0.0
    %3186 = vmatpush2.msra.mxu0 %v3152
    %3187 = vmatprep.subr.mxu0 0.0
    %3188 = vmatpush2.msra.mxu0 %v3151
    %3189 = vmatprep.subr.mxu0 0.0
    %3190 = vmatpush2.msra.mxu0 %v3150
    %3191 = vmatprep.subr.mxu0 0.0
    %3192 = vmatpush2.msra.mxu0 %v3149
    %3193 = vmatprep.subr.mxu0 0.0
    %3194 = vmatpush2.msra.mxu0 %v3148
    %3195 = vmatprep.subr.mxu0 0.0
    %3196 = vmatpush2.msra.mxu0 %v3147
    %3197 = vmatprep.subr.mxu0 0.0
    %3198 = vmatpush2.msra.mxu0 %v3146
    %3199 = vmatprep.subr.mxu0 0.0
    %3200 = vmatpush2.msra.mxu0 %v3145
    %3201 = vmatprep.subr.mxu0 0.0
    %3202 = vmatpush2.msra.mxu0 %v3144
    %3203 = vmatprep.subr.mxu0 0.0
    %3204 = vmatpush2.msra.mxu0 %v3143
    %3205 = vmatprep.subr.mxu0 0.0
    %3206 = vmatpush2.msra.mxu0 %v3142
    %3207 = vmatprep.subr.mxu0 0.0
    %3208 = vmatpush2.msra.mxu0 %v3141
    %3209 = vmatprep.subr.mxu0 0.0
    %3210 = vmatpush2.msra.mxu0 %v3140
    %3211 = vmatprep.subr.mxu0 0.0
    %3212 = vmatpush2.msra.mxu0 %v3139
    %3213 = vmatprep.subr.mxu0 0.0
    %3214 = vmatpush2.msra.mxu0 %v3138
    %3215 = vmatprep.subr.mxu0 0.0
    %3216 = vmatpush2.msra.mxu0 %v3137
    %3217 = vmatprep.mubr.f32.mxu0 %v3120
    %3218 = vmatmul.mubr.f32.gmra.mxu0 %v3119
    %v3219 = vpop.f32.mrf.mxu0
    %v3220 = vadd.f32 0.0, %v3219
    %v3221 = vpop.f32.mrf.mxu0
    %3222 = vdwg.mxu0
    %v3223 = vmul.f32 %v3220, %v3220
    %v3225 = vrot.slane %v3223, 7
    %v3227 = vsub.f32 %v3220, %v3225
    %v3228 = vmax.f32 %v3227, 0.0
    %v3229 = vld [vmem:[%s9] sm:$0x1]
    %v3230 = vadd.f32 %v3228, 1e-05
    %v3231 = vrsqrt.pop %v3230
    %v3234 = vunpack.c.l.s4 1966171168
    %v3235 = vunpack.c.0.s8 %v3234
    %v3236 = vlaneseq
    %v3237 = vshrl.u32 %v3236, 7
    %v3238 = vsub.s32 %v3235, %v3237
    %v3239 = vrot.slane %v3231, %v3238
    %v3240 = vcombine.high %v3239, %v3239
    %v3242 = vunpack.c.l.s4 1966171168
    %v3243 = vunpack.c.0.s8 %v3242
    %v3244 = vlaneseq
    %v3245 = vshrl.u32 %v3244, 7
    %v3246 = vsub.s32 %v3243, %v3245
    %v3247 = vrot.slane %v3240, %v3246
    %v3249 = vmul.f32 %v3229, %v3247
    %v3250 = vld [vmem:[%s10] sm:$0x1]
    %v3251 = vmul.f32 %v3220, %v3249
    %v3252 = vsub.f32 %v3250, %v3251
    %v3254 = vlaneseq
    %v3255 = vshrl.u32 %v3254, 7
    %v3256 = vsub.s32 0, %v3255
    %v3257 = vrot.slane %v3252, %v3256
    %v3259 = vsel %vm2179, %v3249, %v3257
    %v3260 = vld [vmem:[#allocation7] sm:$0xff]
    %v3261 = vld [vmem:[#allocation7 + $0x8] sm:$0xff]
    %v3262 = vld [vmem:[#allocation7 + $0x10] sm:$0xff]
    %v3263 = vld [vmem:[#allocation7 + $0x18] sm:$0xff]
    %vm3264 = vcmask 130048
    %v3266 = vsel %vm3264, %v3259, 0
    %3268 = vmatprep.subr.mxu0 0.0
    %3269 = vmatpush1.msra.mxu0 0.0
    %3270 = vmatprep.subr.mxu0 0.0
    %3271 = vmatpush1.msra.mxu0 0.0
    %3272 = vmatprep.subr.mxu0 0.0
    %3273 = vmatpush1.msra.mxu0 0.0
    %3274 = vmatprep.subr.mxu0 0.0
    %3275 = vmatpush1.msra.mxu0 0.0
    %3276 = vmatprep.subr.mxu0 0.0
    %3277 = vmatpush1.msra.mxu0 0.0
    %3278 = vmatprep.subr.mxu0 0.0
    %3279 = vmatpush1.msra.mxu0 0.0
    %3280 = vmatprep.subr.mxu0 0.0
    %3281 = vmatpush1.msra.mxu0 0.0
    %3282 = vmatprep.subr.mxu0 0.0
    %3283 = vmatpush1.msra.mxu0 0.0
    %3284 = vmatprep.subr.mxu0 0.0
    %3285 = vmatpush1.msra.mxu0 0.0
    %3286 = vmatprep.subr.mxu0 0.0
    %3287 = vmatpush1.msra.mxu0 0.0
    %3288 = vmatprep.subr.mxu0 0.0
    %3289 = vmatpush1.msra.mxu0 0.0
    %3290 = vmatprep.subr.mxu0 0.0
    %3291 = vmatpush1.msra.mxu0 0.0
    %3292 = vmatprep.subr.mxu0 0.0
    %3293 = vmatpush1.msra.mxu0 0.0
    %3294 = vmatprep.subr.mxu0 0.0
    %3295 = vmatpush1.msra.mxu0 0.0
    %3296 = vmatprep.subr.mxu0 %v3263
    %3297 = vmatpush1.msra.mxu0 %v3262
    %3298 = vmatprep.subr.mxu0 %v3261
    %3299 = vmatpush1.msra.mxu0 %v3260
    %3300 = vmatprep.subr.mxu0 0.0
    %3301 = vmatpush2.msra.mxu0 0.0
    %3302 = vmatprep.subr.mxu0 0.0
    %3303 = vmatpush2.msra.mxu0 0.0
    %3304 = vmatprep.subr.mxu0 0.0
    %3305 = vmatpush2.msra.mxu0 0.0
    %3306 = vmatprep.subr.mxu0 0.0
    %3307 = vmatpush2.msra.mxu0 0.0
    %3308 = vmatprep.subr.mxu0 0.0
    %3309 = vmatpush2.msra.mxu0 0.0
    %3310 = vmatprep.subr.mxu0 0.0
    %3311 = vmatpush2.msra.mxu0 0.0
    %3312 = vmatprep.subr.mxu0 0.0
    %3313 = vmatpush2.msra.mxu0 0.0
    %3314 = vmatprep.subr.mxu0 0.0
    %3315 = vmatpush2.msra.mxu0 0.0
    %3316 = vmatprep.subr.mxu0 0.0
    %3317 = vmatpush2.msra.mxu0 0.0
    %3318 = vmatprep.subr.mxu0 0.0
    %3319 = vmatpush2.msra.mxu0 0.0
    %3320 = vmatprep.subr.mxu0 0.0
    %3321 = vmatpush2.msra.mxu0 0.0
    %3322 = vmatprep.subr.mxu0 0.0
    %3323 = vmatpush2.msra.mxu0 0.0
    %3324 = vmatprep.subr.mxu0 0.0
    %3325 = vmatpush2.msra.mxu0 0.0
    %3326 = vmatprep.subr.mxu0 0.0
    %3327 = vmatpush2.msra.mxu0 0.0
    %3328 = vmatprep.subr.mxu0 0.0
    %3329 = vmatpush2.msra.mxu0 0.0
    %3330 = vmatprep.subr.mxu0 0.0
    %3331 = vmatpush2.msra.mxu0 0.0
    %3332 = vmatprep.mubr.f32.mxu0 0.0
    %3333 = vmatmul.mubr.f32.gmra.mxu0 %v3266
    %v3334 = vpop.f32.mrf.mxu0
    %v3335 = vadd.f32 0.0, %v3334
    %v3336 = vpop.f32.mrf.mxu0
    %v3337 = vadd.f32 0.0, %v3336
    %3338 = vdwg.mxu0
    %v3339 = vlaneseq
    %v3340 = vshrl.u32 %v3339, 7
    %v3341 = vsub.s32 0, %v3340
    %v3342 = vrot.slane %v3335, %v3341
    %v3343 = vlaneseq
    %v3344 = vshrl.u32 %v3343, 7
    %v3345 = vsub.s32 0, %v3344
    %v3346 = vrot.slane %v3337, %v3345
    %v3347 = vmul.f32 %v3083, %v3342
    %v3348 = vmul.f32 %v3085, %v3346
    %v3349 = vlaneseq
    %v3350 = vshrl.u32 %v3349, 7
    %v3351 = vsub.s32 1, %v3350
    %v3352 = vrot.slane %v3335, %v3351
    %v3353 = vlaneseq
    %v3354 = vshrl.u32 %v3353, 7
    %v3355 = vsub.s32 1, %v3354
    %v3356 = vrot.slane %v3337, %v3355
    %v3357 = vadd.f32 %v3347, %v3352
    %v3358 = vadd.f32 %v3348, %v3356
    %v3359 = vmax.f32 %v3357, 0.0
    %v3360 = vmax.f32 %v3358, 0.0
    %v3361 = vpack.c.bf16 %v3359, %v3359
    %v3362 = vpack.c.bf16 %v3360, %v3360
    %v3363 = vld [vmem:[#allocation8] sm:$0xf]
    %v3364 = vld [vmem:[#allocation8 + $0x4] sm:$0xf]
    %v3365 = vld [vmem:[#allocation8 + $0x8] sm:$0xf]
    %v3366 = vld [vmem:[#allocation8 + $0xc] sm:$0xf]
    %v3367 = vld [vmem:[#allocation8 + $0x10] sm:$0xf]
    %v3368 = vld [vmem:[#allocation8 + $0x14] sm:$0xf]
    %v3369 = vld [vmem:[#allocation8 + $0x18] sm:$0xf]
    %v3370 = vld [vmem:[#allocation8 + $0x1c] sm:$0xf]
    %v3371 = vld [vmem:[#allocation8 + $0x20] sm:$0xf]
    %v3372 = vld [vmem:[#allocation8 + $0x24] sm:$0xf]
    %v3373 = vld [vmem:[#allocation8 + $0x28] sm:$0xf]
    %v3374 = vld [vmem:[#allocation8 + $0x2c] sm:$0xf]
    %v3375 = vld [vmem:[#allocation8 + $0x30] sm:$0xf]
    %v3376 = vld [vmem:[#allocation8 + $0x34] sm:$0xf]
    %v3377 = vld [vmem:[#allocation8 + $0x38] sm:$0xf]
    %v3378 = vld [vmem:[#allocation8 + $0x3c] sm:$0xf]
    %v3379 = vld [vmem:[#allocation8 + $0x40] sm:$0xf]
    %v3380 = vld [vmem:[#allocation8 + $0x44] sm:$0xf]
    %v3381 = vld [vmem:[#allocation8 + $0x48] sm:$0xf]
    %v3382 = vld [vmem:[#allocation8 + $0x4c] sm:$0xf]
    %v3383 = vld [vmem:[#allocation8 + $0x50] sm:$0xf]
    %v3384 = vld [vmem:[#allocation8 + $0x54] sm:$0xf]
    %v3385 = vld [vmem:[#allocation8 + $0x58] sm:$0xf]
    %v3386 = vld [vmem:[#allocation8 + $0x5c] sm:$0xf]
    %v3387 = vld [vmem:[#allocation8 + $0x60] sm:$0xf]
    %v3388 = vld [vmem:[#allocation8 + $0x64] sm:$0xf]
    %v3389 = vld [vmem:[#allocation8 + $0x68] sm:$0xf]
    %v3390 = vld [vmem:[#allocation8 + $0x6c] sm:$0xf]
    %v3391 = vld [vmem:[#allocation8 + $0x70] sm:$0xf]
    %v3392 = vld [vmem:[#allocation8 + $0x74] sm:$0xf]
    %v3393 = vld [vmem:[#allocation8 + $0x78] sm:$0xf]
    %v3394 = vld [vmem:[#allocation8 + $0x7c] sm:$0xf]
    %v3427 = vunpack.c.l.b16 %v3363
    %v3428 = vunpack.c.l.b16 %v3364
    %v3429 = vunpack.c.l.b16 %v3365
    %v3430 = vunpack.c.l.b16 %v3366
    %v3431 = vunpack.c.l.b16 %v3367
    %v3432 = vunpack.c.l.b16 %v3368
    %v3433 = vunpack.c.l.b16 %v3369
    %v3434 = vunpack.c.l.b16 %v3370
    %v3435 = vunpack.c.l.b16 %v3371
    %v3436 = vunpack.c.l.b16 %v3372
    %v3437 = vunpack.c.l.b16 %v3373
    %v3438 = vunpack.c.l.b16 %v3374
    %v3439 = vunpack.c.l.b16 %v3375
    %v3440 = vunpack.c.l.b16 %v3376
    %v3441 = vunpack.c.l.b16 %v3377
    %v3442 = vunpack.c.l.b16 %v3378
    %v3443 = vunpack.c.l.b16 %v3379
    %v3444 = vunpack.c.l.b16 %v3380
    %v3445 = vunpack.c.l.b16 %v3381
    %v3446 = vunpack.c.l.b16 %v3382
    %v3447 = vunpack.c.l.b16 %v3383
    %v3448 = vunpack.c.l.b16 %v3384
    %v3449 = vunpack.c.l.b16 %v3385
    %v3450 = vunpack.c.l.b16 %v3386
    %v3451 = vunpack.c.l.b16 %v3387
    %v3452 = vunpack.c.l.b16 %v3388
    %v3453 = vunpack.c.l.b16 %v3389
    %v3454 = vunpack.c.l.b16 %v3390
    %v3455 = vunpack.c.l.b16 %v3391
    %v3456 = vunpack.c.l.b16 %v3392
    %v3457 = vunpack.c.l.b16 %v3393
    %v3458 = vunpack.c.l.b16 %v3394
    %v3459 = vpack.c.b16 %v3428, %v3427
    %v3460 = vpack.c.b16 %v3430, %v3429
    %v3461 = vpack.c.b16 %v3432, %v3431
    %v3462 = vpack.c.b16 %v3434, %v3433
    %v3463 = vpack.c.b16 %v3436, %v3435
    %v3464 = vpack.c.b16 %v3438, %v3437
    %v3465 = vpack.c.b16 %v3440, %v3439
    %v3466 = vpack.c.b16 %v3442, %v3441
    %v3467 = vpack.c.b16 %v3444, %v3443
    %v3468 = vpack.c.b16 %v3446, %v3445
    %v3469 = vpack.c.b16 %v3448, %v3447
    %v3470 = vpack.c.b16 %v3450, %v3449
    %v3471 = vpack.c.b16 %v3452, %v3451
    %v3472 = vpack.c.b16 %v3454, %v3453
    %v3473 = vpack.c.b16 %v3456, %v3455
    %v3474 = vpack.c.b16 %v3458, %v3457
    %3491 = vmatprep.subr.bf16.mxu0 0
    %3492 = vmatpush1.bf16.msra.mxu0 %v3466
    %3493 = vmatprep.subr.bf16.mxu0 0
    %3494 = vmatpush1.bf16.msra.mxu0 %v3465
    %3495 = vmatprep.subr.bf16.mxu0 0
    %3496 = vmatpush1.bf16.msra.mxu0 %v3464
    %3497 = vmatprep.subr.bf16.mxu0 0
    %3498 = vmatpush1.bf16.msra.mxu0 %v3463
    %3499 = vmatprep.subr.bf16.mxu0 0
    %3500 = vmatpush1.bf16.msra.mxu0 %v3462
    %3501 = vmatprep.subr.bf16.mxu0 0
    %3502 = vmatpush1.bf16.msra.mxu0 %v3461
    %3503 = vmatprep.subr.bf16.mxu0 0
    %3504 = vmatpush1.bf16.msra.mxu0 %v3460
    %3505 = vmatprep.subr.bf16.mxu0 0
    %3506 = vmatpush1.bf16.msra.mxu0 %v3459
    %3507 = vmatprep.subr.bf16.mxu0 0
    %3508 = vmatpush2.bf16.msra.mxu0 %v3474
    %3509 = vmatprep.subr.bf16.mxu0 0
    %3510 = vmatpush2.bf16.msra.mxu0 %v3473
    %3511 = vmatprep.subr.bf16.mxu0 0
    %3512 = vmatpush2.bf16.msra.mxu0 %v3472
    %3513 = vmatprep.subr.bf16.mxu0 0
    %3514 = vmatpush2.bf16.msra.mxu0 %v3471
    %3515 = vmatprep.subr.bf16.mxu0 0
    %3516 = vmatpush2.bf16.msra.mxu0 %v3470
    %3517 = vmatprep.subr.bf16.mxu0 0
    %3518 = vmatpush2.bf16.msra.mxu0 %v3469
    %3519 = vmatprep.subr.bf16.mxu0 0
    %3520 = vmatpush2.bf16.msra.mxu0 %v3468
    %3521 = vmatprep.subr.bf16.mxu0 0
    %3522 = vmatpush2.bf16.msra.mxu0 %v3467
    %3523 = vmatprep.mubr.bf16.mxu0 %v3362
    %3524 = vmatmul.mubr.bf16.gmra.mxu0 %v3361
    %v3525 = vpop.f32.mrf.mxu0
    %v3526 = vadd.f32 0.0, %v3525
    %v3527 = vpop.f32.mrf.mxu0
    %v3528 = vpop.f32.mrf.mxu0
    %v3529 = vpop.f32.mrf.mxu0
    %3530 = vdwg.mxu0
    %v3531 = vsel %vm2118, %v3526, 0.0
    %v3532 = vrot.slane %v3531, 4
    %v3533 = vadd.f32 %v3531, %v3532
    %v3534 = vrot.slane %v3533, 2
    %v3535 = vadd.f32 %v3533, %v3534
    %v3536 = vrot.slane %v3535, 1
    %v3537 = vadd.f32 %v3535, %v3536
    %v3538 = vmul.f32 %v3526, %v3526
    %v3539 = vsel %vm2118, %v3538, 0.0
    %v3540 = vrot.slane %v3539, 4
    %v3541 = vadd.f32 %v3539, %v3540
    %v3542 = vrot.slane %v3541, 2
    %v3543 = vadd.f32 %v3541, %v3542
    %v3544 = vrot.slane %v3543, 1
    %v3545 = vadd.f32 %v3543, %v3544
    %v3546 = vsel %vm2179, %v3537, %v3545
    %v3547 = vld [vmem:[#allocation10] sm:$0xff]
    %v3548 = vld [vmem:[#allocation10 + $0x8] sm:$0xff]
    %v3549 = vld [vmem:[#allocation10 + $0x10] sm:$0xff]
    %v3550 = vld [vmem:[#allocation10 + $0x18] sm:$0xff]
    %v3551 = vld [vmem:[#allocation10 + $0x20] sm:$0xff]
    %v3552 = vld [vmem:[#allocation10 + $0x28] sm:$0xff]
    %v3553 = vld [vmem:[#allocation10 + $0x30] sm:$0xff]
    %v3554 = vld [vmem:[#allocation10 + $0x38] sm:$0xff]
    %v3555 = vld [vmem:[#allocation10 + $0x40] sm:$0xff]
    %v3556 = vld [vmem:[#allocation10 + $0x48] sm:$0xff]
    %v3557 = vld [vmem:[#allocation10 + $0x50] sm:$0xff]
    %v3558 = vld [vmem:[#allocation10 + $0x58] sm:$0xff]
    %v3559 = vld [vmem:[#allocation10 + $0x60] sm:$0xff]
    %v3560 = vld [vmem:[#allocation10 + $0x68] sm:$0xff]
    %v3561 = vld [vmem:[#allocation10 + $0x70] sm:$0xff]
    %v3562 = vld [vmem:[#allocation10 + $0x78] sm:$0xff]
    %3563 = vmatprep.subr.mxu0 0.0
    %3564 = vmatpush1.msra.mxu0 %v3562
    %3565 = vmatprep.subr.mxu0 0.0
    %3566 = vmatpush1.msra.mxu0 %v3561
    %3567 = vmatprep.subr.mxu0 0.0
    %3568 = vmatpush1.msra.mxu0 %v3560
    %3569 = vmatprep.subr.mxu0 0.0
    %3570 = vmatpush1.msra.mxu0 %v3559
    %3571 = vmatprep.subr.mxu0 0.0
    %3572 = vmatpush1.msra.mxu0 %v3558
    %3573 = vmatprep.subr.mxu0 0.0
    %3574 = vmatpush1.msra.mxu0 %v3557
    %3575 = vmatprep.subr.mxu0 0.0
    %3576 = vmatpush1.msra.mxu0 %v3556
    %3577 = vmatprep.subr.mxu0 0.0
    %3578 = vmatpush1.msra.mxu0 %v3555
    %3579 = vmatprep.subr.mxu0 0.0
    %3580 = vmatpush1.msra.mxu0 %v3554
    %3581 = vmatprep.subr.mxu0 0.0
    %3582 = vmatpush1.msra.mxu0 %v3553
    %3583 = vmatprep.subr.mxu0 0.0
    %3584 = vmatpush1.msra.mxu0 %v3552
    %3585 = vmatprep.subr.mxu0 0.0
    %3586 = vmatpush1.msra.mxu0 %v3551
    %3587 = vmatprep.subr.mxu0 0.0
    %3588 = vmatpush1.msra.mxu0 %v3550
    %3589 = vmatprep.subr.mxu0 0.0
    %3590 = vmatpush1.msra.mxu0 %v3549
    %3591 = vmatprep.subr.mxu0 0.0
    %3592 = vmatpush1.msra.mxu0 %v3548
    %3593 = vmatprep.subr.mxu0 0.0
    %3594 = vmatpush1.msra.mxu0 %v3547
    %3595 = vmatprep.subr.mxu0 0.0
    %3596 = vmatpush2.msra.mxu0 0.0
    %3597 = vmatprep.subr.mxu0 0.0
    %3598 = vmatpush2.msra.mxu0 0.0
    %3599 = vmatprep.subr.mxu0 0.0
    %3600 = vmatpush2.msra.mxu0 0.0
    %3601 = vmatprep.subr.mxu0 0.0
    %3602 = vmatpush2.msra.mxu0 0.0
    %3603 = vmatprep.subr.mxu0 0.0
    %3604 = vmatpush2.msra.mxu0 0.0
    %3605 = vmatprep.subr.mxu0 0.0
    %3606 = vmatpush2.msra.mxu0 0.0
    %3607 = vmatprep.subr.mxu0 0.0
    %3608 = vmatpush2.msra.mxu0 0.0
    %3609 = vmatprep.subr.mxu0 0.0
    %3610 = vmatpush2.msra.mxu0 0.0
    %3611 = vmatprep.subr.mxu0 0.0
    %3612 = vmatpush2.msra.mxu0 0.0
    %3613 = vmatprep.subr.mxu0 0.0
    %3614 = vmatpush2.msra.mxu0 0.0
    %3615 = vmatprep.subr.mxu0 0.0
    %3616 = vmatpush2.msra.mxu0 0.0
    %3617 = vmatprep.subr.mxu0 0.0
    %3618 = vmatpush2.msra.mxu0 0.0
    %3619 = vmatprep.subr.mxu0 0.0
    %3620 = vmatpush2.msra.mxu0 0.0
    %3621 = vmatprep.subr.mxu0 0.0
    %3622 = vmatpush2.msra.mxu0 0.0
    %3623 = vmatprep.subr.mxu0 0.0
    %3624 = vmatpush2.msra.mxu0 0.0
    %3625 = vmatprep.subr.mxu0 0.0
    %3626 = vmatpush2.msra.mxu0 0.0
    %3627 = vmatprep.mubr.f32.mxu0 0.0
    %3628 = vmatmul.mubr.f32.gmra.mxu0 %v3546
    %v3629 = vpop.f32.mrf.mxu0
    %v3630 = vadd.f32 0.0, %v3629
    %v3631 = vpop.f32.mrf.mxu0
    %3632 = vdwg.mxu0
    %v3633 = vmul.f32 %v3630, %v3630
    %v3635 = vrot.slane %v3633, 7
    %v3637 = vsub.f32 %v3630, %v3635
    %v3638 = vmax.f32 %v3637, 0.0
    %v3639 = vld [vmem:[%s14] sm:$0x1]
    %v3640 = vadd.f32 %v3638, 1e-05
    %v3641 = vrsqrt.pop %v3640
    %v3644 = vunpack.c.l.s4 1966171168
    %v3645 = vunpack.c.0.s8 %v3644
    %v3646 = vlaneseq
    %v3647 = vshrl.u32 %v3646, 7
    %v3648 = vsub.s32 %v3645, %v3647
    %v3649 = vrot.slane %v3641, %v3648
    %v3650 = vcombine.high %v3649, %v3649
    %v3652 = vunpack.c.l.s4 1966171168
    %v3653 = vunpack.c.0.s8 %v3652
    %v3654 = vlaneseq
    %v3655 = vshrl.u32 %v3654, 7
    %v3656 = vsub.s32 %v3653, %v3655
    %v3657 = vrot.slane %v3650, %v3656
    %v3659 = vmul.f32 %v3639, %v3657
    %v3660 = vld [vmem:[%s15] sm:$0x1]
    %v3661 = vmul.f32 %v3630, %v3659
    %v3662 = vsub.f32 %v3660, %v3661
    %v3664 = vlaneseq
    %v3665 = vshrl.u32 %v3664, 7
    %v3666 = vsub.s32 0, %v3665
    %v3667 = vrot.slane %v3662, %v3666
    %v3669 = vsel %vm2179, %v3659, %v3667
    %v3670 = vld [vmem:[#allocation11] sm:$0xff]
    %v3671 = vld [vmem:[#allocation11 + $0x8] sm:$0xff]
    %v3672 = vld [vmem:[#allocation11 + $0x10] sm:$0xff]
    %v3673 = vld [vmem:[#allocation11 + $0x18] sm:$0xff]
    %vm3674 = vcmask 261120
    %v3676 = vsel %vm3674, %v3669, 0
    %3678 = vmatprep.subr.mxu0 0.0
    %3679 = vmatpush1.msra.mxu0 0.0
    %3680 = vmatprep.subr.mxu0 0.0
    %3681 = vmatpush1.msra.mxu0 0.0
    %3682 = vmatprep.subr.mxu0 0.0
    %3683 = vmatpush1.msra.mxu0 0.0
    %3684 = vmatprep.subr.mxu0 0.0
    %3685 = vmatpush1.msra.mxu0 0.0
    %3686 = vmatprep.subr.mxu0 0.0
    %3687 = vmatpush1.msra.mxu0 0.0
    %3688 = vmatprep.subr.mxu0 0.0
    %3689 = vmatpush1.msra.mxu0 0.0
    %3690 = vmatprep.subr.mxu0 0.0
    %3691 = vmatpush1.msra.mxu0 0.0
    %3692 = vmatprep.subr.mxu0 0.0
    %3693 = vmatpush1.msra.mxu0 0.0
    %3694 = vmatprep.subr.mxu0 0.0
    %3695 = vmatpush1.msra.mxu0 0.0
    %3696 = vmatprep.subr.mxu0 0.0
    %3697 = vmatpush1.msra.mxu0 0.0
    %3698 = vmatprep.subr.mxu0 0.0
    %3699 = vmatpush1.msra.mxu0 0.0
    %3700 = vmatprep.subr.mxu0 0.0
    %3701 = vmatpush1.msra.mxu0 0.0
    %3702 = vmatprep.subr.mxu0 0.0
    %3703 = vmatpush1.msra.mxu0 %v3673
    %3704 = vmatprep.subr.mxu0 0.0
    %3705 = vmatpush1.msra.mxu0 %v3672
    %3706 = vmatprep.subr.mxu0 0.0
    %3707 = vmatpush1.msra.mxu0 %v3671
    %3708 = vmatprep.subr.mxu0 0.0
    %3709 = vmatpush1.msra.mxu0 %v3670
    %3710 = vmatprep.subr.mxu0 0.0
    %3711 = vmatpush2.msra.mxu0 0.0
    %3712 = vmatprep.subr.mxu0 0.0
    %3713 = vmatpush2.msra.mxu0 0.0
    %3714 = vmatprep.subr.mxu0 0.0
    %3715 = vmatpush2.msra.mxu0 0.0
    %3716 = vmatprep.subr.mxu0 0.0
    %3717 = vmatpush2.msra.mxu0 0.0
    %3718 = vmatprep.subr.mxu0 0.0
    %3719 = vmatpush2.msra.mxu0 0.0
    %3720 = vmatprep.subr.mxu0 0.0
    %3721 = vmatpush2.msra.mxu0 0.0
    %3722 = vmatprep.subr.mxu0 0.0
    %3723 = vmatpush2.msra.mxu0 0.0
    %3724 = vmatprep.subr.mxu0 0.0
    %3725 = vmatpush2.msra.mxu0 0.0
    %3726 = vmatprep.subr.mxu0 0.0
    %3727 = vmatpush2.msra.mxu0 0.0
    %3728 = vmatprep.subr.mxu0 0.0
    %3729 = vmatpush2.msra.mxu0 0.0
    %3730 = vmatprep.subr.mxu0 0.0
    %3731 = vmatpush2.msra.mxu0 0.0
    %3732 = vmatprep.subr.mxu0 0.0
    %3733 = vmatpush2.msra.mxu0 0.0
    %3734 = vmatprep.subr.mxu0 0.0
    %3735 = vmatpush2.msra.mxu0 0.0
    %3736 = vmatprep.subr.mxu0 0.0
    %3737 = vmatpush2.msra.mxu0 0.0
    %3738 = vmatprep.subr.mxu0 0.0
    %3739 = vmatpush2.msra.mxu0 0.0
    %3740 = vmatprep.subr.mxu0 0.0
    %3741 = vmatpush2.msra.mxu0 0.0
    %3742 = vmatprep.mubr.f32.mxu0 0.0
    %3743 = vmatmul.mubr.f32.gmra.mxu0 %v3676
    %v3744 = vpop.f32.mrf.mxu0
    %v3745 = vadd.f32 0.0, %v3744
    %v3746 = vpop.f32.mrf.mxu0
    %3747 = vdwg.mxu0
    %v3748 = vlaneseq
    %v3749 = vshrl.u32 %v3748, 7
    %v3750 = vsub.s32 0, %v3749
    %v3751 = vrot.slane %v3745, %v3750
    %v3752 = vmul.f32 %v3526, %v3751
    %v3753 = vlaneseq
    %v3754 = vshrl.u32 %v3753, 7
    %v3755 = vsub.s32 1, %v3754
    %v3756 = vrot.slane %v3745, %v3755
    %v3757 = vadd.f32 %v3752, %v3756
    %v3758 = vmax.f32 %v3757, 0.0
    %v3759 = vpack.c.bf16 %v3758, %v3758
    %v3760 = vld [vmem:[#allocation13] sm:$0xf]
    %v3761 = vld [vmem:[#allocation13 + $0x4] sm:$0xf]
    %v3762 = vld [vmem:[#allocation13 + $0x8] sm:$0xf]
    %v3763 = vld [vmem:[#allocation13 + $0xc] sm:$0xf]
    %v3764 = vld [vmem:[#allocation13 + $0x10] sm:$0xf]
    %v3765 = vld [vmem:[#allocation13 + $0x14] sm:$0xf]
    %v3766 = vld [vmem:[#allocation13 + $0x18] sm:$0xf]
    %v3767 = vld [vmem:[#allocation13 + $0x1c] sm:$0xf]
    %v3768 = vld [vmem:[#allocation13 + $0x20] sm:$0xf]
    %v3769 = vld [vmem:[#allocation13 + $0x24] sm:$0xf]
    %v3770 = vld [vmem:[#allocation13 + $0x28] sm:$0xf]
    %v3771 = vld [vmem:[#allocation13 + $0x2c] sm:$0xf]
    %v3772 = vld [vmem:[#allocation13 + $0x30] sm:$0xf]
    %v3773 = vld [vmem:[#allocation13 + $0x34] sm:$0xf]
    %v3774 = vld [vmem:[#allocation13 + $0x38] sm:$0xf]
    %v3775 = vld [vmem:[#allocation13 + $0x3c] sm:$0xf]
    %v3776 = vld [vmem:[%s17] sm:$0x1]
    %v3778 = vlaneseq
    %v3779 = vshrl.u32 %v3778, 7
    %v3780 = vsub.s32 0, %v3779
    %v3781 = vrot.slane %v3776, %v3780
    %v3799 = vunpack.c.l.b16 %v3760
    %v3800 = vunpack.c.l.b16 %v3761
    %v3801 = vunpack.c.l.b16 %v3762
    %v3802 = vunpack.c.l.b16 %v3763
    %v3803 = vunpack.c.l.b16 %v3764
    %v3804 = vunpack.c.l.b16 %v3765
    %v3805 = vunpack.c.l.b16 %v3766
    %v3806 = vunpack.c.l.b16 %v3767
    %v3807 = vunpack.c.l.b16 %v3768
    %v3808 = vunpack.c.l.b16 %v3769
    %v3809 = vunpack.c.l.b16 %v3770
    %v3810 = vunpack.c.l.b16 %v3771
    %v3811 = vunpack.c.l.b16 %v3772
    %v3812 = vunpack.c.l.b16 %v3773
    %v3813 = vunpack.c.l.b16 %v3774
    %v3814 = vunpack.c.l.b16 %v3775
    %v3815 = vpack.c.b16 %v3800, %v3799
    %v3816 = vpack.c.b16 %v3802, %v3801
    %v3817 = vpack.c.b16 %v3804, %v3803
    %v3818 = vpack.c.b16 %v3806, %v3805
    %v3819 = vpack.c.b16 %v3808, %v3807
    %v3820 = vpack.c.b16 %v3810, %v3809
    %v3821 = vpack.c.b16 %v3812, %v3811
    %v3822 = vpack.c.b16 %v3814, %v3813
    %3831 = vmatprep.subr.bf16.mxu0 0
    %3832 = vmatpush1.bf16.msra.mxu0 %v3822
    %3833 = vmatprep.subr.bf16.mxu0 0
    %3834 = vmatpush1.bf16.msra.mxu0 %v3821
    %3835 = vmatprep.subr.bf16.mxu0 0
    %3836 = vmatpush1.bf16.msra.mxu0 %v3820
    %3837 = vmatprep.subr.bf16.mxu0 0
    %3838 = vmatpush1.bf16.msra.mxu0 %v3819
    %3839 = vmatprep.subr.bf16.mxu0 0
    %3840 = vmatpush1.bf16.msra.mxu0 %v3818
    %3841 = vmatprep.subr.bf16.mxu0 0
    %3842 = vmatpush1.bf16.msra.mxu0 %v3817
    %3843 = vmatprep.subr.bf16.mxu0 0
    %3844 = vmatpush1.bf16.msra.mxu0 %v3816
    %3845 = vmatprep.subr.bf16.mxu0 0
    %3846 = vmatpush1.bf16.msra.mxu0 %v3815
    %3847 = vmatprep.subr.bf16.mxu0 0
    %3848 = vmatpush2.bf16.msra.mxu0 0
    %3849 = vmatprep.subr.bf16.mxu0 0
    %3850 = vmatpush2.bf16.msra.mxu0 0
    %3851 = vmatprep.subr.bf16.mxu0 0
    %3852 = vmatpush2.bf16.msra.mxu0 0
    %3853 = vmatprep.subr.bf16.mxu0 0
    %3854 = vmatpush2.bf16.msra.mxu0 0
    %3855 = vmatprep.subr.bf16.mxu0 0
    %3856 = vmatpush2.bf16.msra.mxu0 0
    %3857 = vmatprep.subr.bf16.mxu0 0
    %3858 = vmatpush2.bf16.msra.mxu0 0
    %3859 = vmatprep.subr.bf16.mxu0 0
    %3860 = vmatpush2.bf16.msra.mxu0 0
    %3861 = vmatprep.subr.bf16.mxu0 0
    %3862 = vmatpush2.bf16.msra.mxu0 0
    %3863 = vmatprep.mubr.bf16.mxu0 0
    %3864 = vmatmul.mubr.bf16.gmra.mxu0 %v3759
    %v3865 = vpop.f32.mrf.mxu0
    %v3866 = vadd.f32 %v3781, %v3865
    %v3867 = vpop.f32.mrf.mxu0
    %v3868 = vpop.f32.mrf.mxu0
    %v3869 = vpop.f32.mrf.mxu0
    %3870 = vdwg.mxu0
    %v3871 = vmax.f32 %v3866, 0.0
    %v3872 = vpack.c.bf16 %v3871, %v3871
    %v3873 = vld [vmem:[#allocation14] sm:$0xf]
    %v3874 = vld [vmem:[#allocation14 + $0x4] sm:$0xf]
    %v3875 = vld [vmem:[#allocation14 + $0x8] sm:$0xf]
    %v3876 = vld [vmem:[#allocation14 + $0xc] sm:$0xf]
    %v3877 = vld [vmem:[#allocation14 + $0x10] sm:$0xf]
    %v3878 = vld [vmem:[#allocation14 + $0x14] sm:$0xf]
    %v3879 = vld [vmem:[#allocation14 + $0x18] sm:$0xf]
    %v3880 = vld [vmem:[#allocation14 + $0x1c] sm:$0xf]
    %v3881 = vld [vmem:[#allocation14 + $0x20] sm:$0xf]
    %v3882 = vld [vmem:[#allocation14 + $0x24] sm:$0xf]
    %v3883 = vld [vmem:[#allocation14 + $0x28] sm:$0xf]
    %v3884 = vld [vmem:[#allocation14 + $0x2c] sm:$0xf]
    %v3885 = vld [vmem:[#allocation14 + $0x30] sm:$0xf]
    %v3886 = vld [vmem:[#allocation14 + $0x34] sm:$0xf]
    %v3887 = vld [vmem:[#allocation14 + $0x38] sm:$0xf]
    %v3888 = vld [vmem:[#allocation14 + $0x3c] sm:$0xf]
    %v3889 = vld [vmem:[%s19] sm:$0x1]
    %v3891 = vlaneseq
    %v3892 = vshrl.u32 %v3891, 7
    %v3893 = vsub.s32 0, %v3892
    %v3894 = vrot.slane %v3889, %v3893
    %v3912 = vunpack.c.l.b16 %v3873
    %v3913 = vunpack.c.l.b16 %v3874
    %v3914 = vunpack.c.l.b16 %v3875
    %v3915 = vunpack.c.l.b16 %v3876
    %v3916 = vunpack.c.l.b16 %v3877
    %v3917 = vunpack.c.l.b16 %v3878
    %v3918 = vunpack.c.l.b16 %v3879
    %v3919 = vunpack.c.l.b16 %v3880
    %v3920 = vunpack.c.l.b16 %v3881
    %v3921 = vunpack.c.l.b16 %v3882
    %v3922 = vunpack.c.l.b16 %v3883
    %v3923 = vunpack.c.l.b16 %v3884
    %v3924 = vunpack.c.l.b16 %v3885
    %v3925 = vunpack.c.l.b16 %v3886
    %v3926 = vunpack.c.l.b16 %v3887
    %v3927 = vunpack.c.l.b16 %v3888
    %v3928 = vpack.c.b16 %v3913, %v3912
    %v3929 = vpack.c.b16 %v3915, %v3914
    %v3930 = vpack.c.b16 %v3917, %v3916
    %v3931 = vpack.c.b16 %v3919, %v3918
    %v3932 = vpack.c.b16 %v3921, %v3920
    %v3933 = vpack.c.b16 %v3923, %v3922
    %v3934 = vpack.c.b16 %v3925, %v3924
    %v3935 = vpack.c.b16 %v3927, %v3926
    %3944 = vmatprep.subr.bf16.mxu0 0
    %3945 = vmatpush1.bf16.msra.mxu0 %v3935
    %3946 = vmatprep.subr.bf16.mxu0 0
    %3947 = vmatpush1.bf16.msra.mxu0 %v3934
    %3948 = vmatprep.subr.bf16.mxu0 0
    %3949 = vmatpush1.bf16.msra.mxu0 %v3933
    %3950 = vmatprep.subr.bf16.mxu0 0
    %3951 = vmatpush1.bf16.msra.mxu0 %v3932
    %3952 = vmatprep.subr.bf16.mxu0 0
    %3953 = vmatpush1.bf16.msra.mxu0 %v3931
    %3954 = vmatprep.subr.bf16.mxu0 0
    %3955 = vmatpush1.bf16.msra.mxu0 %v3930
    %3956 = vmatprep.subr.bf16.mxu0 0
    %3957 = vmatpush1.bf16.msra.mxu0 %v3929
    %3958 = vmatprep.subr.bf16.mxu0 0
    %3959 = vmatpush1.bf16.msra.mxu0 %v3928
    %3960 = vmatprep.subr.bf16.mxu0 0
    %3961 = vmatpush2.bf16.msra.mxu0 0
    %3962 = vmatprep.subr.bf16.mxu0 0
    %3963 = vmatpush2.bf16.msra.mxu0 0
    %3964 = vmatprep.subr.bf16.mxu0 0
    %3965 = vmatpush2.bf16.msra.mxu0 0
    %3966 = vmatprep.subr.bf16.mxu0 0
    %3967 = vmatpush2.bf16.msra.mxu0 0
    %3968 = vmatprep.subr.bf16.mxu0 0
    %3969 = vmatpush2.bf16.msra.mxu0 0
    %3970 = vmatprep.subr.bf16.mxu0 0
    %3971 = vmatpush2.bf16.msra.mxu0 0
    %3972 = vmatprep.subr.bf16.mxu0 0
    %3973 = vmatpush2.bf16.msra.mxu0 0
    %3974 = vmatprep.subr.bf16.mxu0 0
    %3975 = vmatpush2.bf16.msra.mxu0 0
    %3976 = vmatprep.mubr.bf16.mxu0 0
    %3977 = vmatmul.mubr.bf16.gmra.mxu0 %v3872
    %v3978 = vpop.f32.mrf.mxu0
    %v3979 = vadd.f32 %v3894, %v3978
    %v3980 = vpop.f32.mrf.mxu0
    %v3981 = vpop.f32.mrf.mxu0
    %v3982 = vpop.f32.mrf.mxu0
    %3983 = vdwg.mxu0
    %v3984 = vmax.f32 %v3979, 0.0
    %v3985 = vpack.c.bf16 %v3984, %v3984
    %v3986 = vld [vmem:[#allocation16] sm:$0xf]
    %v3987 = vld [vmem:[#allocation16 + $0x4] sm:$0xf]
    %v3988 = vld [vmem:[#allocation16 + $0x8] sm:$0xf]
    %v3989 = vld [vmem:[#allocation16 + $0xc] sm:$0xf]
    %v3990 = vld [vmem:[#allocation16 + $0x10] sm:$0xf]
    %v3991 = vld [vmem:[#allocation16 + $0x14] sm:$0xf]
    %v3992 = vld [vmem:[#allocation16 + $0x18] sm:$0xf]
    %v3993 = vld [vmem:[#allocation16 + $0x1c] sm:$0xf]
    %v3994 = vld [vmem:[#allocation16 + $0x20] sm:$0xf]
    %v3995 = vld [vmem:[#allocation16 + $0x24] sm:$0xf]
    %v3996 = vld [vmem:[#allocation16 + $0x28] sm:$0xf]
    %v3997 = vld [vmem:[#allocation16 + $0x2c] sm:$0xf]
    %v3998 = vld [vmem:[#allocation16 + $0x30] sm:$0xf]
    %v3999 = vld [vmem:[#allocation16 + $0x34] sm:$0xf]
    %v4000 = vld [vmem:[#allocation16 + $0x38] sm:$0xf]
    %v4001 = vld [vmem:[#allocation16 + $0x3c] sm:$0xf]
    %v4002 = vld [vmem:[%s21] sm:$0x1]
    %v4004 = vlaneseq
    %v4005 = vshrl.u32 %v4004, 7
    %v4006 = vsub.s32 0, %v4005
    %v4007 = vrot.slane %v4002, %v4006
    %v4025 = vunpack.c.l.b16 %v3986
    %v4026 = vunpack.c.l.b16 %v3987
    %v4027 = vunpack.c.l.b16 %v3988
    %v4028 = vunpack.c.l.b16 %v3989
    %v4029 = vunpack.c.l.b16 %v3990
    %v4030 = vunpack.c.l.b16 %v3991
    %v4031 = vunpack.c.l.b16 %v3992
    %v4032 = vunpack.c.l.b16 %v3993
    %v4033 = vunpack.c.l.b16 %v3994
    %v4034 = vunpack.c.l.b16 %v3995
    %v4035 = vunpack.c.l.b16 %v3996
    %v4036 = vunpack.c.l.b16 %v3997
    %v4037 = vunpack.c.l.b16 %v3998
    %v4038 = vunpack.c.l.b16 %v3999
    %v4039 = vunpack.c.l.b16 %v4000
    %v4040 = vunpack.c.l.b16 %v4001
    %v4041 = vpack.c.b16 %v4026, %v4025
    %v4042 = vpack.c.b16 %v4028, %v4027
    %v4043 = vpack.c.b16 %v4030, %v4029
    %v4044 = vpack.c.b16 %v4032, %v4031
    %v4045 = vpack.c.b16 %v4034, %v4033
    %v4046 = vpack.c.b16 %v4036, %v4035
    %v4047 = vpack.c.b16 %v4038, %v4037
    %v4048 = vpack.c.b16 %v4040, %v4039
    %4057 = vmatprep.subr.bf16.mxu0 0
    %4058 = vmatpush1.bf16.msra.mxu0 %v4048
    %4059 = vmatprep.subr.bf16.mxu0 0
    %4060 = vmatpush1.bf16.msra.mxu0 %v4047
    %4061 = vmatprep.subr.bf16.mxu0 0
    %4062 = vmatpush1.bf16.msra.mxu0 %v4046
    %4063 = vmatprep.subr.bf16.mxu0 0
    %4064 = vmatpush1.bf16.msra.mxu0 %v4045
    %4065 = vmatprep.subr.bf16.mxu0 0
    %4066 = vmatpush1.bf16.msra.mxu0 %v4044
    %4067 = vmatprep.subr.bf16.mxu0 0
    %4068 = vmatpush1.bf16.msra.mxu0 %v4043
    %4069 = vmatprep.subr.bf16.mxu0 0
    %4070 = vmatpush1.bf16.msra.mxu0 %v4042
    %4071 = vmatprep.subr.bf16.mxu0 0
    %4072 = vmatpush1.bf16.msra.mxu0 %v4041
    %4073 = vmatprep.subr.bf16.mxu0 0
    %4074 = vmatpush2.bf16.msra.mxu0 0
    %4075 = vmatprep.subr.bf16.mxu0 0
    %4076 = vmatpush2.bf16.msra.mxu0 0
    %4077 = vmatprep.subr.bf16.mxu0 0
    %4078 = vmatpush2.bf16.msra.mxu0 0
    %4079 = vmatprep.subr.bf16.mxu0 0
    %4080 = vmatpush2.bf16.msra.mxu0 0
    %4081 = vmatprep.subr.bf16.mxu0 0
    %4082 = vmatpush2.bf16.msra.mxu0 0
    %4083 = vmatprep.subr.bf16.mxu0 0
    %4084 = vmatpush2.bf16.msra.mxu0 0
    %4085 = vmatprep.subr.bf16.mxu0 0
    %4086 = vmatpush2.bf16.msra.mxu0 0
    %4087 = vmatprep.subr.bf16.mxu0 0
    %4088 = vmatpush2.bf16.msra.mxu0 0
    %4089 = vmatprep.mubr.bf16.mxu0 0
    %4090 = vmatmul.mubr.bf16.gmra.mxu0 %v3985
    %v4091 = vpop.f32.mrf.mxu0
    %v4092 = vadd.f32 %v4007, %v4091
    %v4093 = vpop.f32.mrf.mxu0
    %v4094 = vpop.f32.mrf.mxu0
    %v4095 = vpop.f32.mrf.mxu0
    %4096 = vdwg.mxu0
    %v4097 = vmax.f32 %v4092, 0.0
    %vm4098 = vcmask 123904
    %4099 = vst.msk [vmem:[#allocation17] sm:$0x3] %vm4098, %v4097
    // Predicated region
    $region126: #{_lambda_.1} parent=1 // pred_check
      _
    $region127: #{_lambda_.1} parent=1 // pred_check_branch
      %4101 = sbr.rel (0) target = $region129
    $region128: #{_lambda_.1} parent=1 // pred_region
      %s4103 = ssub.s32 32, 32
      %4104 = vsyncadd [#allocation4], %s4103
      %s4106 = sshll.u32 [#allocation17], 4
      %s4107 = int_to_ptr.vmem [resolvable:$true] %s4106
      %4109 = dma.vmem_to_hbm [thread:$0]  %s4107, 32, %s22, [#allocation4]
    $region129: #{_lambda_.1} parent=1 // pred_fallthru
      _
    // Predicated region
    $region130: #{_lambda_.1} parent=1 // pred_check
      _
    $region131: #{_lambda_.1} parent=1 // pred_check_branch
      %4111 = sbr.rel (0) target = $region133
    $region132: #{_lambda_.1} parent=1 // pred_region
      %4112 = dma.done [#allocation4], 32
    $region133: #{_lambda_.1} parent=1 // pred_fallthru
      _
    %4113 = vsyncpa [#allocation3], 1
    %4114 = vsyncpa [#allocation6], 1
    %4115 = vsyncpa [#allocation9], 1
    %4116 = vsyncpa [#allocation12], 1
    %4117 = vsyncpa [#allocation15], 1
    %4118 = vsyncpa [#allocation4], 1

</llo_original>
